<compile_context>
chip_gen: v7x
topology: tpu7x:2x2x1
jax: 0.10.0
libtpu: 0.0.40
codegen_flags: <defaults>
</compile_context>

<pallas_src>
import math

import jax
import jax.numpy as jnp
from jax.experimental import pallas as pl
from jax.experimental.pallas import tpu as pltpu


def _round_up(x, m):
    return ((x + m - 1) // m) * m


def _cdiv(a, b):
    return (a + b - 1) // b


# ----------------------------- Pallas kernel ---------------------------------
def _fbp_fused_kernel(x_ref, y_ref, kx_ref, ky_ref, kr_ref, ki_ref, o_ref):
    """One (k-split, pixel-tile, k-tile) step of the adjoint non-uniform DFT.

    x_ref  : (tm, 1)  centered pixel row coordinates for this tile
    y_ref  : (1, tn)  centered pixel col coordinates for this tile
    kx_ref : (1, tk)  k-space x component (radians)
    ky_ref : (tk, 1)  k-space y component (radians)
    kr_ref : (tk, 1)  Re(weighted k-data)  (dcomp and 'ortho' scale pre-applied)
    ki_ref : (tk, 1)  Im(weighted k-data)
    o_ref  : (tm, tn) f32 output tile; its BlockSpec index is k-invariant so it
             stays resident in VMEM across the whole reduction axis.
    """
    k = pl.program_id(3)

    @pl.when(k == 0)
    def _():
        o_ref[...] = jnp.zeros_like(o_ref)

    # Row phases: A = exp(i * x * kx) = ar + i*ai            (tm, tk)
    px = x_ref[...] * kx_ref[...]
    ar = jnp.cos(px)
    ai = jnp.sin(px)

    # Column phases folded with the weighted k-data:
    #   B = (kr + i*ki) * exp(i * ky * y) = br + i*bi        (tk, tn)
    py = ky_ref[...] * y_ref[...]
    cy = jnp.cos(py)
    sy = jnp.sin(py)
    kr = kr_ref[...]
    ki = ki_ref[...]
    br = kr * cy - ki * sy
    bi = kr * sy + ki * cy

    # img tile += Re(A @ B) = ar@br - ai@bi   (two accumulating MXU dots, f32)
    acc = jnp.dot(ar, br, preferred_element_type=jnp.float32)
    acc = acc - jnp.dot(ai, bi, preferred_element_type=jnp.float32)
    o_ref[...] += acc


# ------------------------- adjoint NUDFT (fused) ------------------------------
def adjoint_nudft(kr, ki, kx, ky, image_shape, *,
                  tm_max=512, tn_max=512, tk_max=1024, k_splits=2):
    """Exact adjoint non-uniform DFT with norm='ortho', fused-phase Pallas kernel.

    img[x, y] = (1/sqrt(H*W)) * Re( sum_k (kr+i*ki)_k * exp(+i*(x*kx_k + y*ky_k)) )
    """
    H, W = image_shape
    K = int(kr.shape[0])

    # Fold the 'ortho' normalization into the K weights (free, removes the
    # in-kernel epilogue multiply).
    scale = 1.0 / math.sqrt(float(H * W))
    kr = kr.astype(jnp.float32) * scale
    ki = ki.astype(jnp.float32) * scale
    kx = kx.astype(jnp.float32)
    ky = ky.astype(jnp.float32)

    # Centered pixel coordinates (same convention as before).
    x = jnp.arange(H, dtype=jnp.float32) - (H // 2)
    y = jnp.arange(W, dtype=jnp.float32) - (W // 2)

    # Tile sizes: pixel tiles cover the whole (padded) image when it fits so
    # the 2*K*(H+W) trig total is not redone per tile.  f32 rows -> 8-row
    # sublane granule; lane axes in multiples of 128 (lane-dense stores).
    tm = min(tm_max, _round_up(H, 8))
    tn = min(tn_max, _round_up(W, 128))
    tk = min(tk_max, _round_up(K, 128))

    Hp = _round_up(H, tm)
    Wp = _round_up(W, tn)

    nkb_total = _cdiv(K, tk)
    ks = k_splits if nkb_total >= k_splits else 1   # keep both v7x TCs busy
    nkb = _cdiv(nkb_total, ks)                      # k blocks per split
    Kp = ks * nkb * tk

    # Zero-padded k weights contribute nothing (br = bi = 0 there), so the
    # reduction stays exact; padded pixel rows/cols are sliced off at the end.
    x_col = jnp.pad(x, (0, Hp - H))[:, None]        # (Hp, 1)
    y_row = jnp.pad(y, (0, Wp - W))[None, :]        # (1, Wp)
    kx_row = jnp.pad(kx, (0, Kp - K))[None, :]      # (1, Kp)
    ky_col = jnp.pad(ky, (0, Kp - K))[:, None]      # (Kp, 1)
    kr_col = jnp.pad(kr, (0, Kp - K))[:, None]      # (Kp, 1)
    ki_col = jnp.pad(ki, (0, Kp - K))[:, None]      # (Kp, 1)

    nib = Hp // tm
    njb = Wp // tn
    grid = (ks, nib, njb, nkb)                      # reduction axis last

    def x_map(c, i, j, k):
        return (i, 0)

    def y_map(c, i, j, k):
        return (0, j)

    def krow_map(c, i, j, k):
        return (0, c * nkb + k)

    def kcol_map(c, i, j, k):
        return (c * nkb + k, 0)

    def out_map(c, i, j, k):                        # k-invariant -> resident acc
        return (c * nib + i, j)

    out = pl.pallas_call(
        _fbp_fused_kernel,
        out_shape=jax.ShapeDtypeStruct((ks * Hp, Wp), jnp.float32),
        grid_spec=pltpu.PrefetchScalarGridSpec(
            num_scalar_prefetch=0,
            grid=grid,
            in_specs=[
                pl.BlockSpec((tm, 1), x_map),
                pl.BlockSpec((1, tn), y_map),
                pl.BlockSpec((1, tk), krow_map),
                pl.BlockSpec((tk, 1), kcol_map),
                pl.BlockSpec((tk, 1), kcol_map),
                pl.BlockSpec((tk, 1), kcol_map),
            ],
            out_specs=pl.BlockSpec((tm, tn), out_map),
        ),
        compiler_params=pltpu.CompilerParams(
            dimension_semantics=("parallel", "parallel", "parallel", "arbitrary"),
            vmem_limit_bytes=48 * 1024 * 1024,
        ),
    )(x_col, y_row, kx_row, ky_col, kr_col, ki_col)

    # Sum the K-split partial images (cheap: ks * Hp * Wp f32) and crop padding.
    img = out.reshape(ks, Hp, Wp).sum(axis=0)
    return img[:H, :W]


# ------------------------------ module wrapper --------------------------------
def radon_backward_forward(sinogram, kspace, dcomp, image_shape):
    """Mirror of radon_backward.forward.

    sinogram    : (N, M) float32
    kspace      : (2, N*M) float32 trajectory in radians (row 0 = kx, row 1 = ky)
    dcomp       : (N*M,) float32 density-compensation weights
    image_shape : (H, W)
    returns     : (1, 1, H, W) float32 image
    """
    # TODO(synk): the 1-D FFT (with fftshift/ifftshift) along the detector axis
    # has no clean Pallas primitive; done with jnp.fft glue outside the kernel.
    kdata = jnp.fft.ifftshift(sinogram.astype(jnp.complex64), axes=1)
    kdata = jnp.fft.fft(kdata, axis=1)
    kdata = jnp.fft.fftshift(kdata, axes=1)
    kdata = kdata.reshape(-1)                      # 'N M -> (N M)'

    kw = kdata * dcomp.astype(jnp.complex64)       # density compensation
    kr = jnp.real(kw)
    ki = jnp.imag(kw)

    img = adjoint_nudft(kr, ki, kspace[0], kspace[1], image_shape)
    return img[None, None]                         # (1, 1, H, W)


# ------------------------ deterministic "parameters" ---------------------------
def make_radial_kspace_and_dcomp(n_angles, n_det):
    """Deterministic radial trajectory + ramp-style density compensation.

    TODO(synk): tkbn.calc_density_compensation_function has no Pallas/JAX
    equivalent here; replaced by analytic ramp weights for a radial trajectory.
    """
    thetas = jnp.arange(n_angles, dtype=jnp.float32) * (math.pi / n_angles)
    radii = (jnp.arange(n_det, dtype=jnp.float32) - n_det // 2) * (2.0 * math.pi / n_det)
    kx = (radii[None, :] * jnp.cos(thetas)[:, None]).reshape(-1)
    ky = (radii[None, :] * jnp.sin(thetas)[:, None]).reshape(-1)
    kspace = jnp.stack([kx, ky], axis=0)           # (2, K)

    dc = jnp.abs(radii)
    dc = jnp.maximum(dc, (2.0 * math.pi / n_det) * 0.25)  # avoid zero at DC
    dc = dc / jnp.max(dc)
    dcomp = jnp.tile(dc[None, :], (n_angles, 1)).reshape(-1)  # (K,)
    return kspace, dcomp


# ------------------------------- reference ------------------------------------
def _reference_adjoint(kr, ki, kx, ky, image_shape):
    """Pure-JAX dense adjoint NUDFT (small shapes only)."""
    H, W = image_shape
    x = jnp.arange(H, dtype=jnp.float32) - (H // 2)
    y = jnp.arange(W, dtype=jnp.float32) - (W // 2)
    phase = x[:, None, None] * kx[None, None, :] + y[None, :, None] * ky[None, None, :]
    img = jnp.einsum('hwk,k->hw', jnp.cos(phase), kr) - \
          jnp.einsum('hwk,k->hw', jnp.sin(phase), ki)
    return img / jnp.sqrt(float(H * W))


if __name__ == "__main__":
    # Small shapes: 8 projection angles, 16 detector bins, 16x16 image.
    N_ANGLES, N_DET = 8, 16
    IMAGE_SHAPE = (16, 16)

    key = jax.random.PRNGKey(0)
    sinogram = jax.random.normal(key, (N_ANGLES, N_DET), dtype=jnp.float32)

    kspace, dcomp = make_radial_kspace_and_dcomp(N_ANGLES, N_DET)

    img = radon_backward_forward(sinogram, kspace, dcomp, IMAGE_SHAPE)
    img = jax.block_until_ready(img)

    assert img.shape == (1, 1) + IMAGE_SHAPE
    assert img.dtype == jnp.float32

    # Sanity check against a pure-JAX dense adjoint at these small shapes.
    kdata = jnp.fft.fftshift(
        jnp.fft.fft(jnp.fft.ifftshift(sinogram.astype(jnp.complex64), axes=1), axis=1),
        axes=1).reshape(-1)
    kw = kdata * dcomp.astype(jnp.complex64)
    ref = _reference_adjoint(jnp.real(kw), jnp.imag(kw),
                             kspace[0], kspace[1], IMAGE_SHAPE)
    err = jnp.max(jnp.abs(img[0, 0] - ref))
    assert err < 5e-3 * (jnp.max(jnp.abs(ref)) + 1e-6)

    print("KERNEL_OK")
</pallas_src>

<mosaic_0001>
module attributes {stable_mosaic.version = 11 : i64} {
  func.func @_fbp_fused_kernel(%arg0: i32, %arg1: i32, %arg2: i32, %arg3: i32, %arg4: memref<16x1xf32, #tpu.memory_space<vmem>>, %arg5: memref<1x128xf32, #tpu.memory_space<vmem>>, %arg6: memref<1x128xf32, #tpu.memory_space<vmem>>, %arg7: memref<128x1xf32, #tpu.memory_space<vmem>>, %arg8: memref<128x1xf32, #tpu.memory_space<vmem>>, %arg9: memref<128x1xf32, #tpu.memory_space<vmem>>, %arg10: memref<16x128xf32, #tpu.memory_space<vmem>>) attributes {dimension_semantics = [#tpu.dimension_semantics<parallel>, #tpu.dimension_semantics<parallel>, #tpu.dimension_semantics<parallel>, #tpu.dimension_semantics<arbitrary>], iteration_bounds = array<i64: 1, 1, 1, 1>, scalar_prefetch = 0 : i64, scratch_operands = 0 : i64, tpu.core_type = #tpu.core_type<tc>, window_params = [{transform_indices = @transform_0, window_bounds = array<i64: 16, 1>}, {transform_indices = @transform_1, window_bounds = array<i64: 1, 128>}, {transform_indices = @transform_2, window_bounds = array<i64: 1, 128>}, {transform_indices = @transform_3, window_bounds = array<i64: 128, 1>}, {transform_indices = @transform_4, window_bounds = array<i64: 128, 1>}, {transform_indices = @transform_5, window_bounds = array<i64: 128, 1>}, {transform_indices = @transform_6, window_bounds = array<i64: 16, 128>}]} {
    %c0_i32 = arith.constant 0 : i32
    %0 = arith.cmpi eq, %arg3, %c0_i32 : i32
    %1 = arith.extui %0 : i1 to i32
    %c0_i32_0 = arith.constant 0 : i32
    %2 = arith.cmpi ne, %1, %c0_i32_0 : i32
    scf.if %2 {
      %cst_17 = arith.constant 0.000000e+00 : f32
      %35 = vector.broadcast %cst_17 : f32 to vector<16x128xf32>
      %c0_18 = arith.constant 0 : index
      %c0_19 = arith.constant 0 : index
      %36 = vector.load %arg10[%c0_18, %c0_19] : memref<16x128xf32, #tpu.memory_space<vmem>>, vector<16x128xf32>
      tpu.vector_store %arg10[%c0_18, %c0_19], %35 {strides = array<i32>} : memref<16x128xf32, #tpu.memory_space<vmem>>, vector<16x128xf32>,
    } else {
    }
    %c0 = arith.constant 0 : index
    %c0_1 = arith.constant 0 : index
    %3 = vector.load %arg4[%c0, %c0_1] : memref<16x1xf32, #tpu.memory_space<vmem>>, vector<16x1xf32>
    %c0_2 = arith.constant 0 : index
    %c0_3 = arith.constant 0 : index
    %4 = vector.load %arg6[%c0_2, %c0_3] : memref<1x128xf32, #tpu.memory_space<vmem>>, vector<1x128xf32>
    %5 = vector.broadcast %3 : vector<16x1xf32> to vector<16x128xf32>
    %6 = vector.broadcast %4 : vector<1x128xf32> to vector<16x128xf32>
    %7 = arith.mulf %5, %6 : vector<16x128xf32>
    %8 = math.cos %7 : vector<16x128xf32>
    %9 = math.sin %7 : vector<16x128xf32>
    %c0_4 = arith.constant 0 : index
    %c0_5 = arith.constant 0 : index
    %10 = vector.load %arg7[%c0_4, %c0_5] : memref<128x1xf32, #tpu.memory_space<vmem>>, vector<128x1xf32>
    %c0_6 = arith.constant 0 : index
    %c0_7 = arith.constant 0 : index
    %11 = vector.load %arg5[%c0_6, %c0_7] : memref<1x128xf32, #tpu.memory_space<vmem>>, vector<1x128xf32>
    %12 = vector.broadcast %10 : vector<128x1xf32> to vector<128x128xf32>
    %13 = vector.broadcast %11 : vector<1x128xf32> to vector<128x128xf32>
    %14 = arith.mulf %12, %13 : vector<128x128xf32>
    %15 = math.cos %14 : vector<128x128xf32>
    %16 = math.sin %14 : vector<128x128xf32>
    %c0_8 = arith.constant 0 : index
    %c0_9 = arith.constant 0 : index
    %17 = vector.load %arg8[%c0_8, %c0_9] : memref<128x1xf32, #tpu.memory_space<vmem>>, vector<128x1xf32>
    %c0_10 = arith.constant 0 : index
    %c0_11 = arith.constant 0 : index
    %18 = vector.load %arg9[%c0_10, %c0_11] : memref<128x1xf32, #tpu.memory_space<vmem>>, vector<128x1xf32>
    %19 = vector.broadcast %17 : vector<128x1xf32> to vector<128x128xf32>
    %20 = arith.mulf %19, %15 : vector<128x128xf32>
    %21 = vector.broadcast %18 : vector<128x1xf32> to vector<128x128xf32>
    %22 = arith.mulf %21, %16 : vector<128x128xf32>
    %23 = arith.subf %20, %22 : vector<128x128xf32>
    %24 = vector.broadcast %17 : vector<128x1xf32> to vector<128x128xf32>
    %25 = arith.mulf %24, %16 : vector<128x128xf32>
    %26 = vector.broadcast %18 : vector<128x1xf32> to vector<128x128xf32>
    %27 = arith.mulf %26, %15 : vector<128x128xf32>
    %28 = arith.addf %25, %27 : vector<128x128xf32>
    %cst = arith.constant dense<0.000000e+00> : vector<16x128xf32>
    %29 = tpu.matmul %8, %23, %cst {dimension_numbers = #tpu.dot_dimension_numbers<[1], [0], [0], [1], [0, 0, 1, 1], [], []>} : vector<16x128xf32>, vector<128x128xf32>, vector<16x128xf32> -> vector<16x128xf32>
    %cst_12 = arith.constant dense<0.000000e+00> : vector<16x128xf32>
    %30 = tpu.matmul %9, %28, %cst_12 {dimension_numbers = #tpu.dot_dimension_numbers<[1], [0], [0], [1], [0, 0, 1, 1], [], []>} : vector<16x128xf32>, vector<128x128xf32>, vector<16x128xf32> -> vector<16x128xf32>
    %31 = arith.subf %29, %30 : vector<16x128xf32>
    %c0_13 = arith.constant 0 : index
    %c0_14 = arith.constant 0 : index
    %32 = vector.load %arg10[%c0_13, %c0_14] : memref<16x128xf32, #tpu.memory_space<vmem>>, vector<16x128xf32>
    %33 = arith.addf %32, %31 : vector<16x128xf32>
    %c0_15 = arith.constant 0 : index
    %c0_16 = arith.constant 0 : index
    %34 = vector.load %arg10[%c0_15, %c0_16] : memref<16x128xf32, #tpu.memory_space<vmem>>, vector<16x128xf32>
    tpu.vector_store %arg10[%c0_15, %c0_16], %33 {strides = array<i32>} : memref<16x128xf32, #tpu.memory_space<vmem>>, vector<16x128xf32>,
    return
  }
  func.func @transform_0(%arg0: i32, %arg1: i32, %arg2: i32, %arg3: i32) -> (i32, i32) {
    %c0_i32 = arith.constant 0 : i32
    %c0_i32_0 = arith.constant 0 : i32
    return %arg1, %c0_i32 : i32, i32
  }
  func.func @transform_1(%arg0: i32, %arg1: i32, %arg2: i32, %arg3: i32) -> (i32, i32) {
    %c0_i32 = arith.constant 0 : i32
    %c0_i32_0 = arith.constant 0 : i32
    return %c0_i32, %arg2 : i32, i32
  }
  func.func @transform_2(%arg0: i32, %arg1: i32, %arg2: i32, %arg3: i32) -> (i32, i32) {
    %c1_i32 = arith.constant 1 : i32
    %0 = arith.muli %arg0, %c1_i32 : i32
    %1 = arith.addi %0, %arg3 : i32
    %c0_i32 = arith.constant 0 : i32
    %c0_i32_0 = arith.constant 0 : i32
    return %c0_i32, %1 : i32, i32
  }
  func.func @transform_3(%arg0: i32, %arg1: i32, %arg2: i32, %arg3: i32) -> (i32, i32) {
    %c1_i32 = arith.constant 1 : i32
    %0 = arith.muli %arg0, %c1_i32 : i32
    %1 = arith.addi %0, %arg3 : i32
    %c0_i32 = arith.constant 0 : i32
    %c0_i32_0 = arith.constant 0 : i32
    return %1, %c0_i32 : i32, i32
  }
  func.func @transform_4(%arg0: i32, %arg1: i32, %arg2: i32, %arg3: i32) -> (i32, i32) {
    %c1_i32 = arith.constant 1 : i32
    %0 = arith.muli %arg0, %c1_i32 : i32
    %1 = arith.addi %0, %arg3 : i32
    %c0_i32 = arith.constant 0 : i32
    %c0_i32_0 = arith.constant 0 : i32
    return %1, %c0_i32 : i32, i32
  }
  func.func @transform_5(%arg0: i32, %arg1: i32, %arg2: i32, %arg3: i32) -> (i32, i32) {
    %c1_i32 = arith.constant 1 : i32
    %0 = arith.muli %arg0, %c1_i32 : i32
    %1 = arith.addi %0, %arg3 : i32
    %c0_i32 = arith.constant 0 : i32
    %c0_i32_0 = arith.constant 0 : i32
    return %1, %c0_i32 : i32, i32
  }
  func.func @transform_6(%arg0: i32, %arg1: i32, %arg2: i32, %arg3: i32) -> (i32, i32) {
    %c1_i32 = arith.constant 1 : i32
    %0 = arith.muli %arg0, %c1_i32 : i32
    %1 = arith.addi %0, %arg1 : i32
    %c0_i32 = arith.constant 0 : i32
    return %1, %arg2 : i32, i32
  }
}

</mosaic_0001>

<llo_original>
// kernel: tpu_custom_call.1
$region0: #{tpu_custom_call.1}
  #allocation0 [shape = 'u32[]', space=smem, size = 0x4, offset = 0x4, fixed_abs, tag = 'smem constant byte address 0x4 - core index']
  #allocation1 [shape = 'u32[144,128]{1,0:T(1,128)}', space=vmem, size = 0x12000, scoped, tag = 'internal scratch']
  %s0 = inlined_call_operand.vmem [shape: f32[16,1], index: 0, kind: input, shape index: {}]
  %s1 = inlined_call_operand.vmem [shape: f32[1,128], index: 1, kind: input, shape index: {}]
  %s2 = inlined_call_operand.vmem [shape: f32[1,128], index: 2, kind: input, shape index: {}]
  %s3 = inlined_call_operand.vmem [shape: f32[128,1], index: 3, kind: input, shape index: {}]
  %s4 = inlined_call_operand.vmem [shape: f32[128,1], index: 4, kind: input, shape index: {}]
  %s5 = inlined_call_operand.vmem [shape: f32[128,1], index: 5, kind: input, shape index: {}]
  %s6 = inlined_call_operand.hbm [shape: f32[16,128], index: 6, kind: output, shape index: {}]
  %s7 = sld [smem:[#allocation0]]
  $region38: #{tpu_custom_call.1} parent=0
    _
  %s9 = ssub.s32 1, %s7
  %s10 = scalar_select 0, %s9, %s7
  $region1: #{tpu_custom_call.1} parent=0
    #allocation2 [shape = 'u8[8192]{0}', space=vmem, size = 0x2000, scoped, tag = 'output window, operand 0, single buffered']
    #allocation3 [shape = 's32[1]{0}', space=sflag, size = 0x4, scoped, tag = 'scoped memory for tpu_custom_call.1']
    %11 = vsyncpa [#allocation3], 0
    // Predicated region
    $region2: #{tpu_custom_call.1} parent=1 // pred_check
      _
    $region3: #{tpu_custom_call.1} parent=1 // pred_check_branch
      %13 = sbr.rel (0) target = $region5
    $region4: #{tpu_custom_call.1} parent=1 // pred_region
      _
    $region5: #{tpu_custom_call.1} parent=1 // pred_fallthru
      _
    // Predicated region
    $region6: #{tpu_custom_call.1} parent=1 // pred_check
      _
    $region7: #{tpu_custom_call.1} parent=1 // pred_check_branch
      %15 = sbr.rel (0) target = $region9
    $region8: #{tpu_custom_call.1} parent=1 // pred_region
      _
    $region9: #{tpu_custom_call.1} parent=1 // pred_fallthru
      _
    // Predicated region
    $region10: #{tpu_custom_call.1} parent=1 // pred_check
      _
    $region11: #{tpu_custom_call.1} parent=1 // pred_check_branch
      %17 = sbr.rel (0) target = $region13
    $region12: #{tpu_custom_call.1} parent=1 // pred_region
      %s18 = sadd.s32 0, 0
      %p19 = scmp.lt.s32.totalorder %s18, 0
      %s20 = scalar_select %p19, %s18, 0
      %s21 = scalar_lea.vmem %s2, %s20
      %s22 = sadd.s32 0, 0
    $region13: #{tpu_custom_call.1} parent=1 // pred_fallthru
      _
    // Predicated region
    $region14: #{tpu_custom_call.1} parent=1 // pred_check
      _
    $region15: #{tpu_custom_call.1} parent=1 // pred_check_branch
      %24 = sbr.rel (0) target = $region17
    $region16: #{tpu_custom_call.1} parent=1 // pred_region
      %s25 = sadd.s32 0, 0
      %s26 = smul.u32 16, %s25
      %p27 = scmp.lt.s32.totalorder %s26, 15
      %s28 = scalar_select %p27, %s26, 15
      %s29 = smul.addr %s28, 8
      %s30 = scalar_lea.vmem %s3, %s29
      %s31 = sadd.s32 0, 0
      %s32 = smul.u32 16, %s31
    $region17: #{tpu_custom_call.1} parent=1 // pred_fallthru
      _
    // Predicated region
    $region18: #{tpu_custom_call.1} parent=1 // pred_check
      _
    $region19: #{tpu_custom_call.1} parent=1 // pred_check_branch
      %34 = sbr.rel (0) target = $region21
    $region20: #{tpu_custom_call.1} parent=1 // pred_region
      %s35 = sadd.s32 0, 0
      %s36 = smul.u32 16, %s35
      %p37 = scmp.lt.s32.totalorder %s36, 15
      %s38 = scalar_select %p37, %s36, 15
      %s39 = smul.addr %s38, 8
      %s40 = scalar_lea.vmem %s4, %s39
      %s41 = sadd.s32 0, 0
      %s42 = smul.u32 16, %s41
    $region21: #{tpu_custom_call.1} parent=1 // pred_fallthru
      _
    // Predicated region
    $region22: #{tpu_custom_call.1} parent=1 // pred_check
      _
    $region23: #{tpu_custom_call.1} parent=1 // pred_check_branch
      %44 = sbr.rel (0) target = $region25
    $region24: #{tpu_custom_call.1} parent=1 // pred_region
      %s45 = sadd.s32 0, 0
      %s46 = smul.u32 16, %s45
      %p47 = scmp.lt.s32.totalorder %s46, 15
      %s48 = scalar_select %p47, %s46, 15
      %s49 = smul.addr %s48, 8
      %s50 = scalar_lea.vmem %s5, %s49
      %s51 = sadd.s32 0, 0
      %s52 = smul.u32 16, %s51
    $region25: #{tpu_custom_call.1} parent=1 // pred_fallthru
      _
    %s53 = sadd.s32 0, 0
    %p54 = scmp.lt.s32.totalorder %s53, 0
    %s55 = scalar_select %p54, %s53, 0
    %s56 = scalar_lea.vmem %s2, %s55
    %s57 = sadd.s32 0, 0
    %s58 = smul.u32 16, %s57
    %p59 = scmp.lt.s32.totalorder %s58, 15
    %s60 = scalar_select %p59, %s58, 15
    %s61 = smul.addr %s60, 8
    %s62 = scalar_lea.vmem %s3, %s61
    %s63 = sadd.s32 0, 0
    %s64 = smul.u32 16, %s63
    %p65 = scmp.lt.s32.totalorder %s64, 15
    %s66 = scalar_select %p65, %s64, 15
    %s67 = smul.addr %s66, 8
    %s68 = scalar_lea.vmem %s4, %s67
    %s69 = sadd.s32 0, 0
    %s70 = smul.u32 16, %s69
    %p71 = scmp.lt.s32.totalorder %s70, 15
    %s72 = scalar_select %p71, %s70, 15
    %s73 = smul.addr %s72, 8
    %s74 = scalar_lea.vmem %s5, %s73
    %s75 = sadd.s32 0, 0
    %p76 = scmp.lt.s32.totalorder %s75, 0
    %s77 = scalar_select %p76, %s75, 0
    %s78 = scalar_lea.vmem %s2, %s77
    %s79 = sadd.s32 0, 0
    %s80 = sadd.s32 0, 0
    %s81 = smul.u32 16, %s80
    %p82 = scmp.lt.s32.totalorder %s81, 15
    %s83 = scalar_select %p82, %s81, 15
    %s84 = smul.addr %s83, 8
    %s85 = scalar_lea.vmem %s3, %s84
    %s86 = sadd.s32 0, 0
    %s87 = smul.u32 16, %s86
    %s88 = sadd.s32 0, 0
    %s89 = smul.u32 16, %s88
    %p90 = scmp.lt.s32.totalorder %s89, 15
    %s91 = scalar_select %p90, %s89, 15
    %s92 = smul.addr %s91, 8
    %s93 = scalar_lea.vmem %s4, %s92
    %s94 = sadd.s32 0, 0
    %s95 = smul.u32 16, %s94
    %s96 = sadd.s32 0, 0
    %s97 = smul.u32 16, %s96
    %p98 = scmp.lt.s32.totalorder %s97, 15
    %s99 = scalar_select %p98, %s97, 15
    %s100 = smul.addr %s99, 8
    %s101 = scalar_lea.vmem %s5, %s100
    %s102 = sadd.s32 0, 0
    %s103 = smul.u32 16, %s102
    %s104 = sadd.s32 0, 0
    %s105 = smul.u32 2, %s104
    %p106 = scmp.eq.s32.totalorder 0, 0
    // Predicated region
    $region26: #{tpu_custom_call.1} parent=1 // pred_check
      %p107 = pneg %p106
    $region27: #{tpu_custom_call.1} parent=1 // pred_check_branch
      %109 = sbr.rel (%p107) target = $region29
    $region28: #{tpu_custom_call.1} parent=1 // pred_region
      %110 = vst [vmem:[#allocation2] sm:$0xff] 0.0
      %111 = vst [vmem:[#allocation2 + $0x8] sm:$0xff] 0.0
    $region29: #{tpu_custom_call.1} parent=1 // pred_fallthru
      _
    %v112 = vld [vmem:[%s0] sm:$0xff]
    %v113 = vld [vmem:[%s0 + $0x8] sm:$0xff]
    %v114 = vld [vmem:[%s78] sm:$0x1]
    %116 = vset.pattern.permute.xlu0 0
    %117 = vperm.xlu0 %116, %v112
    %v118 = vpop.permute.xlu0 %117
    %121 = vset.pattern.permute.xlu0 0
    %122 = vperm.xlu0 %121, %v113
    %v123 = vpop.permute.xlu0 %122
    %v126 = vlaneseq
    %v127 = vshrl.u32 %v126, 7
    %v128 = vsub.s32 0, %v127
    %v129 = vrot.slane %v114, %v128
    %v131 = vmul.f32 %v118, %v129
    %v132 = vmul.f32 %v123, %v129
    %v133 = vand.u32 2147483647, %v131
    %vm134 = vcmp.le.f32.partialorder %v133, 0.7853982
    %vm135 = vcmp.lt.s32.totalorder %v131, 0
    %v136 = vand.u32 %v131, 2139095040
    %v137 = vshrl.u32 %v136, 23
    %v138 = vsub.s32 %v137, 127
    %v139 = vand.u32 2147483647, %v131
    %v140 = vand.u32 %v139, 8388607
    %v141 = vor.u32 %v140, 8388608
    %v142 = vsub.s32 0, %v141
    %v143 = vadd.s32 %v138, 1
    %vm144 = vcmp.gt.s32.totalorder %v143, 0
    %v145 = vsel %vm144, %v143, 0
    %v146 = vshrl.u32 %v145, 5
    %v147 = vand.u32 %v145, 31
    %v148 = vsub.s32 32, %v147
    %v149 = vshrl.u32 683565275, %v148
    %v150 = vshll.u32 683565275, %v147
    %v151 = vshrl.u32 2475754826, %v148
    %v152 = vor.u32 %v150, %v151
    %v153 = vshll.u32 2475754826, %v147
    %v154 = vshrl.u32 2131351028, %v148
    %v155 = vor.u32 %v153, %v154
    %v156 = vshll.u32 2131351028, %v147
    %v157 = vshrl.u32 2102212464, %v148
    %v158 = vor.u32 %v156, %v157
    %v159 = vshll.u32 2102212464, %v147
    %v160 = vshrl.u32 920167782, %v148
    %v161 = vor.u32 %v159, %v160
    %v162 = vshll.u32 920167782, %v147
    %v163 = vshrl.u32 1326507024, %v148
    %v164 = vor.u32 %v162, %v163
    %vm165 = vcmp.lt.s32.totalorder %v146, 1
    %vm166 = vcmp.lt.s32.totalorder %v146, 2
    %vm167 = vcmp.lt.s32.totalorder %v146, 3
    %vm168 = vcmp.lt.s32.totalorder %v146, 4
    %v169 = vsel %vm165, %v149, %v152
    %v170 = vsel %vm168, %v158, 2102212464
    %v171 = vsel %vm167, %v155, %v170
    %v172 = vsel %vm166, %v169, %v171
    %v173 = vsel %vm165, %v152, %v155
    %v174 = vsel %vm168, %v161, 920167782
    %v175 = vsel %vm167, %v158, %v174
    %v176 = vsel %vm166, %v173, %v175
    %v177 = vsel %vm165, %v155, %v158
    %v178 = vsel %vm168, %v164, 1326507024
    %v179 = vsel %vm167, %v161, %v178
    %v180 = vsel %vm166, %v177, %v179
    %v181 = vshll.u32 %v141, 8
    %v182 = vmul.u32.u64.compose %v181, %v180
    %v183 = vextract.low.u32 %v182
    %v184 = vextract.high.u32 %v182
    %v185 = vmul.u32.u64.compose %v181, %v176
    %v186 = vextract.low.u32 %v185
    %v187 = vextract.high.u32 %v185
    %v188 = vmul.u32 %v181, %v172
    %v189 = vadd.s32 %v184, %v186
    %vm190 = vc.u32 %v184, %v186
    %v191 = vadd.s32 %v187, 1
    %v192 = vsel %vm190, %v191, %v187
    %v193 = vadd.s32 %v188, %v192
    %v194 = vadd.s32 %v193, 536870912
    %v195 = vshrl.u32 %v194, 30
    %v196 = vshll.u32 %v195, 30
    %v197 = vsub.s32 %v193, %v196
    %vm198 = vcmp.lt.s32.totalorder %v197, 0
    %v199 = vsub.s32 0, %v197
    %v200 = vsel %vm198, %v199, %v197
    %v201 = vclz %v200
    %v202 = vsub.s32 %v201, 2
    %vm203 = vcmp.gt.s32.totalorder 0, %v202
    %v204 = vsel %vm203, 0, %v202
    %v205 = vsub.s32 32, %v204
    %v206 = vshll.u32 %v197, %v204
    %v207 = vshrl.u32 %v189, %v205
    %v208 = vor.u32 %v206, %v207
    %v209 = vsub.s32 4294967266, %v204
    %v210 = vadd.s32 %v209, 127
    %v211 = vshll.u32 %v210, 23
    %v212 = vor.u32 4788187, %v211
    %v213 = vand.u32 2147483647, %v212
    %v215 = vcvt.s32.f32 %v208
    %v216 = vmul.f32 %v215, %v213
    %v217 = vxor.u32 %v216, 2147483648
    %v218 = vsel %vm135, %v217, %v216
    %v219 = vsub.s32 4, %v195
    %v220 = vsel %vm135, %v219, %v195
    %v221 = vsel %vm134, %v131, %v218
    %v222 = vsel %vm134, 0, %v220
    %v223 = vcosq.f32.pop %v221
    %v224 = vsinq.f32.pop %v221
    %vm225 = vweird.f32 %v131
    %v226 = vand.u32 %v222, 3
    %vm227 = vcmp.lt.s32.totalorder %v226, 2
    %vm228 = vcmp.eq.s32.totalorder %v226, 0
    %v229 = vxor.u32 %v224, 2147483648
    %v230 = vsel %vm228, %v223, %v229
    %vm231 = vcmp.eq.s32.totalorder %v226, 2
    %v232 = vxor.u32 %v223, 2147483648
    %v233 = vsel %vm231, %v232, %v224
    %v234 = vsel %vm227, %v230, %v233
    %v235 = vsel %vm225, nan, %v234
    %v236 = vand.u32 2147483647, %v132
    %vm237 = vcmp.le.f32.partialorder %v236, 0.7853982
    %vm238 = vcmp.lt.s32.totalorder %v132, 0
    %v239 = vand.u32 %v132, 2139095040
    %v240 = vshrl.u32 %v239, 23
    %v241 = vsub.s32 %v240, 127
    %v242 = vand.u32 2147483647, %v132
    %v243 = vand.u32 %v242, 8388607
    %v244 = vor.u32 %v243, 8388608
    %v245 = vsub.s32 0, %v244
    %v246 = vadd.s32 %v241, 1
    %vm247 = vcmp.gt.s32.totalorder %v246, 0
    %v248 = vsel %vm247, %v246, 0
    %v249 = vshrl.u32 %v248, 5
    %v250 = vand.u32 %v248, 31
    %v251 = vsub.s32 32, %v250
    %v252 = vshrl.u32 683565275, %v251
    %v253 = vshll.u32 683565275, %v250
    %v254 = vshrl.u32 2475754826, %v251
    %v255 = vor.u32 %v253, %v254
    %v256 = vshll.u32 2475754826, %v250
    %v257 = vshrl.u32 2131351028, %v251
    %v258 = vor.u32 %v256, %v257
    %v259 = vshll.u32 2131351028, %v250
    %v260 = vshrl.u32 2102212464, %v251
    %v261 = vor.u32 %v259, %v260
    %v262 = vshll.u32 2102212464, %v250
    %v263 = vshrl.u32 920167782, %v251
    %v264 = vor.u32 %v262, %v263
    %v265 = vshll.u32 920167782, %v250
    %v266 = vshrl.u32 1326507024, %v251
    %v267 = vor.u32 %v265, %v266
    %vm268 = vcmp.lt.s32.totalorder %v249, 1
    %vm269 = vcmp.lt.s32.totalorder %v249, 2
    %vm270 = vcmp.lt.s32.totalorder %v249, 3
    %vm271 = vcmp.lt.s32.totalorder %v249, 4
    %v272 = vsel %vm268, %v252, %v255
    %v273 = vsel %vm271, %v261, 2102212464
    %v274 = vsel %vm270, %v258, %v273
    %v275 = vsel %vm269, %v272, %v274
    %v276 = vsel %vm268, %v255, %v258
    %v277 = vsel %vm271, %v264, 920167782
    %v278 = vsel %vm270, %v261, %v277
    %v279 = vsel %vm269, %v276, %v278
    %v280 = vsel %vm268, %v258, %v261
    %v281 = vsel %vm271, %v267, 1326507024
    %v282 = vsel %vm270, %v264, %v281
    %v283 = vsel %vm269, %v280, %v282
    %v284 = vshll.u32 %v244, 8
    %v285 = vmul.u32.u64.compose %v284, %v283
    %v286 = vextract.low.u32 %v285
    %v287 = vextract.high.u32 %v285
    %v288 = vmul.u32.u64.compose %v284, %v279
    %v289 = vextract.low.u32 %v288
    %v290 = vextract.high.u32 %v288
    %v291 = vmul.u32 %v284, %v275
    %v292 = vadd.s32 %v287, %v289
    %vm293 = vc.u32 %v287, %v289
    %v294 = vadd.s32 %v290, 1
    %v295 = vsel %vm293, %v294, %v290
    %v296 = vadd.s32 %v291, %v295
    %v297 = vadd.s32 %v296, 536870912
    %v298 = vshrl.u32 %v297, 30
    %v299 = vshll.u32 %v298, 30
    %v300 = vsub.s32 %v296, %v299
    %vm301 = vcmp.lt.s32.totalorder %v300, 0
    %v302 = vsub.s32 0, %v300
    %v303 = vsel %vm301, %v302, %v300
    %v304 = vclz %v303
    %v305 = vsub.s32 %v304, 2
    %vm306 = vcmp.gt.s32.totalorder 0, %v305
    %v307 = vsel %vm306, 0, %v305
    %v308 = vsub.s32 32, %v307
    %v309 = vshll.u32 %v300, %v307
    %v310 = vshrl.u32 %v292, %v308
    %v311 = vor.u32 %v309, %v310
    %v312 = vsub.s32 4294967266, %v307
    %v313 = vadd.s32 %v312, 127
    %v314 = vshll.u32 %v313, 23
    %v315 = vor.u32 4788187, %v314
    %v316 = vand.u32 2147483647, %v315
    %v318 = vcvt.s32.f32 %v311
    %v319 = vmul.f32 %v318, %v316
    %v320 = vxor.u32 %v319, 2147483648
    %v321 = vsel %vm238, %v320, %v319
    %v322 = vsub.s32 4, %v298
    %v323 = vsel %vm238, %v322, %v298
    %v324 = vsel %vm237, %v132, %v321
    %v325 = vsel %vm237, 0, %v323
    %v326 = vcosq.f32.pop %v324
    %v327 = vsinq.f32.pop %v324
    %vm328 = vweird.f32 %v132
    %v329 = vand.u32 %v325, 3
    %vm330 = vcmp.lt.s32.totalorder %v329, 2
    %vm331 = vcmp.eq.s32.totalorder %v329, 0
    %v332 = vxor.u32 %v327, 2147483648
    %v333 = vsel %vm331, %v326, %v332
    %vm334 = vcmp.eq.s32.totalorder %v329, 2
    %v335 = vxor.u32 %v326, 2147483648
    %v336 = vsel %vm334, %v335, %v327
    %v337 = vsel %vm330, %v333, %v336
    %v338 = vsel %vm328, nan, %v337
    %v339 = vand.u32 2147483647, %v131
    %vm340 = vcmp.le.f32.partialorder %v339, 0.7853982
    %vm341 = vcmp.lt.s32.totalorder %v131, 0
    %v342 = vand.u32 %v131, 2139095040
    %v343 = vshrl.u32 %v342, 23
    %v344 = vsub.s32 %v343, 127
    %v345 = vand.u32 2147483647, %v131
    %v346 = vand.u32 %v345, 8388607
    %v347 = vor.u32 %v346, 8388608
    %v348 = vsub.s32 0, %v347
    %v349 = vadd.s32 %v344, 1
    %vm350 = vcmp.gt.s32.totalorder %v349, 0
    %v351 = vsel %vm350, %v349, 0
    %v352 = vshrl.u32 %v351, 5
    %v353 = vand.u32 %v351, 31
    %v354 = vsub.s32 32, %v353
    %v355 = vshrl.u32 683565275, %v354
    %v356 = vshll.u32 683565275, %v353
    %v357 = vshrl.u32 2475754826, %v354
    %v358 = vor.u32 %v356, %v357
    %v359 = vshll.u32 2475754826, %v353
    %v360 = vshrl.u32 2131351028, %v354
    %v361 = vor.u32 %v359, %v360
    %v362 = vshll.u32 2131351028, %v353
    %v363 = vshrl.u32 2102212464, %v354
    %v364 = vor.u32 %v362, %v363
    %v365 = vshll.u32 2102212464, %v353
    %v366 = vshrl.u32 920167782, %v354
    %v367 = vor.u32 %v365, %v366
    %v368 = vshll.u32 920167782, %v353
    %v369 = vshrl.u32 1326507024, %v354
    %v370 = vor.u32 %v368, %v369
    %vm371 = vcmp.lt.s32.totalorder %v352, 1
    %vm372 = vcmp.lt.s32.totalorder %v352, 2
    %vm373 = vcmp.lt.s32.totalorder %v352, 3
    %vm374 = vcmp.lt.s32.totalorder %v352, 4
    %v375 = vsel %vm371, %v355, %v358
    %v376 = vsel %vm374, %v364, 2102212464
    %v377 = vsel %vm373, %v361, %v376
    %v378 = vsel %vm372, %v375, %v377
    %v379 = vsel %vm371, %v358, %v361
    %v380 = vsel %vm374, %v367, 920167782
    %v381 = vsel %vm373, %v364, %v380
    %v382 = vsel %vm372, %v379, %v381
    %v383 = vsel %vm371, %v361, %v364
    %v384 = vsel %vm374, %v370, 1326507024
    %v385 = vsel %vm373, %v367, %v384
    %v386 = vsel %vm372, %v383, %v385
    %v387 = vshll.u32 %v347, 8
    %v388 = vmul.u32.u64.compose %v387, %v386
    %v389 = vextract.low.u32 %v388
    %v390 = vextract.high.u32 %v388
    %v391 = vmul.u32.u64.compose %v387, %v382
    %v392 = vextract.low.u32 %v391
    %v393 = vextract.high.u32 %v391
    %v394 = vmul.u32 %v387, %v378
    %v395 = vadd.s32 %v390, %v392
    %vm396 = vc.u32 %v390, %v392
    %v397 = vadd.s32 %v393, 1
    %v398 = vsel %vm396, %v397, %v393
    %v399 = vadd.s32 %v394, %v398
    %v400 = vadd.s32 %v399, 536870912
    %v401 = vshrl.u32 %v400, 30
    %v402 = vshll.u32 %v401, 30
    %v403 = vsub.s32 %v399, %v402
    %vm404 = vcmp.lt.s32.totalorder %v403, 0
    %v405 = vsub.s32 0, %v403
    %v406 = vsel %vm404, %v405, %v403
    %v407 = vclz %v406
    %v408 = vsub.s32 %v407, 2
    %vm409 = vcmp.gt.s32.totalorder 0, %v408
    %v410 = vsel %vm409, 0, %v408
    %v411 = vsub.s32 32, %v410
    %v412 = vshll.u32 %v403, %v410
    %v413 = vshrl.u32 %v395, %v411
    %v414 = vor.u32 %v412, %v413
    %v415 = vsub.s32 4294967266, %v410
    %v416 = vadd.s32 %v415, 127
    %v417 = vshll.u32 %v416, 23
    %v418 = vor.u32 4788187, %v417
    %v419 = vand.u32 2147483647, %v418
    %v421 = vcvt.s32.f32 %v414
    %v422 = vmul.f32 %v421, %v419
    %v423 = vxor.u32 %v422, 2147483648
    %v424 = vsel %vm341, %v423, %v422
    %v425 = vsub.s32 4, %v401
    %v426 = vsel %vm341, %v425, %v401
    %v427 = vsel %vm340, %v131, %v424
    %v428 = vsel %vm340, 0, %v426
    %v429 = vcosq.f32.pop %v427
    %v430 = vsinq.f32.pop %v427
    %vm431 = vweird.f32 %v131
    %v432 = vadd.s32 %v428, 3
    %v433 = vand.u32 %v432, 3
    %vm434 = vcmp.lt.s32.totalorder %v433, 2
    %vm435 = vcmp.eq.s32.totalorder %v433, 0
    %v436 = vxor.u32 %v430, 2147483648
    %v437 = vsel %vm435, %v429, %v436
    %vm438 = vcmp.eq.s32.totalorder %v433, 2
    %v439 = vxor.u32 %v429, 2147483648
    %v440 = vsel %vm438, %v439, %v430
    %v441 = vsel %vm434, %v437, %v440
    %v442 = vsel %vm431, nan, %v441
    %v443 = vand.u32 2147483647, %v132
    %vm444 = vcmp.le.f32.partialorder %v443, 0.7853982
    %vm445 = vcmp.lt.s32.totalorder %v132, 0
    %v446 = vand.u32 %v132, 2139095040
    %v447 = vshrl.u32 %v446, 23
    %v448 = vsub.s32 %v447, 127
    %v449 = vand.u32 2147483647, %v132
    %v450 = vand.u32 %v449, 8388607
    %v451 = vor.u32 %v450, 8388608
    %v452 = vsub.s32 0, %v451
    %v453 = vadd.s32 %v448, 1
    %vm454 = vcmp.gt.s32.totalorder %v453, 0
    %v455 = vsel %vm454, %v453, 0
    %v456 = vshrl.u32 %v455, 5
    %v457 = vand.u32 %v455, 31
    %v458 = vsub.s32 32, %v457
    %v459 = vshrl.u32 683565275, %v458
    %v460 = vshll.u32 683565275, %v457
    %v461 = vshrl.u32 2475754826, %v458
    %v462 = vor.u32 %v460, %v461
    %v463 = vshll.u32 2475754826, %v457
    %v464 = vshrl.u32 2131351028, %v458
    %v465 = vor.u32 %v463, %v464
    %v466 = vshll.u32 2131351028, %v457
    %v467 = vshrl.u32 2102212464, %v458
    %v468 = vor.u32 %v466, %v467
    %v469 = vshll.u32 2102212464, %v457
    %v470 = vshrl.u32 920167782, %v458
    %v471 = vor.u32 %v469, %v470
    %v472 = vshll.u32 920167782, %v457
    %v473 = vshrl.u32 1326507024, %v458
    %v474 = vor.u32 %v472, %v473
    %vm475 = vcmp.lt.s32.totalorder %v456, 1
    %vm476 = vcmp.lt.s32.totalorder %v456, 2
    %vm477 = vcmp.lt.s32.totalorder %v456, 3
    %vm478 = vcmp.lt.s32.totalorder %v456, 4
    %v479 = vsel %vm475, %v459, %v462
    %v480 = vsel %vm478, %v468, 2102212464
    %v481 = vsel %vm477, %v465, %v480
    %v482 = vsel %vm476, %v479, %v481
    %v483 = vsel %vm475, %v462, %v465
    %v484 = vsel %vm478, %v471, 920167782
    %v485 = vsel %vm477, %v468, %v484
    %v486 = vsel %vm476, %v483, %v485
    %v487 = vsel %vm475, %v465, %v468
    %v488 = vsel %vm478, %v474, 1326507024
    %v489 = vsel %vm477, %v471, %v488
    %v490 = vsel %vm476, %v487, %v489
    %v491 = vshll.u32 %v451, 8
    %v492 = vmul.u32.u64.compose %v491, %v490
    %v493 = vextract.low.u32 %v492
    %v494 = vextract.high.u32 %v492
    %v495 = vmul.u32.u64.compose %v491, %v486
    %v496 = vextract.low.u32 %v495
    %v497 = vextract.high.u32 %v495
    %v498 = vmul.u32 %v491, %v482
    %v499 = vadd.s32 %v494, %v496
    %vm500 = vc.u32 %v494, %v496
    %v501 = vadd.s32 %v497, 1
    %v502 = vsel %vm500, %v501, %v497
    %v503 = vadd.s32 %v498, %v502
    %v504 = vadd.s32 %v503, 536870912
    %v505 = vshrl.u32 %v504, 30
    %v506 = vshll.u32 %v505, 30
    %v507 = vsub.s32 %v503, %v506
    %vm508 = vcmp.lt.s32.totalorder %v507, 0
    %v509 = vsub.s32 0, %v507
    %v510 = vsel %vm508, %v509, %v507
    %v511 = vclz %v510
    %v512 = vsub.s32 %v511, 2
    %vm513 = vcmp.gt.s32.totalorder 0, %v512
    %v514 = vsel %vm513, 0, %v512
    %v515 = vsub.s32 32, %v514
    %v516 = vshll.u32 %v507, %v514
    %v517 = vshrl.u32 %v499, %v515
    %v518 = vor.u32 %v516, %v517
    %v519 = vsub.s32 4294967266, %v514
    %v520 = vadd.s32 %v519, 127
    %v521 = vshll.u32 %v520, 23
    %v522 = vor.u32 4788187, %v521
    %v523 = vand.u32 2147483647, %v522
    %v525 = vcvt.s32.f32 %v518
    %v526 = vmul.f32 %v525, %v523
    %v527 = vxor.u32 %v526, 2147483648
    %v528 = vsel %vm445, %v527, %v526
    %v529 = vsub.s32 4, %v505
    %v530 = vsel %vm445, %v529, %v505
    %v531 = vsel %vm444, %v132, %v528
    %v532 = vsel %vm444, 0, %v530
    %v533 = vcosq.f32.pop %v531
    %v534 = vsinq.f32.pop %v531
    %vm535 = vweird.f32 %v132
    %v536 = vadd.s32 %v532, 3
    %v537 = vand.u32 %v536, 3
    %vm538 = vcmp.lt.s32.totalorder %v537, 2
    %vm539 = vcmp.eq.s32.totalorder %v537, 0
    %v540 = vxor.u32 %v534, 2147483648
    %v541 = vsel %vm539, %v533, %v540
    %vm542 = vcmp.eq.s32.totalorder %v537, 2
    %v543 = vxor.u32 %v533, 2147483648
    %v544 = vsel %vm542, %v543, %v534
    %v545 = vsel %vm538, %v541, %v544
    %v546 = vsel %vm535, nan, %v545
    %v547 = vld [vmem:[%s85] sm:$0xff]
    %v548 = vld [vmem:[%s85 + $0x8] sm:$0xff]
    %v549 = vld [vmem:[%s85 + $0x10] sm:$0xff]
    %v550 = vld [vmem:[%s85 + $0x18] sm:$0xff]
    %v551 = vld [vmem:[%s85 + $0x20] sm:$0xff]
    %v552 = vld [vmem:[%s85 + $0x28] sm:$0xff]
    %v553 = vld [vmem:[%s85 + $0x30] sm:$0xff]
    %v554 = vld [vmem:[%s85 + $0x38] sm:$0xff]
    %v555 = vld [vmem:[%s85 + $0x40] sm:$0xff]
    %v556 = vld [vmem:[%s85 + $0x48] sm:$0xff]
    %v557 = vld [vmem:[%s85 + $0x50] sm:$0xff]
    %v558 = vld [vmem:[%s85 + $0x58] sm:$0xff]
    %v559 = vld [vmem:[%s85 + $0x60] sm:$0xff]
    %v560 = vld [vmem:[%s85 + $0x68] sm:$0xff]
    %v561 = vld [vmem:[%s85 + $0x70] sm:$0xff]
    %v562 = vld [vmem:[%s85 + $0x78] sm:$0xff]
    %v563 = vld [vmem:[%s1] sm:$0x1]
    %565 = vset.pattern.permute.xlu0 0
    %566 = vperm.xlu0 %565, %v547
    %v567 = vpop.permute.xlu0 %566
    %570 = vset.pattern.permute.xlu0 0
    %571 = vperm.xlu0 %570, %v548
    %v572 = vpop.permute.xlu0 %571
    %575 = vset.pattern.permute.xlu0 0
    %576 = vperm.xlu0 %575, %v549
    %v577 = vpop.permute.xlu0 %576
    %580 = vset.pattern.permute.xlu0 0
    %581 = vperm.xlu0 %580, %v550
    %v582 = vpop.permute.xlu0 %581
    %585 = vset.pattern.permute.xlu0 0
    %586 = vperm.xlu0 %585, %v551
    %v587 = vpop.permute.xlu0 %586
    %590 = vset.pattern.permute.xlu0 0
    %591 = vperm.xlu0 %590, %v552
    %v592 = vpop.permute.xlu0 %591
    %595 = vset.pattern.permute.xlu0 0
    %596 = vperm.xlu0 %595, %v553
    %v597 = vpop.permute.xlu0 %596
    %600 = vset.pattern.permute.xlu0 0
    %601 = vperm.xlu0 %600, %v554
    %v602 = vpop.permute.xlu0 %601
    %605 = vset.pattern.permute.xlu0 0
    %606 = vperm.xlu0 %605, %v555
    %v607 = vpop.permute.xlu0 %606
    %610 = vset.pattern.permute.xlu0 0
    %611 = vperm.xlu0 %610, %v556
    %v612 = vpop.permute.xlu0 %611
    %615 = vset.pattern.permute.xlu0 0
    %616 = vperm.xlu0 %615, %v557
    %v617 = vpop.permute.xlu0 %616
    %620 = vset.pattern.permute.xlu0 0
    %621 = vperm.xlu0 %620, %v558
    %v622 = vpop.permute.xlu0 %621
    %625 = vset.pattern.permute.xlu0 0
    %626 = vperm.xlu0 %625, %v559
    %v627 = vpop.permute.xlu0 %626
    %630 = vset.pattern.permute.xlu0 0
    %631 = vperm.xlu0 %630, %v560
    %v632 = vpop.permute.xlu0 %631
    %635 = vset.pattern.permute.xlu0 0
    %636 = vperm.xlu0 %635, %v561
    %v637 = vpop.permute.xlu0 %636
    %640 = vset.pattern.permute.xlu0 0
    %641 = vperm.xlu0 %640, %v562
    %v642 = vpop.permute.xlu0 %641
    %v645 = vlaneseq
    %v646 = vshrl.u32 %v645, 7
    %v647 = vsub.s32 0, %v646
    %v648 = vrot.slane %v563, %v647
    %v650 = vmul.f32 %v567, %v648
    %v651 = vmul.f32 %v572, %v648
    %v652 = vmul.f32 %v577, %v648
    %v653 = vmul.f32 %v582, %v648
    %v654 = vmul.f32 %v587, %v648
    %v655 = vmul.f32 %v592, %v648
    %v656 = vmul.f32 %v597, %v648
    %v657 = vmul.f32 %v602, %v648
    %v658 = vmul.f32 %v607, %v648
    %v659 = vmul.f32 %v612, %v648
    %v660 = vmul.f32 %v617, %v648
    %v661 = vmul.f32 %v622, %v648
    %v662 = vmul.f32 %v627, %v648
    %v663 = vmul.f32 %v632, %v648
    %v664 = vmul.f32 %v637, %v648
    %v665 = vmul.f32 %v642, %v648
    %v666 = vand.u32 2147483647, %v650
    %vm667 = vcmp.le.f32.partialorder %v666, 0.7853982
    %vm668 = vcmp.lt.s32.totalorder %v650, 0
    %v669 = vand.u32 %v650, 2139095040
    %v670 = vshrl.u32 %v669, 23
    %v671 = vsub.s32 %v670, 127
    %v672 = vand.u32 2147483647, %v650
    %v673 = vand.u32 %v672, 8388607
    %v674 = vor.u32 %v673, 8388608
    %v675 = vsub.s32 0, %v674
    %v676 = vadd.s32 %v671, 1
    %vm677 = vcmp.gt.s32.totalorder %v676, 0
    %v678 = vsel %vm677, %v676, 0
    %v679 = vshrl.u32 %v678, 5
    %v680 = vand.u32 %v678, 31
    %v681 = vsub.s32 32, %v680
    %v682 = vshrl.u32 683565275, %v681
    %v683 = vshll.u32 683565275, %v680
    %v684 = vshrl.u32 2475754826, %v681
    %v685 = vor.u32 %v683, %v684
    %v686 = vshll.u32 2475754826, %v680
    %v687 = vshrl.u32 2131351028, %v681
    %v688 = vor.u32 %v686, %v687
    %v689 = vshll.u32 2131351028, %v680
    %v690 = vshrl.u32 2102212464, %v681
    %v691 = vor.u32 %v689, %v690
    %v692 = vshll.u32 2102212464, %v680
    %v693 = vshrl.u32 920167782, %v681
    %v694 = vor.u32 %v692, %v693
    %v695 = vshll.u32 920167782, %v680
    %v696 = vshrl.u32 1326507024, %v681
    %v697 = vor.u32 %v695, %v696
    %vm698 = vcmp.lt.s32.totalorder %v679, 1
    %vm699 = vcmp.lt.s32.totalorder %v679, 2
    %vm700 = vcmp.lt.s32.totalorder %v679, 3
    %vm701 = vcmp.lt.s32.totalorder %v679, 4
    %v702 = vsel %vm698, %v682, %v685
    %v703 = vsel %vm701, %v691, 2102212464
    %v704 = vsel %vm700, %v688, %v703
    %v705 = vsel %vm699, %v702, %v704
    %v706 = vsel %vm698, %v685, %v688
    %v707 = vsel %vm701, %v694, 920167782
    %v708 = vsel %vm700, %v691, %v707
    %v709 = vsel %vm699, %v706, %v708
    %v710 = vsel %vm698, %v688, %v691
    %v711 = vsel %vm701, %v697, 1326507024
    %v712 = vsel %vm700, %v694, %v711
    %v713 = vsel %vm699, %v710, %v712
    %v714 = vshll.u32 %v674, 8
    %v715 = vmul.u32.u64.compose %v714, %v713
    %v716 = vextract.low.u32 %v715
    %v717 = vextract.high.u32 %v715
    %v718 = vmul.u32.u64.compose %v714, %v709
    %v719 = vextract.low.u32 %v718
    %v720 = vextract.high.u32 %v718
    %v721 = vmul.u32 %v714, %v705
    %v722 = vadd.s32 %v717, %v719
    %vm723 = vc.u32 %v717, %v719
    %v724 = vadd.s32 %v720, 1
    %v725 = vsel %vm723, %v724, %v720
    %v726 = vadd.s32 %v721, %v725
    %v727 = vadd.s32 %v726, 536870912
    %v728 = vshrl.u32 %v727, 30
    %v729 = vshll.u32 %v728, 30
    %v730 = vsub.s32 %v726, %v729
    %vm731 = vcmp.lt.s32.totalorder %v730, 0
    %v732 = vsub.s32 0, %v730
    %v733 = vsel %vm731, %v732, %v730
    %v734 = vclz %v733
    %v735 = vsub.s32 %v734, 2
    %vm736 = vcmp.gt.s32.totalorder 0, %v735
    %v737 = vsel %vm736, 0, %v735
    %v738 = vsub.s32 32, %v737
    %v739 = vshll.u32 %v730, %v737
    %v740 = vshrl.u32 %v722, %v738
    %v741 = vor.u32 %v739, %v740
    %v742 = vsub.s32 4294967266, %v737
    %v743 = vadd.s32 %v742, 127
    %v744 = vshll.u32 %v743, 23
    %v745 = vor.u32 4788187, %v744
    %v746 = vand.u32 2147483647, %v745
    %v748 = vcvt.s32.f32 %v741
    %v749 = vmul.f32 %v748, %v746
    %v750 = vxor.u32 %v749, 2147483648
    %v751 = vsel %vm668, %v750, %v749
    %v752 = vsub.s32 4, %v728
    %v753 = vsel %vm668, %v752, %v728
    %v754 = vsel %vm667, %v650, %v751
    %v755 = vsel %vm667, 0, %v753
    %v756 = vcosq.f32.pop %v754
    %v757 = vsinq.f32.pop %v754
    %vm758 = vweird.f32 %v650
    %v759 = vand.u32 %v755, 3
    %vm760 = vcmp.lt.s32.totalorder %v759, 2
    %vm761 = vcmp.eq.s32.totalorder %v759, 0
    %v762 = vxor.u32 %v757, 2147483648
    %v763 = vsel %vm761, %v756, %v762
    %vm764 = vcmp.eq.s32.totalorder %v759, 2
    %v765 = vxor.u32 %v756, 2147483648
    %v766 = vsel %vm764, %v765, %v757
    %v767 = vsel %vm760, %v763, %v766
    %v768 = vsel %vm758, nan, %v767
    %v769 = vand.u32 2147483647, %v651
    %vm770 = vcmp.le.f32.partialorder %v769, 0.7853982
    %vm771 = vcmp.lt.s32.totalorder %v651, 0
    %v772 = vand.u32 %v651, 2139095040
    %v773 = vshrl.u32 %v772, 23
    %v774 = vsub.s32 %v773, 127
    %v775 = vand.u32 2147483647, %v651
    %v776 = vand.u32 %v775, 8388607
    %v777 = vor.u32 %v776, 8388608
    %v778 = vsub.s32 0, %v777
    %v779 = vadd.s32 %v774, 1
    %vm780 = vcmp.gt.s32.totalorder %v779, 0
    %v781 = vsel %vm780, %v779, 0
    %v782 = vshrl.u32 %v781, 5
    %v783 = vand.u32 %v781, 31
    %v784 = vsub.s32 32, %v783
    %v785 = vshrl.u32 683565275, %v784
    %v786 = vshll.u32 683565275, %v783
    %v787 = vshrl.u32 2475754826, %v784
    %v788 = vor.u32 %v786, %v787
    %v789 = vshll.u32 2475754826, %v783
    %v790 = vshrl.u32 2131351028, %v784
    %v791 = vor.u32 %v789, %v790
    %v792 = vshll.u32 2131351028, %v783
    %v793 = vshrl.u32 2102212464, %v784
    %v794 = vor.u32 %v792, %v793
    %v795 = vshll.u32 2102212464, %v783
    %v796 = vshrl.u32 920167782, %v784
    %v797 = vor.u32 %v795, %v796
    %v798 = vshll.u32 920167782, %v783
    %v799 = vshrl.u32 1326507024, %v784
    %v800 = vor.u32 %v798, %v799
    %vm801 = vcmp.lt.s32.totalorder %v782, 1
    %vm802 = vcmp.lt.s32.totalorder %v782, 2
    %vm803 = vcmp.lt.s32.totalorder %v782, 3
    %vm804 = vcmp.lt.s32.totalorder %v782, 4
    %v805 = vsel %vm801, %v785, %v788
    %v806 = vsel %vm804, %v794, 2102212464
    %v807 = vsel %vm803, %v791, %v806
    %v808 = vsel %vm802, %v805, %v807
    %v809 = vsel %vm801, %v788, %v791
    %v810 = vsel %vm804, %v797, 920167782
    %v811 = vsel %vm803, %v794, %v810
    %v812 = vsel %vm802, %v809, %v811
    %v813 = vsel %vm801, %v791, %v794
    %v814 = vsel %vm804, %v800, 1326507024
    %v815 = vsel %vm803, %v797, %v814
    %v816 = vsel %vm802, %v813, %v815
    %v817 = vshll.u32 %v777, 8
    %v818 = vmul.u32.u64.compose %v817, %v816
    %v819 = vextract.low.u32 %v818
    %v820 = vextract.high.u32 %v818
    %v821 = vmul.u32.u64.compose %v817, %v812
    %v822 = vextract.low.u32 %v821
    %v823 = vextract.high.u32 %v821
    %v824 = vmul.u32 %v817, %v808
    %v825 = vadd.s32 %v820, %v822
    %vm826 = vc.u32 %v820, %v822
    %v827 = vadd.s32 %v823, 1
    %v828 = vsel %vm826, %v827, %v823
    %v829 = vadd.s32 %v824, %v828
    %v830 = vadd.s32 %v829, 536870912
    %v831 = vshrl.u32 %v830, 30
    %v832 = vshll.u32 %v831, 30
    %v833 = vsub.s32 %v829, %v832
    %vm834 = vcmp.lt.s32.totalorder %v833, 0
    %v835 = vsub.s32 0, %v833
    %v836 = vsel %vm834, %v835, %v833
    %v837 = vclz %v836
    %v838 = vsub.s32 %v837, 2
    %vm839 = vcmp.gt.s32.totalorder 0, %v838
    %v840 = vsel %vm839, 0, %v838
    %v841 = vsub.s32 32, %v840
    %v842 = vshll.u32 %v833, %v840
    %v843 = vshrl.u32 %v825, %v841
    %v844 = vor.u32 %v842, %v843
    %v845 = vsub.s32 4294967266, %v840
    %v846 = vadd.s32 %v845, 127
    %v847 = vshll.u32 %v846, 23
    %v848 = vor.u32 4788187, %v847
    %v849 = vand.u32 2147483647, %v848
    %v851 = vcvt.s32.f32 %v844
    %v852 = vmul.f32 %v851, %v849
    %v853 = vxor.u32 %v852, 2147483648
    %v854 = vsel %vm771, %v853, %v852
    %v855 = vsub.s32 4, %v831
    %v856 = vsel %vm771, %v855, %v831
    %v857 = vsel %vm770, %v651, %v854
    %v858 = vsel %vm770, 0, %v856
    %v859 = vcosq.f32.pop %v857
    %v860 = vsinq.f32.pop %v857
    %vm861 = vweird.f32 %v651
    %v862 = vand.u32 %v858, 3
    %vm863 = vcmp.lt.s32.totalorder %v862, 2
    %vm864 = vcmp.eq.s32.totalorder %v862, 0
    %v865 = vxor.u32 %v860, 2147483648
    %v866 = vsel %vm864, %v859, %v865
    %vm867 = vcmp.eq.s32.totalorder %v862, 2
    %v868 = vxor.u32 %v859, 2147483648
    %v869 = vsel %vm867, %v868, %v860
    %v870 = vsel %vm863, %v866, %v869
    %v871 = vsel %vm861, nan, %v870
    %v872 = vand.u32 2147483647, %v652
    %vm873 = vcmp.le.f32.partialorder %v872, 0.7853982
    %vm874 = vcmp.lt.s32.totalorder %v652, 0
    %v875 = vand.u32 %v652, 2139095040
    %v876 = vshrl.u32 %v875, 23
    %v877 = vsub.s32 %v876, 127
    %v878 = vand.u32 2147483647, %v652
    %v879 = vand.u32 %v878, 8388607
    %v880 = vor.u32 %v879, 8388608
    %v881 = vsub.s32 0, %v880
    %v882 = vadd.s32 %v877, 1
    %vm883 = vcmp.gt.s32.totalorder %v882, 0
    %v884 = vsel %vm883, %v882, 0
    %v885 = vshrl.u32 %v884, 5
    %v886 = vand.u32 %v884, 31
    %v887 = vsub.s32 32, %v886
    %v888 = vshrl.u32 683565275, %v887
    %v889 = vshll.u32 683565275, %v886
    %v890 = vshrl.u32 2475754826, %v887
    %v891 = vor.u32 %v889, %v890
    %v892 = vshll.u32 2475754826, %v886
    %v893 = vshrl.u32 2131351028, %v887
    %v894 = vor.u32 %v892, %v893
    %v895 = vshll.u32 2131351028, %v886
    %v896 = vshrl.u32 2102212464, %v887
    %v897 = vor.u32 %v895, %v896
    %v898 = vshll.u32 2102212464, %v886
    %v899 = vshrl.u32 920167782, %v887
    %v900 = vor.u32 %v898, %v899
    %v901 = vshll.u32 920167782, %v886
    %v902 = vshrl.u32 1326507024, %v887
    %v903 = vor.u32 %v901, %v902
    %vm904 = vcmp.lt.s32.totalorder %v885, 1
    %vm905 = vcmp.lt.s32.totalorder %v885, 2
    %vm906 = vcmp.lt.s32.totalorder %v885, 3
    %vm907 = vcmp.lt.s32.totalorder %v885, 4
    %v908 = vsel %vm904, %v888, %v891
    %v909 = vsel %vm907, %v897, 2102212464
    %v910 = vsel %vm906, %v894, %v909
    %v911 = vsel %vm905, %v908, %v910
    %v912 = vsel %vm904, %v891, %v894
    %v913 = vsel %vm907, %v900, 920167782
    %v914 = vsel %vm906, %v897, %v913
    %v915 = vsel %vm905, %v912, %v914
    %v916 = vsel %vm904, %v894, %v897
    %v917 = vsel %vm907, %v903, 1326507024
    %v918 = vsel %vm906, %v900, %v917
    %v919 = vsel %vm905, %v916, %v918
    %v920 = vshll.u32 %v880, 8
    %v921 = vmul.u32.u64.compose %v920, %v919
    %v922 = vextract.low.u32 %v921
    %v923 = vextract.high.u32 %v921
    %v924 = vmul.u32.u64.compose %v920, %v915
    %v925 = vextract.low.u32 %v924
    %v926 = vextract.high.u32 %v924
    %v927 = vmul.u32 %v920, %v911
    %v928 = vadd.s32 %v923, %v925
    %vm929 = vc.u32 %v923, %v925
    %v930 = vadd.s32 %v926, 1
    %v931 = vsel %vm929, %v930, %v926
    %v932 = vadd.s32 %v927, %v931
    %v933 = vadd.s32 %v932, 536870912
    %v934 = vshrl.u32 %v933, 30
    %v935 = vshll.u32 %v934, 30
    %v936 = vsub.s32 %v932, %v935
    %vm937 = vcmp.lt.s32.totalorder %v936, 0
    %v938 = vsub.s32 0, %v936
    %v939 = vsel %vm937, %v938, %v936
    %v940 = vclz %v939
    %v941 = vsub.s32 %v940, 2
    %vm942 = vcmp.gt.s32.totalorder 0, %v941
    %v943 = vsel %vm942, 0, %v941
    %v944 = vsub.s32 32, %v943
    %v945 = vshll.u32 %v936, %v943
    %v946 = vshrl.u32 %v928, %v944
    %v947 = vor.u32 %v945, %v946
    %v948 = vsub.s32 4294967266, %v943
    %v949 = vadd.s32 %v948, 127
    %v950 = vshll.u32 %v949, 23
    %v951 = vor.u32 4788187, %v950
    %v952 = vand.u32 2147483647, %v951
    %v954 = vcvt.s32.f32 %v947
    %v955 = vmul.f32 %v954, %v952
    %v956 = vxor.u32 %v955, 2147483648
    %v957 = vsel %vm874, %v956, %v955
    %v958 = vsub.s32 4, %v934
    %v959 = vsel %vm874, %v958, %v934
    %v960 = vsel %vm873, %v652, %v957
    %v961 = vsel %vm873, 0, %v959
    %v962 = vcosq.f32.pop %v960
    %v963 = vsinq.f32.pop %v960
    %vm964 = vweird.f32 %v652
    %v965 = vand.u32 %v961, 3
    %vm966 = vcmp.lt.s32.totalorder %v965, 2
    %vm967 = vcmp.eq.s32.totalorder %v965, 0
    %v968 = vxor.u32 %v963, 2147483648
    %v969 = vsel %vm967, %v962, %v968
    %vm970 = vcmp.eq.s32.totalorder %v965, 2
    %v971 = vxor.u32 %v962, 2147483648
    %v972 = vsel %vm970, %v971, %v963
    %v973 = vsel %vm966, %v969, %v972
    %v974 = vsel %vm964, nan, %v973
    %v975 = vand.u32 2147483647, %v653
    %vm976 = vcmp.le.f32.partialorder %v975, 0.7853982
    %vm977 = vcmp.lt.s32.totalorder %v653, 0
    %v978 = vand.u32 %v653, 2139095040
    %v979 = vshrl.u32 %v978, 23
    %v980 = vsub.s32 %v979, 127
    %v981 = vand.u32 2147483647, %v653
    %v982 = vand.u32 %v981, 8388607
    %v983 = vor.u32 %v982, 8388608
    %v984 = vsub.s32 0, %v983
    %v985 = vadd.s32 %v980, 1
    %vm986 = vcmp.gt.s32.totalorder %v985, 0
    %v987 = vsel %vm986, %v985, 0
    %v988 = vshrl.u32 %v987, 5
    %v989 = vand.u32 %v987, 31
    %v990 = vsub.s32 32, %v989
    %v991 = vshrl.u32 683565275, %v990
    %v992 = vshll.u32 683565275, %v989
    %v993 = vshrl.u32 2475754826, %v990
    %v994 = vor.u32 %v992, %v993
    %v995 = vshll.u32 2475754826, %v989
    %v996 = vshrl.u32 2131351028, %v990
    %v997 = vor.u32 %v995, %v996
    %v998 = vshll.u32 2131351028, %v989
    %v999 = vshrl.u32 2102212464, %v990
    %v1000 = vor.u32 %v998, %v999
    %v1001 = vshll.u32 2102212464, %v989
    %v1002 = vshrl.u32 920167782, %v990
    %v1003 = vor.u32 %v1001, %v1002
    %v1004 = vshll.u32 920167782, %v989
    %v1005 = vshrl.u32 1326507024, %v990
    %v1006 = vor.u32 %v1004, %v1005
    %vm1007 = vcmp.lt.s32.totalorder %v988, 1
    %vm1008 = vcmp.lt.s32.totalorder %v988, 2
    %vm1009 = vcmp.lt.s32.totalorder %v988, 3
    %vm1010 = vcmp.lt.s32.totalorder %v988, 4
    %v1011 = vsel %vm1007, %v991, %v994
    %v1012 = vsel %vm1010, %v1000, 2102212464
    %v1013 = vsel %vm1009, %v997, %v1012
    %v1014 = vsel %vm1008, %v1011, %v1013
    %v1015 = vsel %vm1007, %v994, %v997
    %v1016 = vsel %vm1010, %v1003, 920167782
    %v1017 = vsel %vm1009, %v1000, %v1016
    %v1018 = vsel %vm1008, %v1015, %v1017
    %v1019 = vsel %vm1007, %v997, %v1000
    %v1020 = vsel %vm1010, %v1006, 1326507024
    %v1021 = vsel %vm1009, %v1003, %v1020
    %v1022 = vsel %vm1008, %v1019, %v1021
    %v1023 = vshll.u32 %v983, 8
    %v1024 = vmul.u32.u64.compose %v1023, %v1022
    %v1025 = vextract.low.u32 %v1024
    %v1026 = vextract.high.u32 %v1024
    %v1027 = vmul.u32.u64.compose %v1023, %v1018
    %v1028 = vextract.low.u32 %v1027
    %v1029 = vextract.high.u32 %v1027
    %v1030 = vmul.u32 %v1023, %v1014
    %v1031 = vadd.s32 %v1026, %v1028
    %vm1032 = vc.u32 %v1026, %v1028
    %v1033 = vadd.s32 %v1029, 1
    %v1034 = vsel %vm1032, %v1033, %v1029
    %v1035 = vadd.s32 %v1030, %v1034
    %v1036 = vadd.s32 %v1035, 536870912
    %v1037 = vshrl.u32 %v1036, 30
    %v1038 = vshll.u32 %v1037, 30
    %v1039 = vsub.s32 %v1035, %v1038
    %vm1040 = vcmp.lt.s32.totalorder %v1039, 0
    %v1041 = vsub.s32 0, %v1039
    %v1042 = vsel %vm1040, %v1041, %v1039
    %v1043 = vclz %v1042
    %v1044 = vsub.s32 %v1043, 2
    %vm1045 = vcmp.gt.s32.totalorder 0, %v1044
    %v1046 = vsel %vm1045, 0, %v1044
    %v1047 = vsub.s32 32, %v1046
    %v1048 = vshll.u32 %v1039, %v1046
    %v1049 = vshrl.u32 %v1031, %v1047
    %v1050 = vor.u32 %v1048, %v1049
    %v1051 = vsub.s32 4294967266, %v1046
    %v1052 = vadd.s32 %v1051, 127
    %v1053 = vshll.u32 %v1052, 23
    %v1054 = vor.u32 4788187, %v1053
    %v1055 = vand.u32 2147483647, %v1054
    %v1057 = vcvt.s32.f32 %v1050
    %v1058 = vmul.f32 %v1057, %v1055
    %v1059 = vxor.u32 %v1058, 2147483648
    %v1060 = vsel %vm977, %v1059, %v1058
    %v1061 = vsub.s32 4, %v1037
    %v1062 = vsel %vm977, %v1061, %v1037
    %v1063 = vsel %vm976, %v653, %v1060
    %v1064 = vsel %vm976, 0, %v1062
    %v1065 = vcosq.f32.pop %v1063
    %v1066 = vsinq.f32.pop %v1063
    %vm1067 = vweird.f32 %v653
    %v1068 = vand.u32 %v1064, 3
    %vm1069 = vcmp.lt.s32.totalorder %v1068, 2
    %vm1070 = vcmp.eq.s32.totalorder %v1068, 0
    %v1071 = vxor.u32 %v1066, 2147483648
    %v1072 = vsel %vm1070, %v1065, %v1071
    %vm1073 = vcmp.eq.s32.totalorder %v1068, 2
    %v1074 = vxor.u32 %v1065, 2147483648
    %v1075 = vsel %vm1073, %v1074, %v1066
    %v1076 = vsel %vm1069, %v1072, %v1075
    %v1077 = vsel %vm1067, nan, %v1076
    %v1078 = vand.u32 2147483647, %v654
    %vm1079 = vcmp.le.f32.partialorder %v1078, 0.7853982
    %vm1080 = vcmp.lt.s32.totalorder %v654, 0
    %v1081 = vand.u32 %v654, 2139095040
    %v1082 = vshrl.u32 %v1081, 23
    %v1083 = vsub.s32 %v1082, 127
    %v1084 = vand.u32 2147483647, %v654
    %v1085 = vand.u32 %v1084, 8388607
    %v1086 = vor.u32 %v1085, 8388608
    %v1087 = vsub.s32 0, %v1086
    %v1088 = vadd.s32 %v1083, 1
    %vm1089 = vcmp.gt.s32.totalorder %v1088, 0
    %v1090 = vsel %vm1089, %v1088, 0
    %v1091 = vshrl.u32 %v1090, 5
    %v1092 = vand.u32 %v1090, 31
    %v1093 = vsub.s32 32, %v1092
    %v1094 = vshrl.u32 683565275, %v1093
    %v1095 = vshll.u32 683565275, %v1092
    %v1096 = vshrl.u32 2475754826, %v1093
    %v1097 = vor.u32 %v1095, %v1096
    %v1098 = vshll.u32 2475754826, %v1092
    %v1099 = vshrl.u32 2131351028, %v1093
    %v1100 = vor.u32 %v1098, %v1099
    %v1101 = vshll.u32 2131351028, %v1092
    %v1102 = vshrl.u32 2102212464, %v1093
    %v1103 = vor.u32 %v1101, %v1102
    %v1104 = vshll.u32 2102212464, %v1092
    %v1105 = vshrl.u32 920167782, %v1093
    %v1106 = vor.u32 %v1104, %v1105
    %v1107 = vshll.u32 920167782, %v1092
    %v1108 = vshrl.u32 1326507024, %v1093
    %v1109 = vor.u32 %v1107, %v1108
    %vm1110 = vcmp.lt.s32.totalorder %v1091, 1
    %vm1111 = vcmp.lt.s32.totalorder %v1091, 2
    %vm1112 = vcmp.lt.s32.totalorder %v1091, 3
    %vm1113 = vcmp.lt.s32.totalorder %v1091, 4
    %v1114 = vsel %vm1110, %v1094, %v1097
    %v1115 = vsel %vm1113, %v1103, 2102212464
    %v1116 = vsel %vm1112, %v1100, %v1115
    %v1117 = vsel %vm1111, %v1114, %v1116
    %v1118 = vsel %vm1110, %v1097, %v1100
    %v1119 = vsel %vm1113, %v1106, 920167782
    %v1120 = vsel %vm1112, %v1103, %v1119
    %v1121 = vsel %vm1111, %v1118, %v1120
    %v1122 = vsel %vm1110, %v1100, %v1103
    %v1123 = vsel %vm1113, %v1109, 1326507024
    %v1124 = vsel %vm1112, %v1106, %v1123
    %v1125 = vsel %vm1111, %v1122, %v1124
    %v1126 = vshll.u32 %v1086, 8
    %v1127 = vmul.u32.u64.compose %v1126, %v1125
    %v1128 = vextract.low.u32 %v1127
    %v1129 = vextract.high.u32 %v1127
    %v1130 = vmul.u32.u64.compose %v1126, %v1121
    %v1131 = vextract.low.u32 %v1130
    %v1132 = vextract.high.u32 %v1130
    %v1133 = vmul.u32 %v1126, %v1117
    %v1134 = vadd.s32 %v1129, %v1131
    %vm1135 = vc.u32 %v1129, %v1131
    %v1136 = vadd.s32 %v1132, 1
    %v1137 = vsel %vm1135, %v1136, %v1132
    %v1138 = vadd.s32 %v1133, %v1137
    %v1139 = vadd.s32 %v1138, 536870912
    %v1140 = vshrl.u32 %v1139, 30
    %v1141 = vshll.u32 %v1140, 30
    %v1142 = vsub.s32 %v1138, %v1141
    %vm1143 = vcmp.lt.s32.totalorder %v1142, 0
    %v1144 = vsub.s32 0, %v1142
    %v1145 = vsel %vm1143, %v1144, %v1142
    %v1146 = vclz %v1145
    %v1147 = vsub.s32 %v1146, 2
    %vm1148 = vcmp.gt.s32.totalorder 0, %v1147
    %v1149 = vsel %vm1148, 0, %v1147
    %v1150 = vsub.s32 32, %v1149
    %v1151 = vshll.u32 %v1142, %v1149
    %v1152 = vshrl.u32 %v1134, %v1150
    %v1153 = vor.u32 %v1151, %v1152
    %v1154 = vsub.s32 4294967266, %v1149
    %v1155 = vadd.s32 %v1154, 127
    %v1156 = vshll.u32 %v1155, 23
    %v1157 = vor.u32 4788187, %v1156
    %v1158 = vand.u32 2147483647, %v1157
    %v1160 = vcvt.s32.f32 %v1153
    %v1161 = vmul.f32 %v1160, %v1158
    %v1162 = vxor.u32 %v1161, 2147483648
    %v1163 = vsel %vm1080, %v1162, %v1161
    %v1164 = vsub.s32 4, %v1140
    %v1165 = vsel %vm1080, %v1164, %v1140
    %v1166 = vsel %vm1079, %v654, %v1163
    %v1167 = vsel %vm1079, 0, %v1165
    %v1168 = vcosq.f32.pop %v1166
    %v1169 = vsinq.f32.pop %v1166
    %vm1170 = vweird.f32 %v654
    %v1171 = vand.u32 %v1167, 3
    %vm1172 = vcmp.lt.s32.totalorder %v1171, 2
    %vm1173 = vcmp.eq.s32.totalorder %v1171, 0
    %v1174 = vxor.u32 %v1169, 2147483648
    %v1175 = vsel %vm1173, %v1168, %v1174
    %vm1176 = vcmp.eq.s32.totalorder %v1171, 2
    %v1177 = vxor.u32 %v1168, 2147483648
    %v1178 = vsel %vm1176, %v1177, %v1169
    %v1179 = vsel %vm1172, %v1175, %v1178
    %v1180 = vsel %vm1170, nan, %v1179
    %v1181 = vand.u32 2147483647, %v655
    %vm1182 = vcmp.le.f32.partialorder %v1181, 0.7853982
    %vm1183 = vcmp.lt.s32.totalorder %v655, 0
    %v1184 = vand.u32 %v655, 2139095040
    %v1185 = vshrl.u32 %v1184, 23
    %v1186 = vsub.s32 %v1185, 127
    %v1187 = vand.u32 2147483647, %v655
    %v1188 = vand.u32 %v1187, 8388607
    %v1189 = vor.u32 %v1188, 8388608
    %v1190 = vsub.s32 0, %v1189
    %v1191 = vadd.s32 %v1186, 1
    %vm1192 = vcmp.gt.s32.totalorder %v1191, 0
    %v1193 = vsel %vm1192, %v1191, 0
    %v1194 = vshrl.u32 %v1193, 5
    %v1195 = vand.u32 %v1193, 31
    %v1196 = vsub.s32 32, %v1195
    %v1197 = vshrl.u32 683565275, %v1196
    %v1198 = vshll.u32 683565275, %v1195
    %v1199 = vshrl.u32 2475754826, %v1196
    %v1200 = vor.u32 %v1198, %v1199
    %v1201 = vshll.u32 2475754826, %v1195
    %v1202 = vshrl.u32 2131351028, %v1196
    %v1203 = vor.u32 %v1201, %v1202
    %v1204 = vshll.u32 2131351028, %v1195
    %v1205 = vshrl.u32 2102212464, %v1196
    %v1206 = vor.u32 %v1204, %v1205
    %v1207 = vshll.u32 2102212464, %v1195
    %v1208 = vshrl.u32 920167782, %v1196
    %v1209 = vor.u32 %v1207, %v1208
    %v1210 = vshll.u32 920167782, %v1195
    %v1211 = vshrl.u32 1326507024, %v1196
    %v1212 = vor.u32 %v1210, %v1211
    %vm1213 = vcmp.lt.s32.totalorder %v1194, 1
    %vm1214 = vcmp.lt.s32.totalorder %v1194, 2
    %vm1215 = vcmp.lt.s32.totalorder %v1194, 3
    %vm1216 = vcmp.lt.s32.totalorder %v1194, 4
    %v1217 = vsel %vm1213, %v1197, %v1200
    %v1218 = vsel %vm1216, %v1206, 2102212464
    %v1219 = vsel %vm1215, %v1203, %v1218
    %v1220 = vsel %vm1214, %v1217, %v1219
    %v1221 = vsel %vm1213, %v1200, %v1203
    %v1222 = vsel %vm1216, %v1209, 920167782
    %v1223 = vsel %vm1215, %v1206, %v1222
    %v1224 = vsel %vm1214, %v1221, %v1223
    %v1225 = vsel %vm1213, %v1203, %v1206
    %v1226 = vsel %vm1216, %v1212, 1326507024
    %v1227 = vsel %vm1215, %v1209, %v1226
    %v1228 = vsel %vm1214, %v1225, %v1227
    %v1229 = vshll.u32 %v1189, 8
    %v1230 = vmul.u32.u64.compose %v1229, %v1228
    %v1231 = vextract.low.u32 %v1230
    %v1232 = vextract.high.u32 %v1230
    %v1233 = vmul.u32.u64.compose %v1229, %v1224
    %v1234 = vextract.low.u32 %v1233
    %v1235 = vextract.high.u32 %v1233
    %v1236 = vmul.u32 %v1229, %v1220
    %v1237 = vadd.s32 %v1232, %v1234
    %vm1238 = vc.u32 %v1232, %v1234
    %v1239 = vadd.s32 %v1235, 1
    %v1240 = vsel %vm1238, %v1239, %v1235
    %v1241 = vadd.s32 %v1236, %v1240
    %v1242 = vadd.s32 %v1241, 536870912
    %v1243 = vshrl.u32 %v1242, 30
    %v1244 = vshll.u32 %v1243, 30
    %v1245 = vsub.s32 %v1241, %v1244
    %vm1246 = vcmp.lt.s32.totalorder %v1245, 0
    %v1247 = vsub.s32 0, %v1245
    %v1248 = vsel %vm1246, %v1247, %v1245
    %v1249 = vclz %v1248
    %v1250 = vsub.s32 %v1249, 2
    %vm1251 = vcmp.gt.s32.totalorder 0, %v1250
    %v1252 = vsel %vm1251, 0, %v1250
    %v1253 = vsub.s32 32, %v1252
    %v1254 = vshll.u32 %v1245, %v1252
    %v1255 = vshrl.u32 %v1237, %v1253
    %v1256 = vor.u32 %v1254, %v1255
    %v1257 = vsub.s32 4294967266, %v1252
    %v1258 = vadd.s32 %v1257, 127
    %v1259 = vshll.u32 %v1258, 23
    %v1260 = vor.u32 4788187, %v1259
    %v1261 = vand.u32 2147483647, %v1260
    %v1263 = vcvt.s32.f32 %v1256
    %v1264 = vmul.f32 %v1263, %v1261
    %v1265 = vxor.u32 %v1264, 2147483648
    %v1266 = vsel %vm1183, %v1265, %v1264
    %v1267 = vsub.s32 4, %v1243
    %v1268 = vsel %vm1183, %v1267, %v1243
    %v1269 = vsel %vm1182, %v655, %v1266
    %v1270 = vsel %vm1182, 0, %v1268
    %v1271 = vcosq.f32.pop %v1269
    %v1272 = vsinq.f32.pop %v1269
    %vm1273 = vweird.f32 %v655
    %v1274 = vand.u32 %v1270, 3
    %vm1275 = vcmp.lt.s32.totalorder %v1274, 2
    %vm1276 = vcmp.eq.s32.totalorder %v1274, 0
    %v1277 = vxor.u32 %v1272, 2147483648
    %v1278 = vsel %vm1276, %v1271, %v1277
    %vm1279 = vcmp.eq.s32.totalorder %v1274, 2
    %v1280 = vxor.u32 %v1271, 2147483648
    %v1281 = vsel %vm1279, %v1280, %v1272
    %v1282 = vsel %vm1275, %v1278, %v1281
    %v1283 = vsel %vm1273, nan, %v1282
    %v1284 = vand.u32 2147483647, %v656
    %vm1285 = vcmp.le.f32.partialorder %v1284, 0.7853982
    %vm1286 = vcmp.lt.s32.totalorder %v656, 0
    %v1287 = vand.u32 %v656, 2139095040
    %v1288 = vshrl.u32 %v1287, 23
    %v1289 = vsub.s32 %v1288, 127
    %v1290 = vand.u32 2147483647, %v656
    %v1291 = vand.u32 %v1290, 8388607
    %v1292 = vor.u32 %v1291, 8388608
    %v1293 = vsub.s32 0, %v1292
    %v1294 = vadd.s32 %v1289, 1
    %vm1295 = vcmp.gt.s32.totalorder %v1294, 0
    %v1296 = vsel %vm1295, %v1294, 0
    %v1297 = vshrl.u32 %v1296, 5
    %v1298 = vand.u32 %v1296, 31
    %v1299 = vsub.s32 32, %v1298
    %v1300 = vshrl.u32 683565275, %v1299
    %v1301 = vshll.u32 683565275, %v1298
    %v1302 = vshrl.u32 2475754826, %v1299
    %v1303 = vor.u32 %v1301, %v1302
    %v1304 = vshll.u32 2475754826, %v1298
    %v1305 = vshrl.u32 2131351028, %v1299
    %v1306 = vor.u32 %v1304, %v1305
    %v1307 = vshll.u32 2131351028, %v1298
    %v1308 = vshrl.u32 2102212464, %v1299
    %v1309 = vor.u32 %v1307, %v1308
    %v1310 = vshll.u32 2102212464, %v1298
    %v1311 = vshrl.u32 920167782, %v1299
    %v1312 = vor.u32 %v1310, %v1311
    %v1313 = vshll.u32 920167782, %v1298
    %v1314 = vshrl.u32 1326507024, %v1299
    %v1315 = vor.u32 %v1313, %v1314
    %vm1316 = vcmp.lt.s32.totalorder %v1297, 1
    %vm1317 = vcmp.lt.s32.totalorder %v1297, 2
    %vm1318 = vcmp.lt.s32.totalorder %v1297, 3
    %vm1319 = vcmp.lt.s32.totalorder %v1297, 4
    %v1320 = vsel %vm1316, %v1300, %v1303
    %v1321 = vsel %vm1319, %v1309, 2102212464
    %v1322 = vsel %vm1318, %v1306, %v1321
    %v1323 = vsel %vm1317, %v1320, %v1322
    %v1324 = vsel %vm1316, %v1303, %v1306
    %v1325 = vsel %vm1319, %v1312, 920167782
    %v1326 = vsel %vm1318, %v1309, %v1325
    %v1327 = vsel %vm1317, %v1324, %v1326
    %v1328 = vsel %vm1316, %v1306, %v1309
    %v1329 = vsel %vm1319, %v1315, 1326507024
    %v1330 = vsel %vm1318, %v1312, %v1329
    %v1331 = vsel %vm1317, %v1328, %v1330
    %v1332 = vshll.u32 %v1292, 8
    %v1333 = vmul.u32.u64.compose %v1332, %v1331
    %v1334 = vextract.low.u32 %v1333
    %v1335 = vextract.high.u32 %v1333
    %v1336 = vmul.u32.u64.compose %v1332, %v1327
    %v1337 = vextract.low.u32 %v1336
    %v1338 = vextract.high.u32 %v1336
    %v1339 = vmul.u32 %v1332, %v1323
    %v1340 = vadd.s32 %v1335, %v1337
    %vm1341 = vc.u32 %v1335, %v1337
    %v1342 = vadd.s32 %v1338, 1
    %v1343 = vsel %vm1341, %v1342, %v1338
    %v1344 = vadd.s32 %v1339, %v1343
    %v1345 = vadd.s32 %v1344, 536870912
    %v1346 = vshrl.u32 %v1345, 30
    %v1347 = vshll.u32 %v1346, 30
    %v1348 = vsub.s32 %v1344, %v1347
    %vm1349 = vcmp.lt.s32.totalorder %v1348, 0
    %v1350 = vsub.s32 0, %v1348
    %v1351 = vsel %vm1349, %v1350, %v1348
    %v1352 = vclz %v1351
    %v1353 = vsub.s32 %v1352, 2
    %vm1354 = vcmp.gt.s32.totalorder 0, %v1353
    %v1355 = vsel %vm1354, 0, %v1353
    %v1356 = vsub.s32 32, %v1355
    %v1357 = vshll.u32 %v1348, %v1355
    %v1358 = vshrl.u32 %v1340, %v1356
    %v1359 = vor.u32 %v1357, %v1358
    %v1360 = vsub.s32 4294967266, %v1355
    %v1361 = vadd.s32 %v1360, 127
    %v1362 = vshll.u32 %v1361, 23
    %v1363 = vor.u32 4788187, %v1362
    %v1364 = vand.u32 2147483647, %v1363
    %v1366 = vcvt.s32.f32 %v1359
    %v1367 = vmul.f32 %v1366, %v1364
    %v1368 = vxor.u32 %v1367, 2147483648
    %v1369 = vsel %vm1286, %v1368, %v1367
    %v1370 = vsub.s32 4, %v1346
    %v1371 = vsel %vm1286, %v1370, %v1346
    %v1372 = vsel %vm1285, %v656, %v1369
    %v1373 = vsel %vm1285, 0, %v1371
    %v1374 = vcosq.f32.pop %v1372
    %v1375 = vsinq.f32.pop %v1372
    %vm1376 = vweird.f32 %v656
    %v1377 = vand.u32 %v1373, 3
    %vm1378 = vcmp.lt.s32.totalorder %v1377, 2
    %vm1379 = vcmp.eq.s32.totalorder %v1377, 0
    %v1380 = vxor.u32 %v1375, 2147483648
    %v1381 = vsel %vm1379, %v1374, %v1380
    %vm1382 = vcmp.eq.s32.totalorder %v1377, 2
    %v1383 = vxor.u32 %v1374, 2147483648
    %v1384 = vsel %vm1382, %v1383, %v1375
    %v1385 = vsel %vm1378, %v1381, %v1384
    %v1386 = vsel %vm1376, nan, %v1385
    %v1387 = vand.u32 2147483647, %v657
    %vm1388 = vcmp.le.f32.partialorder %v1387, 0.7853982
    %vm1389 = vcmp.lt.s32.totalorder %v657, 0
    %v1390 = vand.u32 %v657, 2139095040
    %v1391 = vshrl.u32 %v1390, 23
    %v1392 = vsub.s32 %v1391, 127
    %v1393 = vand.u32 2147483647, %v657
    %v1394 = vand.u32 %v1393, 8388607
    %v1395 = vor.u32 %v1394, 8388608
    %v1396 = vsub.s32 0, %v1395
    %v1397 = vadd.s32 %v1392, 1
    %vm1398 = vcmp.gt.s32.totalorder %v1397, 0
    %v1399 = vsel %vm1398, %v1397, 0
    %v1400 = vshrl.u32 %v1399, 5
    %v1401 = vand.u32 %v1399, 31
    %v1402 = vsub.s32 32, %v1401
    %v1403 = vshrl.u32 683565275, %v1402
    %v1404 = vshll.u32 683565275, %v1401
    %v1405 = vshrl.u32 2475754826, %v1402
    %v1406 = vor.u32 %v1404, %v1405
    %v1407 = vshll.u32 2475754826, %v1401
    %v1408 = vshrl.u32 2131351028, %v1402
    %v1409 = vor.u32 %v1407, %v1408
    %v1410 = vshll.u32 2131351028, %v1401
    %v1411 = vshrl.u32 2102212464, %v1402
    %v1412 = vor.u32 %v1410, %v1411
    %v1413 = vshll.u32 2102212464, %v1401
    %v1414 = vshrl.u32 920167782, %v1402
    %v1415 = vor.u32 %v1413, %v1414
    %v1416 = vshll.u32 920167782, %v1401
    %v1417 = vshrl.u32 1326507024, %v1402
    %v1418 = vor.u32 %v1416, %v1417
    %vm1419 = vcmp.lt.s32.totalorder %v1400, 1
    %vm1420 = vcmp.lt.s32.totalorder %v1400, 2
    %vm1421 = vcmp.lt.s32.totalorder %v1400, 3
    %vm1422 = vcmp.lt.s32.totalorder %v1400, 4
    %v1423 = vsel %vm1419, %v1403, %v1406
    %v1424 = vsel %vm1422, %v1412, 2102212464
    %v1425 = vsel %vm1421, %v1409, %v1424
    %v1426 = vsel %vm1420, %v1423, %v1425
    %v1427 = vsel %vm1419, %v1406, %v1409
    %v1428 = vsel %vm1422, %v1415, 920167782
    %v1429 = vsel %vm1421, %v1412, %v1428
    %v1430 = vsel %vm1420, %v1427, %v1429
    %v1431 = vsel %vm1419, %v1409, %v1412
    %v1432 = vsel %vm1422, %v1418, 1326507024
    %v1433 = vsel %vm1421, %v1415, %v1432
    %v1434 = vsel %vm1420, %v1431, %v1433
    %v1435 = vshll.u32 %v1395, 8
    %v1436 = vmul.u32.u64.compose %v1435, %v1434
    %v1437 = vextract.low.u32 %v1436
    %v1438 = vextract.high.u32 %v1436
    %v1439 = vmul.u32.u64.compose %v1435, %v1430
    %v1440 = vextract.low.u32 %v1439
    %v1441 = vextract.high.u32 %v1439
    %v1442 = vmul.u32 %v1435, %v1426
    %v1443 = vadd.s32 %v1438, %v1440
    %vm1444 = vc.u32 %v1438, %v1440
    %v1445 = vadd.s32 %v1441, 1
    %v1446 = vsel %vm1444, %v1445, %v1441
    %v1447 = vadd.s32 %v1442, %v1446
    %v1448 = vadd.s32 %v1447, 536870912
    %v1449 = vshrl.u32 %v1448, 30
    %v1450 = vshll.u32 %v1449, 30
    %v1451 = vsub.s32 %v1447, %v1450
    %vm1452 = vcmp.lt.s32.totalorder %v1451, 0
    %v1453 = vsub.s32 0, %v1451
    %v1454 = vsel %vm1452, %v1453, %v1451
    %v1455 = vclz %v1454
    %v1456 = vsub.s32 %v1455, 2
    %vm1457 = vcmp.gt.s32.totalorder 0, %v1456
    %v1458 = vsel %vm1457, 0, %v1456
    %v1459 = vsub.s32 32, %v1458
    %v1460 = vshll.u32 %v1451, %v1458
    %v1461 = vshrl.u32 %v1443, %v1459
    %v1462 = vor.u32 %v1460, %v1461
    %v1463 = vsub.s32 4294967266, %v1458
    %v1464 = vadd.s32 %v1463, 127
    %v1465 = vshll.u32 %v1464, 23
    %v1466 = vor.u32 4788187, %v1465
    %v1467 = vand.u32 2147483647, %v1466
    %v1469 = vcvt.s32.f32 %v1462
    %v1470 = vmul.f32 %v1469, %v1467
    %v1471 = vxor.u32 %v1470, 2147483648
    %v1472 = vsel %vm1389, %v1471, %v1470
    %v1473 = vsub.s32 4, %v1449
    %v1474 = vsel %vm1389, %v1473, %v1449
    %v1475 = vsel %vm1388, %v657, %v1472
    %v1476 = vsel %vm1388, 0, %v1474
    %v1477 = vcosq.f32.pop %v1475
    %v1478 = vsinq.f32.pop %v1475
    %vm1479 = vweird.f32 %v657
    %v1480 = vand.u32 %v1476, 3
    %vm1481 = vcmp.lt.s32.totalorder %v1480, 2
    %vm1482 = vcmp.eq.s32.totalorder %v1480, 0
    %v1483 = vxor.u32 %v1478, 2147483648
    %v1484 = vsel %vm1482, %v1477, %v1483
    %vm1485 = vcmp.eq.s32.totalorder %v1480, 2
    %v1486 = vxor.u32 %v1477, 2147483648
    %v1487 = vsel %vm1485, %v1486, %v1478
    %v1488 = vsel %vm1481, %v1484, %v1487
    %v1489 = vsel %vm1479, nan, %v1488
    %v1490 = vand.u32 2147483647, %v658
    %vm1491 = vcmp.le.f32.partialorder %v1490, 0.7853982
    %vm1492 = vcmp.lt.s32.totalorder %v658, 0
    %v1493 = vand.u32 %v658, 2139095040
    %v1494 = vshrl.u32 %v1493, 23
    %v1495 = vsub.s32 %v1494, 127
    %v1496 = vand.u32 2147483647, %v658
    %v1497 = vand.u32 %v1496, 8388607
    %v1498 = vor.u32 %v1497, 8388608
    %v1499 = vsub.s32 0, %v1498
    %v1500 = vadd.s32 %v1495, 1
    %vm1501 = vcmp.gt.s32.totalorder %v1500, 0
    %v1502 = vsel %vm1501, %v1500, 0
    %v1503 = vshrl.u32 %v1502, 5
    %v1504 = vand.u32 %v1502, 31
    %v1505 = vsub.s32 32, %v1504
    %v1506 = vshrl.u32 683565275, %v1505
    %v1507 = vshll.u32 683565275, %v1504
    %v1508 = vshrl.u32 2475754826, %v1505
    %v1509 = vor.u32 %v1507, %v1508
    %v1510 = vshll.u32 2475754826, %v1504
    %v1511 = vshrl.u32 2131351028, %v1505
    %v1512 = vor.u32 %v1510, %v1511
    %v1513 = vshll.u32 2131351028, %v1504
    %v1514 = vshrl.u32 2102212464, %v1505
    %v1515 = vor.u32 %v1513, %v1514
    %v1516 = vshll.u32 2102212464, %v1504
    %v1517 = vshrl.u32 920167782, %v1505
    %v1518 = vor.u32 %v1516, %v1517
    %v1519 = vshll.u32 920167782, %v1504
    %v1520 = vshrl.u32 1326507024, %v1505
    %v1521 = vor.u32 %v1519, %v1520
    %vm1522 = vcmp.lt.s32.totalorder %v1503, 1
    %vm1523 = vcmp.lt.s32.totalorder %v1503, 2
    %vm1524 = vcmp.lt.s32.totalorder %v1503, 3
    %vm1525 = vcmp.lt.s32.totalorder %v1503, 4
    %v1526 = vsel %vm1522, %v1506, %v1509
    %v1527 = vsel %vm1525, %v1515, 2102212464
    %v1528 = vsel %vm1524, %v1512, %v1527
    %v1529 = vsel %vm1523, %v1526, %v1528
    %v1530 = vsel %vm1522, %v1509, %v1512
    %v1531 = vsel %vm1525, %v1518, 920167782
    %v1532 = vsel %vm1524, %v1515, %v1531
    %v1533 = vsel %vm1523, %v1530, %v1532
    %v1534 = vsel %vm1522, %v1512, %v1515
    %v1535 = vsel %vm1525, %v1521, 1326507024
    %v1536 = vsel %vm1524, %v1518, %v1535
    %v1537 = vsel %vm1523, %v1534, %v1536
    %v1538 = vshll.u32 %v1498, 8
    %v1539 = vmul.u32.u64.compose %v1538, %v1537
    %v1540 = vextract.low.u32 %v1539
    %v1541 = vextract.high.u32 %v1539
    %v1542 = vmul.u32.u64.compose %v1538, %v1533
    %v1543 = vextract.low.u32 %v1542
    %v1544 = vextract.high.u32 %v1542
    %v1545 = vmul.u32 %v1538, %v1529
    %v1546 = vadd.s32 %v1541, %v1543
    %vm1547 = vc.u32 %v1541, %v1543
    %v1548 = vadd.s32 %v1544, 1
    %v1549 = vsel %vm1547, %v1548, %v1544
    %v1550 = vadd.s32 %v1545, %v1549
    %v1551 = vadd.s32 %v1550, 536870912
    %v1552 = vshrl.u32 %v1551, 30
    %v1553 = vshll.u32 %v1552, 30
    %v1554 = vsub.s32 %v1550, %v1553
    %vm1555 = vcmp.lt.s32.totalorder %v1554, 0
    %v1556 = vsub.s32 0, %v1554
    %v1557 = vsel %vm1555, %v1556, %v1554
    %v1558 = vclz %v1557
    %v1559 = vsub.s32 %v1558, 2
    %vm1560 = vcmp.gt.s32.totalorder 0, %v1559
    %v1561 = vsel %vm1560, 0, %v1559
    %v1562 = vsub.s32 32, %v1561
    %v1563 = vshll.u32 %v1554, %v1561
    %v1564 = vshrl.u32 %v1546, %v1562
    %v1565 = vor.u32 %v1563, %v1564
    %v1566 = vsub.s32 4294967266, %v1561
    %v1567 = vadd.s32 %v1566, 127
    %v1568 = vshll.u32 %v1567, 23
    %v1569 = vor.u32 4788187, %v1568
    %v1570 = vand.u32 2147483647, %v1569
    %v1572 = vcvt.s32.f32 %v1565
    %v1573 = vmul.f32 %v1572, %v1570
    %v1574 = vxor.u32 %v1573, 2147483648
    %v1575 = vsel %vm1492, %v1574, %v1573
    %v1576 = vsub.s32 4, %v1552
    %v1577 = vsel %vm1492, %v1576, %v1552
    %v1578 = vsel %vm1491, %v658, %v1575
    %v1579 = vsel %vm1491, 0, %v1577
    %v1580 = vcosq.f32.pop %v1578
    %v1581 = vsinq.f32.pop %v1578
    %vm1582 = vweird.f32 %v658
    %v1583 = vand.u32 %v1579, 3
    %vm1584 = vcmp.lt.s32.totalorder %v1583, 2
    %vm1585 = vcmp.eq.s32.totalorder %v1583, 0
    %v1586 = vxor.u32 %v1581, 2147483648
    %v1587 = vsel %vm1585, %v1580, %v1586
    %vm1588 = vcmp.eq.s32.totalorder %v1583, 2
    %v1589 = vxor.u32 %v1580, 2147483648
    %v1590 = vsel %vm1588, %v1589, %v1581
    %v1591 = vsel %vm1584, %v1587, %v1590
    %v1592 = vsel %vm1582, nan, %v1591
    %v1593 = vand.u32 2147483647, %v659
    %vm1594 = vcmp.le.f32.partialorder %v1593, 0.7853982
    %vm1595 = vcmp.lt.s32.totalorder %v659, 0
    %v1596 = vand.u32 %v659, 2139095040
    %v1597 = vshrl.u32 %v1596, 23
    %v1598 = vsub.s32 %v1597, 127
    %v1599 = vand.u32 2147483647, %v659
    %v1600 = vand.u32 %v1599, 8388607
    %v1601 = vor.u32 %v1600, 8388608
    %v1602 = vsub.s32 0, %v1601
    %v1603 = vadd.s32 %v1598, 1
    %vm1604 = vcmp.gt.s32.totalorder %v1603, 0
    %v1605 = vsel %vm1604, %v1603, 0
    %v1606 = vshrl.u32 %v1605, 5
    %v1607 = vand.u32 %v1605, 31
    %v1608 = vsub.s32 32, %v1607
    %v1609 = vshrl.u32 683565275, %v1608
    %v1610 = vshll.u32 683565275, %v1607
    %v1611 = vshrl.u32 2475754826, %v1608
    %v1612 = vor.u32 %v1610, %v1611
    %v1613 = vshll.u32 2475754826, %v1607
    %v1614 = vshrl.u32 2131351028, %v1608
    %v1615 = vor.u32 %v1613, %v1614
    %v1616 = vshll.u32 2131351028, %v1607
    %v1617 = vshrl.u32 2102212464, %v1608
    %v1618 = vor.u32 %v1616, %v1617
    %v1619 = vshll.u32 2102212464, %v1607
    %v1620 = vshrl.u32 920167782, %v1608
    %v1621 = vor.u32 %v1619, %v1620
    %v1622 = vshll.u32 920167782, %v1607
    %v1623 = vshrl.u32 1326507024, %v1608
    %v1624 = vor.u32 %v1622, %v1623
    %vm1625 = vcmp.lt.s32.totalorder %v1606, 1
    %vm1626 = vcmp.lt.s32.totalorder %v1606, 2
    %vm1627 = vcmp.lt.s32.totalorder %v1606, 3
    %vm1628 = vcmp.lt.s32.totalorder %v1606, 4
    %v1629 = vsel %vm1625, %v1609, %v1612
    %v1630 = vsel %vm1628, %v1618, 2102212464
    %v1631 = vsel %vm1627, %v1615, %v1630
    %v1632 = vsel %vm1626, %v1629, %v1631
    %v1633 = vsel %vm1625, %v1612, %v1615
    %v1634 = vsel %vm1628, %v1621, 920167782
    %v1635 = vsel %vm1627, %v1618, %v1634
    %v1636 = vsel %vm1626, %v1633, %v1635
    %v1637 = vsel %vm1625, %v1615, %v1618
    %v1638 = vsel %vm1628, %v1624, 1326507024
    %v1639 = vsel %vm1627, %v1621, %v1638
    %v1640 = vsel %vm1626, %v1637, %v1639
    %v1641 = vshll.u32 %v1601, 8
    %v1642 = vmul.u32.u64.compose %v1641, %v1640
    %v1643 = vextract.low.u32 %v1642
    %v1644 = vextract.high.u32 %v1642
    %v1645 = vmul.u32.u64.compose %v1641, %v1636
    %v1646 = vextract.low.u32 %v1645
    %v1647 = vextract.high.u32 %v1645
    %v1648 = vmul.u32 %v1641, %v1632
    %v1649 = vadd.s32 %v1644, %v1646
    %vm1650 = vc.u32 %v1644, %v1646
    %v1651 = vadd.s32 %v1647, 1
    %v1652 = vsel %vm1650, %v1651, %v1647
    %v1653 = vadd.s32 %v1648, %v1652
    %v1654 = vadd.s32 %v1653, 536870912
    %v1655 = vshrl.u32 %v1654, 30
    %v1656 = vshll.u32 %v1655, 30
    %v1657 = vsub.s32 %v1653, %v1656
    %vm1658 = vcmp.lt.s32.totalorder %v1657, 0
    %v1659 = vsub.s32 0, %v1657
    %v1660 = vsel %vm1658, %v1659, %v1657
    %v1661 = vclz %v1660
    %v1662 = vsub.s32 %v1661, 2
    %vm1663 = vcmp.gt.s32.totalorder 0, %v1662
    %v1664 = vsel %vm1663, 0, %v1662
    %v1665 = vsub.s32 32, %v1664
    %v1666 = vshll.u32 %v1657, %v1664
    %v1667 = vshrl.u32 %v1649, %v1665
    %v1668 = vor.u32 %v1666, %v1667
    %v1669 = vsub.s32 4294967266, %v1664
    %v1670 = vadd.s32 %v1669, 127
    %v1671 = vshll.u32 %v1670, 23
    %v1672 = vor.u32 4788187, %v1671
    %v1673 = vand.u32 2147483647, %v1672
    %v1675 = vcvt.s32.f32 %v1668
    %v1676 = vmul.f32 %v1675, %v1673
    %v1677 = vxor.u32 %v1676, 2147483648
    %v1678 = vsel %vm1595, %v1677, %v1676
    %v1679 = vsub.s32 4, %v1655
    %v1680 = vsel %vm1595, %v1679, %v1655
    %v1681 = vsel %vm1594, %v659, %v1678
    %v1682 = vsel %vm1594, 0, %v1680
    %v1683 = vcosq.f32.pop %v1681
    %v1684 = vsinq.f32.pop %v1681
    %vm1685 = vweird.f32 %v659
    %v1686 = vand.u32 %v1682, 3
    %vm1687 = vcmp.lt.s32.totalorder %v1686, 2
    %vm1688 = vcmp.eq.s32.totalorder %v1686, 0
    %v1689 = vxor.u32 %v1684, 2147483648
    %v1690 = vsel %vm1688, %v1683, %v1689
    %vm1691 = vcmp.eq.s32.totalorder %v1686, 2
    %v1692 = vxor.u32 %v1683, 2147483648
    %v1693 = vsel %vm1691, %v1692, %v1684
    %v1694 = vsel %vm1687, %v1690, %v1693
    %v1695 = vsel %vm1685, nan, %v1694
    %v1696 = vand.u32 2147483647, %v660
    %vm1697 = vcmp.le.f32.partialorder %v1696, 0.7853982
    %vm1698 = vcmp.lt.s32.totalorder %v660, 0
    %v1699 = vand.u32 %v660, 2139095040
    %v1700 = vshrl.u32 %v1699, 23
    %v1701 = vsub.s32 %v1700, 127
    %v1702 = vand.u32 2147483647, %v660
    %v1703 = vand.u32 %v1702, 8388607
    %v1704 = vor.u32 %v1703, 8388608
    %v1705 = vsub.s32 0, %v1704
    %v1706 = vadd.s32 %v1701, 1
    %vm1707 = vcmp.gt.s32.totalorder %v1706, 0
    %v1708 = vsel %vm1707, %v1706, 0
    %v1709 = vshrl.u32 %v1708, 5
    %v1710 = vand.u32 %v1708, 31
    %v1711 = vsub.s32 32, %v1710
    %v1712 = vshrl.u32 683565275, %v1711
    %v1713 = vshll.u32 683565275, %v1710
    %v1714 = vshrl.u32 2475754826, %v1711
    %v1715 = vor.u32 %v1713, %v1714
    %v1716 = vshll.u32 2475754826, %v1710
    %v1717 = vshrl.u32 2131351028, %v1711
    %v1718 = vor.u32 %v1716, %v1717
    %v1719 = vshll.u32 2131351028, %v1710
    %v1720 = vshrl.u32 2102212464, %v1711
    %v1721 = vor.u32 %v1719, %v1720
    %v1722 = vshll.u32 2102212464, %v1710
    %v1723 = vshrl.u32 920167782, %v1711
    %v1724 = vor.u32 %v1722, %v1723
    %v1725 = vshll.u32 920167782, %v1710
    %v1726 = vshrl.u32 1326507024, %v1711
    %v1727 = vor.u32 %v1725, %v1726
    %vm1728 = vcmp.lt.s32.totalorder %v1709, 1
    %vm1729 = vcmp.lt.s32.totalorder %v1709, 2
    %vm1730 = vcmp.lt.s32.totalorder %v1709, 3
    %vm1731 = vcmp.lt.s32.totalorder %v1709, 4
    %v1732 = vsel %vm1728, %v1712, %v1715
    %v1733 = vsel %vm1731, %v1721, 2102212464
    %v1734 = vsel %vm1730, %v1718, %v1733
    %v1735 = vsel %vm1729, %v1732, %v1734
    %v1736 = vsel %vm1728, %v1715, %v1718
    %v1737 = vsel %vm1731, %v1724, 920167782
    %v1738 = vsel %vm1730, %v1721, %v1737
    %v1739 = vsel %vm1729, %v1736, %v1738
    %v1740 = vsel %vm1728, %v1718, %v1721
    %v1741 = vsel %vm1731, %v1727, 1326507024
    %v1742 = vsel %vm1730, %v1724, %v1741
    %v1743 = vsel %vm1729, %v1740, %v1742
    %v1744 = vshll.u32 %v1704, 8
    %v1745 = vmul.u32.u64.compose %v1744, %v1743
    %v1746 = vextract.low.u32 %v1745
    %v1747 = vextract.high.u32 %v1745
    %v1748 = vmul.u32.u64.compose %v1744, %v1739
    %v1749 = vextract.low.u32 %v1748
    %v1750 = vextract.high.u32 %v1748
    %v1751 = vmul.u32 %v1744, %v1735
    %v1752 = vadd.s32 %v1747, %v1749
    %vm1753 = vc.u32 %v1747, %v1749
    %v1754 = vadd.s32 %v1750, 1
    %v1755 = vsel %vm1753, %v1754, %v1750
    %v1756 = vadd.s32 %v1751, %v1755
    %v1757 = vadd.s32 %v1756, 536870912
    %v1758 = vshrl.u32 %v1757, 30
    %v1759 = vshll.u32 %v1758, 30
    %v1760 = vsub.s32 %v1756, %v1759
    %vm1761 = vcmp.lt.s32.totalorder %v1760, 0
    %v1762 = vsub.s32 0, %v1760
    %v1763 = vsel %vm1761, %v1762, %v1760
    %v1764 = vclz %v1763
    %v1765 = vsub.s32 %v1764, 2
    %vm1766 = vcmp.gt.s32.totalorder 0, %v1765
    %v1767 = vsel %vm1766, 0, %v1765
    %v1768 = vsub.s32 32, %v1767
    %v1769 = vshll.u32 %v1760, %v1767
    %v1770 = vshrl.u32 %v1752, %v1768
    %v1771 = vor.u32 %v1769, %v1770
    %v1772 = vsub.s32 4294967266, %v1767
    %v1773 = vadd.s32 %v1772, 127
    %v1774 = vshll.u32 %v1773, 23
    %v1775 = vor.u32 4788187, %v1774
    %v1776 = vand.u32 2147483647, %v1775
    %v1778 = vcvt.s32.f32 %v1771
    %v1779 = vmul.f32 %v1778, %v1776
    %v1780 = vxor.u32 %v1779, 2147483648
    %v1781 = vsel %vm1698, %v1780, %v1779
    %v1782 = vsub.s32 4, %v1758
    %v1783 = vsel %vm1698, %v1782, %v1758
    %v1784 = vsel %vm1697, %v660, %v1781
    %v1785 = vsel %vm1697, 0, %v1783
    %v1786 = vcosq.f32.pop %v1784
    %v1787 = vsinq.f32.pop %v1784
    %vm1788 = vweird.f32 %v660
    %v1789 = vand.u32 %v1785, 3
    %vm1790 = vcmp.lt.s32.totalorder %v1789, 2
    %vm1791 = vcmp.eq.s32.totalorder %v1789, 0
    %v1792 = vxor.u32 %v1787, 2147483648
    %v1793 = vsel %vm1791, %v1786, %v1792
    %vm1794 = vcmp.eq.s32.totalorder %v1789, 2
    %v1795 = vxor.u32 %v1786, 2147483648
    %v1796 = vsel %vm1794, %v1795, %v1787
    %v1797 = vsel %vm1790, %v1793, %v1796
    %v1798 = vsel %vm1788, nan, %v1797
    %v1799 = vand.u32 2147483647, %v661
    %vm1800 = vcmp.le.f32.partialorder %v1799, 0.7853982
    %vm1801 = vcmp.lt.s32.totalorder %v661, 0
    %v1802 = vand.u32 %v661, 2139095040
    %v1803 = vshrl.u32 %v1802, 23
    %v1804 = vsub.s32 %v1803, 127
    %v1805 = vand.u32 2147483647, %v661
    %v1806 = vand.u32 %v1805, 8388607
    %v1807 = vor.u32 %v1806, 8388608
    %v1808 = vsub.s32 0, %v1807
    %v1809 = vadd.s32 %v1804, 1
    %vm1810 = vcmp.gt.s32.totalorder %v1809, 0
    %v1811 = vsel %vm1810, %v1809, 0
    %v1812 = vshrl.u32 %v1811, 5
    %v1813 = vand.u32 %v1811, 31
    %v1814 = vsub.s32 32, %v1813
    %v1815 = vshrl.u32 683565275, %v1814
    %v1816 = vshll.u32 683565275, %v1813
    %v1817 = vshrl.u32 2475754826, %v1814
    %v1818 = vor.u32 %v1816, %v1817
    %v1819 = vshll.u32 2475754826, %v1813
    %v1820 = vshrl.u32 2131351028, %v1814
    %v1821 = vor.u32 %v1819, %v1820
    %v1822 = vshll.u32 2131351028, %v1813
    %v1823 = vshrl.u32 2102212464, %v1814
    %v1824 = vor.u32 %v1822, %v1823
    %v1825 = vshll.u32 2102212464, %v1813
    %v1826 = vshrl.u32 920167782, %v1814
    %v1827 = vor.u32 %v1825, %v1826
    %v1828 = vshll.u32 920167782, %v1813
    %v1829 = vshrl.u32 1326507024, %v1814
    %v1830 = vor.u32 %v1828, %v1829
    %vm1831 = vcmp.lt.s32.totalorder %v1812, 1
    %vm1832 = vcmp.lt.s32.totalorder %v1812, 2
    %vm1833 = vcmp.lt.s32.totalorder %v1812, 3
    %vm1834 = vcmp.lt.s32.totalorder %v1812, 4
    %v1835 = vsel %vm1831, %v1815, %v1818
    %v1836 = vsel %vm1834, %v1824, 2102212464
    %v1837 = vsel %vm1833, %v1821, %v1836
    %v1838 = vsel %vm1832, %v1835, %v1837
    %v1839 = vsel %vm1831, %v1818, %v1821
    %v1840 = vsel %vm1834, %v1827, 920167782
    %v1841 = vsel %vm1833, %v1824, %v1840
    %v1842 = vsel %vm1832, %v1839, %v1841
    %v1843 = vsel %vm1831, %v1821, %v1824
    %v1844 = vsel %vm1834, %v1830, 1326507024
    %v1845 = vsel %vm1833, %v1827, %v1844
    %v1846 = vsel %vm1832, %v1843, %v1845
    %v1847 = vshll.u32 %v1807, 8
    %v1848 = vmul.u32.u64.compose %v1847, %v1846
    %v1849 = vextract.low.u32 %v1848
    %v1850 = vextract.high.u32 %v1848
    %v1851 = vmul.u32.u64.compose %v1847, %v1842
    %v1852 = vextract.low.u32 %v1851
    %v1853 = vextract.high.u32 %v1851
    %v1854 = vmul.u32 %v1847, %v1838
    %v1855 = vadd.s32 %v1850, %v1852
    %vm1856 = vc.u32 %v1850, %v1852
    %v1857 = vadd.s32 %v1853, 1
    %v1858 = vsel %vm1856, %v1857, %v1853
    %v1859 = vadd.s32 %v1854, %v1858
    %v1860 = vadd.s32 %v1859, 536870912
    %v1861 = vshrl.u32 %v1860, 30
    %v1862 = vshll.u32 %v1861, 30
    %v1863 = vsub.s32 %v1859, %v1862
    %vm1864 = vcmp.lt.s32.totalorder %v1863, 0
    %v1865 = vsub.s32 0, %v1863
    %v1866 = vsel %vm1864, %v1865, %v1863
    %v1867 = vclz %v1866
    %v1868 = vsub.s32 %v1867, 2
    %vm1869 = vcmp.gt.s32.totalorder 0, %v1868
    %v1870 = vsel %vm1869, 0, %v1868
    %v1871 = vsub.s32 32, %v1870
    %v1872 = vshll.u32 %v1863, %v1870
    %v1873 = vshrl.u32 %v1855, %v1871
    %v1874 = vor.u32 %v1872, %v1873
    %v1875 = vsub.s32 4294967266, %v1870
    %v1876 = vadd.s32 %v1875, 127
    %v1877 = vshll.u32 %v1876, 23
    %v1878 = vor.u32 4788187, %v1877
    %v1879 = vand.u32 2147483647, %v1878
    %v1881 = vcvt.s32.f32 %v1874
    %v1882 = vmul.f32 %v1881, %v1879
    %v1883 = vxor.u32 %v1882, 2147483648
    %v1884 = vsel %vm1801, %v1883, %v1882
    %v1885 = vsub.s32 4, %v1861
    %v1886 = vsel %vm1801, %v1885, %v1861
    %v1887 = vsel %vm1800, %v661, %v1884
    %v1888 = vsel %vm1800, 0, %v1886
    %v1889 = vcosq.f32.pop %v1887
    %v1890 = vsinq.f32.pop %v1887
    %vm1891 = vweird.f32 %v661
    %v1892 = vand.u32 %v1888, 3
    %vm1893 = vcmp.lt.s32.totalorder %v1892, 2
    %vm1894 = vcmp.eq.s32.totalorder %v1892, 0
    %v1895 = vxor.u32 %v1890, 2147483648
    %v1896 = vsel %vm1894, %v1889, %v1895
    %vm1897 = vcmp.eq.s32.totalorder %v1892, 2
    %v1898 = vxor.u32 %v1889, 2147483648
    %v1899 = vsel %vm1897, %v1898, %v1890
    %v1900 = vsel %vm1893, %v1896, %v1899
    %v1901 = vsel %vm1891, nan, %v1900
    %v1902 = vand.u32 2147483647, %v662
    %vm1903 = vcmp.le.f32.partialorder %v1902, 0.7853982
    %vm1904 = vcmp.lt.s32.totalorder %v662, 0
    %v1905 = vand.u32 %v662, 2139095040
    %v1906 = vshrl.u32 %v1905, 23
    %v1907 = vsub.s32 %v1906, 127
    %v1908 = vand.u32 2147483647, %v662
    %v1909 = vand.u32 %v1908, 8388607
    %v1910 = vor.u32 %v1909, 8388608
    %v1911 = vsub.s32 0, %v1910
    %v1912 = vadd.s32 %v1907, 1
    %vm1913 = vcmp.gt.s32.totalorder %v1912, 0
    %v1914 = vsel %vm1913, %v1912, 0
    %v1915 = vshrl.u32 %v1914, 5
    %v1916 = vand.u32 %v1914, 31
    %v1917 = vsub.s32 32, %v1916
    %v1918 = vshrl.u32 683565275, %v1917
    %v1919 = vshll.u32 683565275, %v1916
    %v1920 = vshrl.u32 2475754826, %v1917
    %v1921 = vor.u32 %v1919, %v1920
    %v1922 = vshll.u32 2475754826, %v1916
    %v1923 = vshrl.u32 2131351028, %v1917
    %v1924 = vor.u32 %v1922, %v1923
    %v1925 = vshll.u32 2131351028, %v1916
    %v1926 = vshrl.u32 2102212464, %v1917
    %v1927 = vor.u32 %v1925, %v1926
    %v1928 = vshll.u32 2102212464, %v1916
    %v1929 = vshrl.u32 920167782, %v1917
    %v1930 = vor.u32 %v1928, %v1929
    %v1931 = vshll.u32 920167782, %v1916
    %v1932 = vshrl.u32 1326507024, %v1917
    %v1933 = vor.u32 %v1931, %v1932
    %vm1934 = vcmp.lt.s32.totalorder %v1915, 1
    %vm1935 = vcmp.lt.s32.totalorder %v1915, 2
    %vm1936 = vcmp.lt.s32.totalorder %v1915, 3
    %vm1937 = vcmp.lt.s32.totalorder %v1915, 4
    %v1938 = vsel %vm1934, %v1918, %v1921
    %v1939 = vsel %vm1937, %v1927, 2102212464
    %v1940 = vsel %vm1936, %v1924, %v1939
    %v1941 = vsel %vm1935, %v1938, %v1940
    %v1942 = vsel %vm1934, %v1921, %v1924
    %v1943 = vsel %vm1937, %v1930, 920167782
    %v1944 = vsel %vm1936, %v1927, %v1943
    %v1945 = vsel %vm1935, %v1942, %v1944
    %v1946 = vsel %vm1934, %v1924, %v1927
    %v1947 = vsel %vm1937, %v1933, 1326507024
    %v1948 = vsel %vm1936, %v1930, %v1947
    %v1949 = vsel %vm1935, %v1946, %v1948
    %v1950 = vshll.u32 %v1910, 8
    %v1951 = vmul.u32.u64.compose %v1950, %v1949
    %v1952 = vextract.low.u32 %v1951
    %v1953 = vextract.high.u32 %v1951
    %v1954 = vmul.u32.u64.compose %v1950, %v1945
    %v1955 = vextract.low.u32 %v1954
    %v1956 = vextract.high.u32 %v1954
    %v1957 = vmul.u32 %v1950, %v1941
    %v1958 = vadd.s32 %v1953, %v1955
    %vm1959 = vc.u32 %v1953, %v1955
    %v1960 = vadd.s32 %v1956, 1
    %v1961 = vsel %vm1959, %v1960, %v1956
    %v1962 = vadd.s32 %v1957, %v1961
    %v1963 = vadd.s32 %v1962, 536870912
    %v1964 = vshrl.u32 %v1963, 30
    %v1965 = vshll.u32 %v1964, 30
    %v1966 = vsub.s32 %v1962, %v1965
    %vm1967 = vcmp.lt.s32.totalorder %v1966, 0
    %v1968 = vsub.s32 0, %v1966
    %v1969 = vsel %vm1967, %v1968, %v1966
    %v1970 = vclz %v1969
    %v1971 = vsub.s32 %v1970, 2
    %vm1972 = vcmp.gt.s32.totalorder 0, %v1971
    %v1973 = vsel %vm1972, 0, %v1971
    %v1974 = vsub.s32 32, %v1973
    %v1975 = vshll.u32 %v1966, %v1973
    %v1976 = vshrl.u32 %v1958, %v1974
    %v1977 = vor.u32 %v1975, %v1976
    %v1978 = vsub.s32 4294967266, %v1973
    %v1979 = vadd.s32 %v1978, 127
    %v1980 = vshll.u32 %v1979, 23
    %v1981 = vor.u32 4788187, %v1980
    %v1982 = vand.u32 2147483647, %v1981
    %v1984 = vcvt.s32.f32 %v1977
    %v1985 = vmul.f32 %v1984, %v1982
    %v1986 = vxor.u32 %v1985, 2147483648
    %v1987 = vsel %vm1904, %v1986, %v1985
    %v1988 = vsub.s32 4, %v1964
    %v1989 = vsel %vm1904, %v1988, %v1964
    %v1990 = vsel %vm1903, %v662, %v1987
    %v1991 = vsel %vm1903, 0, %v1989
    %v1992 = vcosq.f32.pop %v1990
    %v1993 = vsinq.f32.pop %v1990
    %vm1994 = vweird.f32 %v662
    %v1995 = vand.u32 %v1991, 3
    %vm1996 = vcmp.lt.s32.totalorder %v1995, 2
    %vm1997 = vcmp.eq.s32.totalorder %v1995, 0
    %v1998 = vxor.u32 %v1993, 2147483648
    %v1999 = vsel %vm1997, %v1992, %v1998
    %vm2000 = vcmp.eq.s32.totalorder %v1995, 2
    %v2001 = vxor.u32 %v1992, 2147483648
    %v2002 = vsel %vm2000, %v2001, %v1993
    %v2003 = vsel %vm1996, %v1999, %v2002
    %v2004 = vsel %vm1994, nan, %v2003
    %v2005 = vand.u32 2147483647, %v663
    %vm2006 = vcmp.le.f32.partialorder %v2005, 0.7853982
    %vm2007 = vcmp.lt.s32.totalorder %v663, 0
    %v2008 = vand.u32 %v663, 2139095040
    %v2009 = vshrl.u32 %v2008, 23
    %v2010 = vsub.s32 %v2009, 127
    %v2011 = vand.u32 2147483647, %v663
    %v2012 = vand.u32 %v2011, 8388607
    %v2013 = vor.u32 %v2012, 8388608
    %v2014 = vsub.s32 0, %v2013
    %v2015 = vadd.s32 %v2010, 1
    %vm2016 = vcmp.gt.s32.totalorder %v2015, 0
    %v2017 = vsel %vm2016, %v2015, 0
    %v2018 = vshrl.u32 %v2017, 5
    %v2019 = vand.u32 %v2017, 31
    %v2020 = vsub.s32 32, %v2019
    %v2021 = vshrl.u32 683565275, %v2020
    %v2022 = vshll.u32 683565275, %v2019
    %v2023 = vshrl.u32 2475754826, %v2020
    %v2024 = vor.u32 %v2022, %v2023
    %v2025 = vshll.u32 2475754826, %v2019
    %v2026 = vshrl.u32 2131351028, %v2020
    %v2027 = vor.u32 %v2025, %v2026
    %v2028 = vshll.u32 2131351028, %v2019
    %v2029 = vshrl.u32 2102212464, %v2020
    %v2030 = vor.u32 %v2028, %v2029
    %v2031 = vshll.u32 2102212464, %v2019
    %v2032 = vshrl.u32 920167782, %v2020
    %v2033 = vor.u32 %v2031, %v2032
    %v2034 = vshll.u32 920167782, %v2019
    %v2035 = vshrl.u32 1326507024, %v2020
    %v2036 = vor.u32 %v2034, %v2035
    %vm2037 = vcmp.lt.s32.totalorder %v2018, 1
    %vm2038 = vcmp.lt.s32.totalorder %v2018, 2
    %vm2039 = vcmp.lt.s32.totalorder %v2018, 3
    %vm2040 = vcmp.lt.s32.totalorder %v2018, 4
    %v2041 = vsel %vm2037, %v2021, %v2024
    %v2042 = vsel %vm2040, %v2030, 2102212464
    %v2043 = vsel %vm2039, %v2027, %v2042
    %v2044 = vsel %vm2038, %v2041, %v2043
    %v2045 = vsel %vm2037, %v2024, %v2027
    %v2046 = vsel %vm2040, %v2033, 920167782
    %v2047 = vsel %vm2039, %v2030, %v2046
    %v2048 = vsel %vm2038, %v2045, %v2047
    %v2049 = vsel %vm2037, %v2027, %v2030
    %v2050 = vsel %vm2040, %v2036, 1326507024
    %v2051 = vsel %vm2039, %v2033, %v2050
    %v2052 = vsel %vm2038, %v2049, %v2051
    %v2053 = vshll.u32 %v2013, 8
    %v2054 = vmul.u32.u64.compose %v2053, %v2052
    %v2055 = vextract.low.u32 %v2054
    %v2056 = vextract.high.u32 %v2054
    %v2057 = vmul.u32.u64.compose %v2053, %v2048
    %v2058 = vextract.low.u32 %v2057
    %v2059 = vextract.high.u32 %v2057
    %v2060 = vmul.u32 %v2053, %v2044
    %v2061 = vadd.s32 %v2056, %v2058
    %vm2062 = vc.u32 %v2056, %v2058
    %v2063 = vadd.s32 %v2059, 1
    %v2064 = vsel %vm2062, %v2063, %v2059
    %v2065 = vadd.s32 %v2060, %v2064
    %v2066 = vadd.s32 %v2065, 536870912
    %v2067 = vshrl.u32 %v2066, 30
    %v2068 = vshll.u32 %v2067, 30
    %v2069 = vsub.s32 %v2065, %v2068
    %vm2070 = vcmp.lt.s32.totalorder %v2069, 0
    %v2071 = vsub.s32 0, %v2069
    %v2072 = vsel %vm2070, %v2071, %v2069
    %v2073 = vclz %v2072
    %v2074 = vsub.s32 %v2073, 2
    %vm2075 = vcmp.gt.s32.totalorder 0, %v2074
    %v2076 = vsel %vm2075, 0, %v2074
    %v2077 = vsub.s32 32, %v2076
    %v2078 = vshll.u32 %v2069, %v2076
    %v2079 = vshrl.u32 %v2061, %v2077
    %v2080 = vor.u32 %v2078, %v2079
    %v2081 = vsub.s32 4294967266, %v2076
    %v2082 = vadd.s32 %v2081, 127
    %v2083 = vshll.u32 %v2082, 23
    %v2084 = vor.u32 4788187, %v2083
    %v2085 = vand.u32 2147483647, %v2084
    %v2087 = vcvt.s32.f32 %v2080
    %v2088 = vmul.f32 %v2087, %v2085
    %v2089 = vxor.u32 %v2088, 2147483648
    %v2090 = vsel %vm2007, %v2089, %v2088
    %v2091 = vsub.s32 4, %v2067
    %v2092 = vsel %vm2007, %v2091, %v2067
    %v2093 = vsel %vm2006, %v663, %v2090
    %v2094 = vsel %vm2006, 0, %v2092
    %v2095 = vcosq.f32.pop %v2093
    %v2096 = vsinq.f32.pop %v2093
    %vm2097 = vweird.f32 %v663
    %v2098 = vand.u32 %v2094, 3
    %vm2099 = vcmp.lt.s32.totalorder %v2098, 2
    %vm2100 = vcmp.eq.s32.totalorder %v2098, 0
    %v2101 = vxor.u32 %v2096, 2147483648
    %v2102 = vsel %vm2100, %v2095, %v2101
    %vm2103 = vcmp.eq.s32.totalorder %v2098, 2
    %v2104 = vxor.u32 %v2095, 2147483648
    %v2105 = vsel %vm2103, %v2104, %v2096
    %v2106 = vsel %vm2099, %v2102, %v2105
    %v2107 = vsel %vm2097, nan, %v2106
    %v2108 = vand.u32 2147483647, %v664
    %vm2109 = vcmp.le.f32.partialorder %v2108, 0.7853982
    %vm2110 = vcmp.lt.s32.totalorder %v664, 0
    %v2111 = vand.u32 %v664, 2139095040
    %v2112 = vshrl.u32 %v2111, 23
    %v2113 = vsub.s32 %v2112, 127
    %v2114 = vand.u32 2147483647, %v664
    %v2115 = vand.u32 %v2114, 8388607
    %v2116 = vor.u32 %v2115, 8388608
    %v2117 = vsub.s32 0, %v2116
    %v2118 = vadd.s32 %v2113, 1
    %vm2119 = vcmp.gt.s32.totalorder %v2118, 0
    %v2120 = vsel %vm2119, %v2118, 0
    %v2121 = vshrl.u32 %v2120, 5
    %v2122 = vand.u32 %v2120, 31
    %v2123 = vsub.s32 32, %v2122
    %v2124 = vshrl.u32 683565275, %v2123
    %v2125 = vshll.u32 683565275, %v2122
    %v2126 = vshrl.u32 2475754826, %v2123
    %v2127 = vor.u32 %v2125, %v2126
    %v2128 = vshll.u32 2475754826, %v2122
    %v2129 = vshrl.u32 2131351028, %v2123
    %v2130 = vor.u32 %v2128, %v2129
    %v2131 = vshll.u32 2131351028, %v2122
    %v2132 = vshrl.u32 2102212464, %v2123
    %v2133 = vor.u32 %v2131, %v2132
    %v2134 = vshll.u32 2102212464, %v2122
    %v2135 = vshrl.u32 920167782, %v2123
    %v2136 = vor.u32 %v2134, %v2135
    %v2137 = vshll.u32 920167782, %v2122
    %v2138 = vshrl.u32 1326507024, %v2123
    %v2139 = vor.u32 %v2137, %v2138
    %vm2140 = vcmp.lt.s32.totalorder %v2121, 1
    %vm2141 = vcmp.lt.s32.totalorder %v2121, 2
    %vm2142 = vcmp.lt.s32.totalorder %v2121, 3
    %vm2143 = vcmp.lt.s32.totalorder %v2121, 4
    %v2144 = vsel %vm2140, %v2124, %v2127
    %v2145 = vsel %vm2143, %v2133, 2102212464
    %v2146 = vsel %vm2142, %v2130, %v2145
    %v2147 = vsel %vm2141, %v2144, %v2146
    %v2148 = vsel %vm2140, %v2127, %v2130
    %v2149 = vsel %vm2143, %v2136, 920167782
    %v2150 = vsel %vm2142, %v2133, %v2149
    %v2151 = vsel %vm2141, %v2148, %v2150
    %v2152 = vsel %vm2140, %v2130, %v2133
    %v2153 = vsel %vm2143, %v2139, 1326507024
    %v2154 = vsel %vm2142, %v2136, %v2153
    %v2155 = vsel %vm2141, %v2152, %v2154
    %v2156 = vshll.u32 %v2116, 8
    %v2157 = vmul.u32.u64.compose %v2156, %v2155
    %v2158 = vextract.low.u32 %v2157
    %v2159 = vextract.high.u32 %v2157
    %v2160 = vmul.u32.u64.compose %v2156, %v2151
    %v2161 = vextract.low.u32 %v2160
    %v2162 = vextract.high.u32 %v2160
    %v2163 = vmul.u32 %v2156, %v2147
    %v2164 = vadd.s32 %v2159, %v2161
    %vm2165 = vc.u32 %v2159, %v2161
    %v2166 = vadd.s32 %v2162, 1
    %v2167 = vsel %vm2165, %v2166, %v2162
    %v2168 = vadd.s32 %v2163, %v2167
    %v2169 = vadd.s32 %v2168, 536870912
    %v2170 = vshrl.u32 %v2169, 30
    %v2171 = vshll.u32 %v2170, 30
    %v2172 = vsub.s32 %v2168, %v2171
    %vm2173 = vcmp.lt.s32.totalorder %v2172, 0
    %v2174 = vsub.s32 0, %v2172
    %v2175 = vsel %vm2173, %v2174, %v2172
    %v2176 = vclz %v2175
    %v2177 = vsub.s32 %v2176, 2
    %vm2178 = vcmp.gt.s32.totalorder 0, %v2177
    %v2179 = vsel %vm2178, 0, %v2177
    %v2180 = vsub.s32 32, %v2179
    %v2181 = vshll.u32 %v2172, %v2179
    %v2182 = vshrl.u32 %v2164, %v2180
    %v2183 = vor.u32 %v2181, %v2182
    %v2184 = vsub.s32 4294967266, %v2179
    %v2185 = vadd.s32 %v2184, 127
    %v2186 = vshll.u32 %v2185, 23
    %v2187 = vor.u32 4788187, %v2186
    %v2188 = vand.u32 2147483647, %v2187
    %v2190 = vcvt.s32.f32 %v2183
    %v2191 = vmul.f32 %v2190, %v2188
    %v2192 = vxor.u32 %v2191, 2147483648
    %v2193 = vsel %vm2110, %v2192, %v2191
    %v2194 = vsub.s32 4, %v2170
    %v2195 = vsel %vm2110, %v2194, %v2170
    %v2196 = vsel %vm2109, %v664, %v2193
    %v2197 = vsel %vm2109, 0, %v2195
    %v2198 = vcosq.f32.pop %v2196
    %v2199 = vsinq.f32.pop %v2196
    %vm2200 = vweird.f32 %v664
    %v2201 = vand.u32 %v2197, 3
    %vm2202 = vcmp.lt.s32.totalorder %v2201, 2
    %vm2203 = vcmp.eq.s32.totalorder %v2201, 0
    %v2204 = vxor.u32 %v2199, 2147483648
    %v2205 = vsel %vm2203, %v2198, %v2204
    %vm2206 = vcmp.eq.s32.totalorder %v2201, 2
    %v2207 = vxor.u32 %v2198, 2147483648
    %v2208 = vsel %vm2206, %v2207, %v2199
    %v2209 = vsel %vm2202, %v2205, %v2208
    %v2210 = vsel %vm2200, nan, %v2209
    %v2211 = vand.u32 2147483647, %v665
    %vm2212 = vcmp.le.f32.partialorder %v2211, 0.7853982
    %vm2213 = vcmp.lt.s32.totalorder %v665, 0
    %v2214 = vand.u32 %v665, 2139095040
    %v2215 = vshrl.u32 %v2214, 23
    %v2216 = vsub.s32 %v2215, 127
    %v2217 = vand.u32 2147483647, %v665
    %v2218 = vand.u32 %v2217, 8388607
    %v2219 = vor.u32 %v2218, 8388608
    %v2220 = vsub.s32 0, %v2219
    %v2221 = vadd.s32 %v2216, 1
    %vm2222 = vcmp.gt.s32.totalorder %v2221, 0
    %v2223 = vsel %vm2222, %v2221, 0
    %v2224 = vshrl.u32 %v2223, 5
    %v2225 = vand.u32 %v2223, 31
    %v2226 = vsub.s32 32, %v2225
    %v2227 = vshrl.u32 683565275, %v2226
    %v2228 = vshll.u32 683565275, %v2225
    %v2229 = vshrl.u32 2475754826, %v2226
    %v2230 = vor.u32 %v2228, %v2229
    %v2231 = vshll.u32 2475754826, %v2225
    %v2232 = vshrl.u32 2131351028, %v2226
    %v2233 = vor.u32 %v2231, %v2232
    %v2234 = vshll.u32 2131351028, %v2225
    %v2235 = vshrl.u32 2102212464, %v2226
    %v2236 = vor.u32 %v2234, %v2235
    %v2237 = vshll.u32 2102212464, %v2225
    %v2238 = vshrl.u32 920167782, %v2226
    %v2239 = vor.u32 %v2237, %v2238
    %v2240 = vshll.u32 920167782, %v2225
    %v2241 = vshrl.u32 1326507024, %v2226
    %v2242 = vor.u32 %v2240, %v2241
    %vm2243 = vcmp.lt.s32.totalorder %v2224, 1
    %vm2244 = vcmp.lt.s32.totalorder %v2224, 2
    %vm2245 = vcmp.lt.s32.totalorder %v2224, 3
    %vm2246 = vcmp.lt.s32.totalorder %v2224, 4
    %v2247 = vsel %vm2243, %v2227, %v2230
    %v2248 = vsel %vm2246, %v2236, 2102212464
    %v2249 = vsel %vm2245, %v2233, %v2248
    %v2250 = vsel %vm2244, %v2247, %v2249
    %v2251 = vsel %vm2243, %v2230, %v2233
    %v2252 = vsel %vm2246, %v2239, 920167782
    %v2253 = vsel %vm2245, %v2236, %v2252
    %v2254 = vsel %vm2244, %v2251, %v2253
    %v2255 = vsel %vm2243, %v2233, %v2236
    %v2256 = vsel %vm2246, %v2242, 1326507024
    %v2257 = vsel %vm2245, %v2239, %v2256
    %v2258 = vsel %vm2244, %v2255, %v2257
    %v2259 = vshll.u32 %v2219, 8
    %v2260 = vmul.u32.u64.compose %v2259, %v2258
    %v2261 = vextract.low.u32 %v2260
    %v2262 = vextract.high.u32 %v2260
    %v2263 = vmul.u32.u64.compose %v2259, %v2254
    %v2264 = vextract.low.u32 %v2263
    %v2265 = vextract.high.u32 %v2263
    %v2266 = vmul.u32 %v2259, %v2250
    %v2267 = vadd.s32 %v2262, %v2264
    %vm2268 = vc.u32 %v2262, %v2264
    %v2269 = vadd.s32 %v2265, 1
    %v2270 = vsel %vm2268, %v2269, %v2265
    %v2271 = vadd.s32 %v2266, %v2270
    %v2272 = vadd.s32 %v2271, 536870912
    %v2273 = vshrl.u32 %v2272, 30
    %v2274 = vshll.u32 %v2273, 30
    %v2275 = vsub.s32 %v2271, %v2274
    %vm2276 = vcmp.lt.s32.totalorder %v2275, 0
    %v2277 = vsub.s32 0, %v2275
    %v2278 = vsel %vm2276, %v2277, %v2275
    %v2279 = vclz %v2278
    %v2280 = vsub.s32 %v2279, 2
    %vm2281 = vcmp.gt.s32.totalorder 0, %v2280
    %v2282 = vsel %vm2281, 0, %v2280
    %v2283 = vsub.s32 32, %v2282
    %v2284 = vshll.u32 %v2275, %v2282
    %v2285 = vshrl.u32 %v2267, %v2283
    %v2286 = vor.u32 %v2284, %v2285
    %v2287 = vsub.s32 4294967266, %v2282
    %v2288 = vadd.s32 %v2287, 127
    %v2289 = vshll.u32 %v2288, 23
    %v2290 = vor.u32 4788187, %v2289
    %v2291 = vand.u32 2147483647, %v2290
    %v2293 = vcvt.s32.f32 %v2286
    %v2294 = vmul.f32 %v2293, %v2291
    %v2295 = vxor.u32 %v2294, 2147483648
    %v2296 = vsel %vm2213, %v2295, %v2294
    %v2297 = vsub.s32 4, %v2273
    %v2298 = vsel %vm2213, %v2297, %v2273
    %v2299 = vsel %vm2212, %v665, %v2296
    %v2300 = vsel %vm2212, 0, %v2298
    %v2301 = vcosq.f32.pop %v2299
    %v2302 = vsinq.f32.pop %v2299
    %vm2303 = vweird.f32 %v665
    %v2304 = vand.u32 %v2300, 3
    %vm2305 = vcmp.lt.s32.totalorder %v2304, 2
    %vm2306 = vcmp.eq.s32.totalorder %v2304, 0
    %v2307 = vxor.u32 %v2302, 2147483648
    %v2308 = vsel %vm2306, %v2301, %v2307
    %vm2309 = vcmp.eq.s32.totalorder %v2304, 2
    %v2310 = vxor.u32 %v2301, 2147483648
    %v2311 = vsel %vm2309, %v2310, %v2302
    %v2312 = vsel %vm2305, %v2308, %v2311
    %v2313 = vsel %vm2303, nan, %v2312
    %v2314 = vand.u32 2147483647, %v650
    %vm2315 = vcmp.le.f32.partialorder %v2314, 0.7853982
    %vm2316 = vcmp.lt.s32.totalorder %v650, 0
    %v2317 = vand.u32 %v650, 2139095040
    %v2318 = vshrl.u32 %v2317, 23
    %v2319 = vsub.s32 %v2318, 127
    %v2320 = vand.u32 2147483647, %v650
    %v2321 = vand.u32 %v2320, 8388607
    %v2322 = vor.u32 %v2321, 8388608
    %v2323 = vsub.s32 0, %v2322
    %v2324 = vadd.s32 %v2319, 1
    %vm2325 = vcmp.gt.s32.totalorder %v2324, 0
    %v2326 = vsel %vm2325, %v2324, 0
    %v2327 = vshrl.u32 %v2326, 5
    %v2328 = vand.u32 %v2326, 31
    %v2329 = vsub.s32 32, %v2328
    %v2330 = vshrl.u32 683565275, %v2329
    %v2331 = vshll.u32 683565275, %v2328
    %v2332 = vshrl.u32 2475754826, %v2329
    %v2333 = vor.u32 %v2331, %v2332
    %v2334 = vshll.u32 2475754826, %v2328
    %v2335 = vshrl.u32 2131351028, %v2329
    %v2336 = vor.u32 %v2334, %v2335
    %v2337 = vshll.u32 2131351028, %v2328
    %v2338 = vshrl.u32 2102212464, %v2329
    %v2339 = vor.u32 %v2337, %v2338
    %v2340 = vshll.u32 2102212464, %v2328
    %v2341 = vshrl.u32 920167782, %v2329
    %v2342 = vor.u32 %v2340, %v2341
    %v2343 = vshll.u32 920167782, %v2328
    %v2344 = vshrl.u32 1326507024, %v2329
    %v2345 = vor.u32 %v2343, %v2344
    %vm2346 = vcmp.lt.s32.totalorder %v2327, 1
    %vm2347 = vcmp.lt.s32.totalorder %v2327, 2
    %vm2348 = vcmp.lt.s32.totalorder %v2327, 3
    %vm2349 = vcmp.lt.s32.totalorder %v2327, 4
    %v2350 = vsel %vm2346, %v2330, %v2333
    %v2351 = vsel %vm2349, %v2339, 2102212464
    %v2352 = vsel %vm2348, %v2336, %v2351
    %v2353 = vsel %vm2347, %v2350, %v2352
    %v2354 = vsel %vm2346, %v2333, %v2336
    %v2355 = vsel %vm2349, %v2342, 920167782
    %v2356 = vsel %vm2348, %v2339, %v2355
    %v2357 = vsel %vm2347, %v2354, %v2356
    %v2358 = vsel %vm2346, %v2336, %v2339
    %v2359 = vsel %vm2349, %v2345, 1326507024
    %v2360 = vsel %vm2348, %v2342, %v2359
    %v2361 = vsel %vm2347, %v2358, %v2360
    %v2362 = vshll.u32 %v2322, 8
    %v2363 = vmul.u32.u64.compose %v2362, %v2361
    %v2364 = vextract.low.u32 %v2363
    %v2365 = vextract.high.u32 %v2363
    %v2366 = vmul.u32.u64.compose %v2362, %v2357
    %v2367 = vextract.low.u32 %v2366
    %v2368 = vextract.high.u32 %v2366
    %v2369 = vmul.u32 %v2362, %v2353
    %v2370 = vadd.s32 %v2365, %v2367
    %vm2371 = vc.u32 %v2365, %v2367
    %v2372 = vadd.s32 %v2368, 1
    %v2373 = vsel %vm2371, %v2372, %v2368
    %v2374 = vadd.s32 %v2369, %v2373
    %v2375 = vadd.s32 %v2374, 536870912
    %v2376 = vshrl.u32 %v2375, 30
    %v2377 = vshll.u32 %v2376, 30
    %v2378 = vsub.s32 %v2374, %v2377
    %vm2379 = vcmp.lt.s32.totalorder %v2378, 0
    %v2380 = vsub.s32 0, %v2378
    %v2381 = vsel %vm2379, %v2380, %v2378
    %v2382 = vclz %v2381
    %v2383 = vsub.s32 %v2382, 2
    %vm2384 = vcmp.gt.s32.totalorder 0, %v2383
    %v2385 = vsel %vm2384, 0, %v2383
    %v2386 = vsub.s32 32, %v2385
    %v2387 = vshll.u32 %v2378, %v2385
    %v2388 = vshrl.u32 %v2370, %v2386
    %v2389 = vor.u32 %v2387, %v2388
    %v2390 = vsub.s32 4294967266, %v2385
    %v2391 = vadd.s32 %v2390, 127
    %v2392 = vshll.u32 %v2391, 23
    %v2393 = vor.u32 4788187, %v2392
    %v2394 = vand.u32 2147483647, %v2393
    %v2396 = vcvt.s32.f32 %v2389
    %v2397 = vmul.f32 %v2396, %v2394
    %v2398 = vxor.u32 %v2397, 2147483648
    %v2399 = vsel %vm2316, %v2398, %v2397
    %v2400 = vsub.s32 4, %v2376
    %v2401 = vsel %vm2316, %v2400, %v2376
    %v2402 = vsel %vm2315, %v650, %v2399
    %v2403 = vsel %vm2315, 0, %v2401
    %v2404 = vcosq.f32.pop %v2402
    %v2405 = vsinq.f32.pop %v2402
    %vm2406 = vweird.f32 %v650
    %v2407 = vadd.s32 %v2403, 3
    %v2408 = vand.u32 %v2407, 3
    %vm2409 = vcmp.lt.s32.totalorder %v2408, 2
    %vm2410 = vcmp.eq.s32.totalorder %v2408, 0
    %v2411 = vxor.u32 %v2405, 2147483648
    %v2412 = vsel %vm2410, %v2404, %v2411
    %vm2413 = vcmp.eq.s32.totalorder %v2408, 2
    %v2414 = vxor.u32 %v2404, 2147483648
    %v2415 = vsel %vm2413, %v2414, %v2405
    %v2416 = vsel %vm2409, %v2412, %v2415
    %v2417 = vsel %vm2406, nan, %v2416
    %v2418 = vand.u32 2147483647, %v651
    %vm2419 = vcmp.le.f32.partialorder %v2418, 0.7853982
    %vm2420 = vcmp.lt.s32.totalorder %v651, 0
    %v2421 = vand.u32 %v651, 2139095040
    %v2422 = vshrl.u32 %v2421, 23
    %v2423 = vsub.s32 %v2422, 127
    %v2424 = vand.u32 2147483647, %v651
    %v2425 = vand.u32 %v2424, 8388607
    %v2426 = vor.u32 %v2425, 8388608
    %v2427 = vsub.s32 0, %v2426
    %v2428 = vadd.s32 %v2423, 1
    %vm2429 = vcmp.gt.s32.totalorder %v2428, 0
    %v2430 = vsel %vm2429, %v2428, 0
    %v2431 = vshrl.u32 %v2430, 5
    %v2432 = vand.u32 %v2430, 31
    %v2433 = vsub.s32 32, %v2432
    %v2434 = vshrl.u32 683565275, %v2433
    %v2435 = vshll.u32 683565275, %v2432
    %v2436 = vshrl.u32 2475754826, %v2433
    %v2437 = vor.u32 %v2435, %v2436
    %v2438 = vshll.u32 2475754826, %v2432
    %v2439 = vshrl.u32 2131351028, %v2433
    %v2440 = vor.u32 %v2438, %v2439
    %v2441 = vshll.u32 2131351028, %v2432
    %v2442 = vshrl.u32 2102212464, %v2433
    %v2443 = vor.u32 %v2441, %v2442
    %v2444 = vshll.u32 2102212464, %v2432
    %v2445 = vshrl.u32 920167782, %v2433
    %v2446 = vor.u32 %v2444, %v2445
    %v2447 = vshll.u32 920167782, %v2432
    %v2448 = vshrl.u32 1326507024, %v2433
    %v2449 = vor.u32 %v2447, %v2448
    %vm2450 = vcmp.lt.s32.totalorder %v2431, 1
    %vm2451 = vcmp.lt.s32.totalorder %v2431, 2
    %vm2452 = vcmp.lt.s32.totalorder %v2431, 3
    %vm2453 = vcmp.lt.s32.totalorder %v2431, 4
    %v2454 = vsel %vm2450, %v2434, %v2437
    %v2455 = vsel %vm2453, %v2443, 2102212464
    %v2456 = vsel %vm2452, %v2440, %v2455
    %v2457 = vsel %vm2451, %v2454, %v2456
    %v2458 = vsel %vm2450, %v2437, %v2440
    %v2459 = vsel %vm2453, %v2446, 920167782
    %v2460 = vsel %vm2452, %v2443, %v2459
    %v2461 = vsel %vm2451, %v2458, %v2460
    %v2462 = vsel %vm2450, %v2440, %v2443
    %v2463 = vsel %vm2453, %v2449, 1326507024
    %v2464 = vsel %vm2452, %v2446, %v2463
    %v2465 = vsel %vm2451, %v2462, %v2464
    %v2466 = vshll.u32 %v2426, 8
    %v2467 = vmul.u32.u64.compose %v2466, %v2465
    %v2468 = vextract.low.u32 %v2467
    %v2469 = vextract.high.u32 %v2467
    %v2470 = vmul.u32.u64.compose %v2466, %v2461
    %v2471 = vextract.low.u32 %v2470
    %v2472 = vextract.high.u32 %v2470
    %v2473 = vmul.u32 %v2466, %v2457
    %v2474 = vadd.s32 %v2469, %v2471
    %vm2475 = vc.u32 %v2469, %v2471
    %v2476 = vadd.s32 %v2472, 1
    %v2477 = vsel %vm2475, %v2476, %v2472
    %v2478 = vadd.s32 %v2473, %v2477
    %v2479 = vadd.s32 %v2478, 536870912
    %v2480 = vshrl.u32 %v2479, 30
    %v2481 = vshll.u32 %v2480, 30
    %v2482 = vsub.s32 %v2478, %v2481
    %vm2483 = vcmp.lt.s32.totalorder %v2482, 0
    %v2484 = vsub.s32 0, %v2482
    %v2485 = vsel %vm2483, %v2484, %v2482
    %v2486 = vclz %v2485
    %v2487 = vsub.s32 %v2486, 2
    %vm2488 = vcmp.gt.s32.totalorder 0, %v2487
    %v2489 = vsel %vm2488, 0, %v2487
    %v2490 = vsub.s32 32, %v2489
    %v2491 = vshll.u32 %v2482, %v2489
    %v2492 = vshrl.u32 %v2474, %v2490
    %v2493 = vor.u32 %v2491, %v2492
    %v2494 = vsub.s32 4294967266, %v2489
    %v2495 = vadd.s32 %v2494, 127
    %v2496 = vshll.u32 %v2495, 23
    %v2497 = vor.u32 4788187, %v2496
    %v2498 = vand.u32 2147483647, %v2497
    %v2500 = vcvt.s32.f32 %v2493
    %v2501 = vmul.f32 %v2500, %v2498
    %v2502 = vxor.u32 %v2501, 2147483648
    %v2503 = vsel %vm2420, %v2502, %v2501
    %v2504 = vsub.s32 4, %v2480
    %v2505 = vsel %vm2420, %v2504, %v2480
    %v2506 = vsel %vm2419, %v651, %v2503
    %v2507 = vsel %vm2419, 0, %v2505
    %v2508 = vcosq.f32.pop %v2506
    %v2509 = vsinq.f32.pop %v2506
    %vm2510 = vweird.f32 %v651
    %v2511 = vadd.s32 %v2507, 3
    %v2512 = vand.u32 %v2511, 3
    %vm2513 = vcmp.lt.s32.totalorder %v2512, 2
    %vm2514 = vcmp.eq.s32.totalorder %v2512, 0
    %v2515 = vxor.u32 %v2509, 2147483648
    %v2516 = vsel %vm2514, %v2508, %v2515
    %vm2517 = vcmp.eq.s32.totalorder %v2512, 2
    %v2518 = vxor.u32 %v2508, 2147483648
    %v2519 = vsel %vm2517, %v2518, %v2509
    %v2520 = vsel %vm2513, %v2516, %v2519
    %v2521 = vsel %vm2510, nan, %v2520
    %v2522 = vand.u32 2147483647, %v652
    %vm2523 = vcmp.le.f32.partialorder %v2522, 0.7853982
    %vm2524 = vcmp.lt.s32.totalorder %v652, 0
    %v2525 = vand.u32 %v652, 2139095040
    %v2526 = vshrl.u32 %v2525, 23
    %v2527 = vsub.s32 %v2526, 127
    %v2528 = vand.u32 2147483647, %v652
    %v2529 = vand.u32 %v2528, 8388607
    %v2530 = vor.u32 %v2529, 8388608
    %v2531 = vsub.s32 0, %v2530
    %v2532 = vadd.s32 %v2527, 1
    %vm2533 = vcmp.gt.s32.totalorder %v2532, 0
    %v2534 = vsel %vm2533, %v2532, 0
    %v2535 = vshrl.u32 %v2534, 5
    %v2536 = vand.u32 %v2534, 31
    %v2537 = vsub.s32 32, %v2536
    %v2538 = vshrl.u32 683565275, %v2537
    %v2539 = vshll.u32 683565275, %v2536
    %v2540 = vshrl.u32 2475754826, %v2537
    %v2541 = vor.u32 %v2539, %v2540
    %v2542 = vshll.u32 2475754826, %v2536
    %v2543 = vshrl.u32 2131351028, %v2537
    %v2544 = vor.u32 %v2542, %v2543
    %v2545 = vshll.u32 2131351028, %v2536
    %v2546 = vshrl.u32 2102212464, %v2537
    %v2547 = vor.u32 %v2545, %v2546
    %v2548 = vshll.u32 2102212464, %v2536
    %v2549 = vshrl.u32 920167782, %v2537
    %v2550 = vor.u32 %v2548, %v2549
    %v2551 = vshll.u32 920167782, %v2536
    %v2552 = vshrl.u32 1326507024, %v2537
    %v2553 = vor.u32 %v2551, %v2552
    %vm2554 = vcmp.lt.s32.totalorder %v2535, 1
    %vm2555 = vcmp.lt.s32.totalorder %v2535, 2
    %vm2556 = vcmp.lt.s32.totalorder %v2535, 3
    %vm2557 = vcmp.lt.s32.totalorder %v2535, 4
    %v2558 = vsel %vm2554, %v2538, %v2541
    %v2559 = vsel %vm2557, %v2547, 2102212464
    %v2560 = vsel %vm2556, %v2544, %v2559
    %v2561 = vsel %vm2555, %v2558, %v2560
    %v2562 = vsel %vm2554, %v2541, %v2544
    %v2563 = vsel %vm2557, %v2550, 920167782
    %v2564 = vsel %vm2556, %v2547, %v2563
    %v2565 = vsel %vm2555, %v2562, %v2564
    %v2566 = vsel %vm2554, %v2544, %v2547
    %v2567 = vsel %vm2557, %v2553, 1326507024
    %v2568 = vsel %vm2556, %v2550, %v2567
    %v2569 = vsel %vm2555, %v2566, %v2568
    %v2570 = vshll.u32 %v2530, 8
    %v2571 = vmul.u32.u64.compose %v2570, %v2569
    %v2572 = vextract.low.u32 %v2571
    %v2573 = vextract.high.u32 %v2571
    %v2574 = vmul.u32.u64.compose %v2570, %v2565
    %v2575 = vextract.low.u32 %v2574
    %v2576 = vextract.high.u32 %v2574
    %v2577 = vmul.u32 %v2570, %v2561
    %v2578 = vadd.s32 %v2573, %v2575
    %vm2579 = vc.u32 %v2573, %v2575
    %v2580 = vadd.s32 %v2576, 1
    %v2581 = vsel %vm2579, %v2580, %v2576
    %v2582 = vadd.s32 %v2577, %v2581
    %v2583 = vadd.s32 %v2582, 536870912
    %v2584 = vshrl.u32 %v2583, 30
    %v2585 = vshll.u32 %v2584, 30
    %v2586 = vsub.s32 %v2582, %v2585
    %vm2587 = vcmp.lt.s32.totalorder %v2586, 0
    %v2588 = vsub.s32 0, %v2586
    %v2589 = vsel %vm2587, %v2588, %v2586
    %v2590 = vclz %v2589
    %v2591 = vsub.s32 %v2590, 2
    %vm2592 = vcmp.gt.s32.totalorder 0, %v2591
    %v2593 = vsel %vm2592, 0, %v2591
    %v2594 = vsub.s32 32, %v2593
    %v2595 = vshll.u32 %v2586, %v2593
    %v2596 = vshrl.u32 %v2578, %v2594
    %v2597 = vor.u32 %v2595, %v2596
    %v2598 = vsub.s32 4294967266, %v2593
    %v2599 = vadd.s32 %v2598, 127
    %v2600 = vshll.u32 %v2599, 23
    %v2601 = vor.u32 4788187, %v2600
    %v2602 = vand.u32 2147483647, %v2601
    %v2604 = vcvt.s32.f32 %v2597
    %v2605 = vmul.f32 %v2604, %v2602
    %v2606 = vxor.u32 %v2605, 2147483648
    %v2607 = vsel %vm2524, %v2606, %v2605
    %v2608 = vsub.s32 4, %v2584
    %v2609 = vsel %vm2524, %v2608, %v2584
    %v2610 = vsel %vm2523, %v652, %v2607
    %v2611 = vsel %vm2523, 0, %v2609
    %v2612 = vcosq.f32.pop %v2610
    %v2613 = vsinq.f32.pop %v2610
    %vm2614 = vweird.f32 %v652
    %v2615 = vadd.s32 %v2611, 3
    %v2616 = vand.u32 %v2615, 3
    %vm2617 = vcmp.lt.s32.totalorder %v2616, 2
    %vm2618 = vcmp.eq.s32.totalorder %v2616, 0
    %v2619 = vxor.u32 %v2613, 2147483648
    %v2620 = vsel %vm2618, %v2612, %v2619
    %vm2621 = vcmp.eq.s32.totalorder %v2616, 2
    %v2622 = vxor.u32 %v2612, 2147483648
    %v2623 = vsel %vm2621, %v2622, %v2613
    %v2624 = vsel %vm2617, %v2620, %v2623
    %v2625 = vsel %vm2614, nan, %v2624
    %v2626 = vand.u32 2147483647, %v653
    %vm2627 = vcmp.le.f32.partialorder %v2626, 0.7853982
    %vm2628 = vcmp.lt.s32.totalorder %v653, 0
    %v2629 = vand.u32 %v653, 2139095040
    %v2630 = vshrl.u32 %v2629, 23
    %v2631 = vsub.s32 %v2630, 127
    %v2632 = vand.u32 2147483647, %v653
    %v2633 = vand.u32 %v2632, 8388607
    %v2634 = vor.u32 %v2633, 8388608
    %v2635 = vsub.s32 0, %v2634
    %v2636 = vadd.s32 %v2631, 1
    %vm2637 = vcmp.gt.s32.totalorder %v2636, 0
    %v2638 = vsel %vm2637, %v2636, 0
    %v2639 = vshrl.u32 %v2638, 5
    %v2640 = vand.u32 %v2638, 31
    %v2641 = vsub.s32 32, %v2640
    %v2642 = vshrl.u32 683565275, %v2641
    %v2643 = vshll.u32 683565275, %v2640
    %v2644 = vshrl.u32 2475754826, %v2641
    %v2645 = vor.u32 %v2643, %v2644
    %v2646 = vshll.u32 2475754826, %v2640
    %v2647 = vshrl.u32 2131351028, %v2641
    %v2648 = vor.u32 %v2646, %v2647
    %v2649 = vshll.u32 2131351028, %v2640
    %v2650 = vshrl.u32 2102212464, %v2641
    %v2651 = vor.u32 %v2649, %v2650
    %v2652 = vshll.u32 2102212464, %v2640
    %v2653 = vshrl.u32 920167782, %v2641
    %v2654 = vor.u32 %v2652, %v2653
    %v2655 = vshll.u32 920167782, %v2640
    %v2656 = vshrl.u32 1326507024, %v2641
    %v2657 = vor.u32 %v2655, %v2656
    %vm2658 = vcmp.lt.s32.totalorder %v2639, 1
    %vm2659 = vcmp.lt.s32.totalorder %v2639, 2
    %vm2660 = vcmp.lt.s32.totalorder %v2639, 3
    %vm2661 = vcmp.lt.s32.totalorder %v2639, 4
    %v2662 = vsel %vm2658, %v2642, %v2645
    %v2663 = vsel %vm2661, %v2651, 2102212464
    %v2664 = vsel %vm2660, %v2648, %v2663
    %v2665 = vsel %vm2659, %v2662, %v2664
    %v2666 = vsel %vm2658, %v2645, %v2648
    %v2667 = vsel %vm2661, %v2654, 920167782
    %v2668 = vsel %vm2660, %v2651, %v2667
    %v2669 = vsel %vm2659, %v2666, %v2668
    %v2670 = vsel %vm2658, %v2648, %v2651
    %v2671 = vsel %vm2661, %v2657, 1326507024
    %v2672 = vsel %vm2660, %v2654, %v2671
    %v2673 = vsel %vm2659, %v2670, %v2672
    %v2674 = vshll.u32 %v2634, 8
    %v2675 = vmul.u32.u64.compose %v2674, %v2673
    %v2676 = vextract.low.u32 %v2675
    %v2677 = vextract.high.u32 %v2675
    %v2678 = vmul.u32.u64.compose %v2674, %v2669
    %v2679 = vextract.low.u32 %v2678
    %v2680 = vextract.high.u32 %v2678
    %v2681 = vmul.u32 %v2674, %v2665
    %v2682 = vadd.s32 %v2677, %v2679
    %vm2683 = vc.u32 %v2677, %v2679
    %v2684 = vadd.s32 %v2680, 1
    %v2685 = vsel %vm2683, %v2684, %v2680
    %v2686 = vadd.s32 %v2681, %v2685
    %v2687 = vadd.s32 %v2686, 536870912
    %v2688 = vshrl.u32 %v2687, 30
    %v2689 = vshll.u32 %v2688, 30
    %v2690 = vsub.s32 %v2686, %v2689
    %vm2691 = vcmp.lt.s32.totalorder %v2690, 0
    %v2692 = vsub.s32 0, %v2690
    %v2693 = vsel %vm2691, %v2692, %v2690
    %v2694 = vclz %v2693
    %v2695 = vsub.s32 %v2694, 2
    %vm2696 = vcmp.gt.s32.totalorder 0, %v2695
    %v2697 = vsel %vm2696, 0, %v2695
    %v2698 = vsub.s32 32, %v2697
    %v2699 = vshll.u32 %v2690, %v2697
    %v2700 = vshrl.u32 %v2682, %v2698
    %v2701 = vor.u32 %v2699, %v2700
    %v2702 = vsub.s32 4294967266, %v2697
    %v2703 = vadd.s32 %v2702, 127
    %v2704 = vshll.u32 %v2703, 23
    %v2705 = vor.u32 4788187, %v2704
    %v2706 = vand.u32 2147483647, %v2705
    %v2708 = vcvt.s32.f32 %v2701
    %v2709 = vmul.f32 %v2708, %v2706
    %v2710 = vxor.u32 %v2709, 2147483648
    %v2711 = vsel %vm2628, %v2710, %v2709
    %v2712 = vsub.s32 4, %v2688
    %v2713 = vsel %vm2628, %v2712, %v2688
    %v2714 = vsel %vm2627, %v653, %v2711
    %v2715 = vsel %vm2627, 0, %v2713
    %v2716 = vcosq.f32.pop %v2714
    %v2717 = vsinq.f32.pop %v2714
    %vm2718 = vweird.f32 %v653
    %v2719 = vadd.s32 %v2715, 3
    %v2720 = vand.u32 %v2719, 3
    %vm2721 = vcmp.lt.s32.totalorder %v2720, 2
    %vm2722 = vcmp.eq.s32.totalorder %v2720, 0
    %v2723 = vxor.u32 %v2717, 2147483648
    %v2724 = vsel %vm2722, %v2716, %v2723
    %vm2725 = vcmp.eq.s32.totalorder %v2720, 2
    %v2726 = vxor.u32 %v2716, 2147483648
    %v2727 = vsel %vm2725, %v2726, %v2717
    %v2728 = vsel %vm2721, %v2724, %v2727
    %v2729 = vsel %vm2718, nan, %v2728
    %v2730 = vand.u32 2147483647, %v654
    %vm2731 = vcmp.le.f32.partialorder %v2730, 0.7853982
    %vm2732 = vcmp.lt.s32.totalorder %v654, 0
    %v2733 = vand.u32 %v654, 2139095040
    %v2734 = vshrl.u32 %v2733, 23
    %v2735 = vsub.s32 %v2734, 127
    %v2736 = vand.u32 2147483647, %v654
    %v2737 = vand.u32 %v2736, 8388607
    %v2738 = vor.u32 %v2737, 8388608
    %v2739 = vsub.s32 0, %v2738
    %v2740 = vadd.s32 %v2735, 1
    %vm2741 = vcmp.gt.s32.totalorder %v2740, 0
    %v2742 = vsel %vm2741, %v2740, 0
    %v2743 = vshrl.u32 %v2742, 5
    %v2744 = vand.u32 %v2742, 31
    %v2745 = vsub.s32 32, %v2744
    %v2746 = vshrl.u32 683565275, %v2745
    %v2747 = vshll.u32 683565275, %v2744
    %v2748 = vshrl.u32 2475754826, %v2745
    %v2749 = vor.u32 %v2747, %v2748
    %v2750 = vshll.u32 2475754826, %v2744
    %v2751 = vshrl.u32 2131351028, %v2745
    %v2752 = vor.u32 %v2750, %v2751
    %v2753 = vshll.u32 2131351028, %v2744
    %v2754 = vshrl.u32 2102212464, %v2745
    %v2755 = vor.u32 %v2753, %v2754
    %v2756 = vshll.u32 2102212464, %v2744
    %v2757 = vshrl.u32 920167782, %v2745
    %v2758 = vor.u32 %v2756, %v2757
    %v2759 = vshll.u32 920167782, %v2744
    %v2760 = vshrl.u32 1326507024, %v2745
    %v2761 = vor.u32 %v2759, %v2760
    %vm2762 = vcmp.lt.s32.totalorder %v2743, 1
    %vm2763 = vcmp.lt.s32.totalorder %v2743, 2
    %vm2764 = vcmp.lt.s32.totalorder %v2743, 3
    %vm2765 = vcmp.lt.s32.totalorder %v2743, 4
    %v2766 = vsel %vm2762, %v2746, %v2749
    %v2767 = vsel %vm2765, %v2755, 2102212464
    %v2768 = vsel %vm2764, %v2752, %v2767
    %v2769 = vsel %vm2763, %v2766, %v2768
    %v2770 = vsel %vm2762, %v2749, %v2752
    %v2771 = vsel %vm2765, %v2758, 920167782
    %v2772 = vsel %vm2764, %v2755, %v2771
    %v2773 = vsel %vm2763, %v2770, %v2772
    %v2774 = vsel %vm2762, %v2752, %v2755
    %v2775 = vsel %vm2765, %v2761, 1326507024
    %v2776 = vsel %vm2764, %v2758, %v2775
    %v2777 = vsel %vm2763, %v2774, %v2776
    %v2778 = vshll.u32 %v2738, 8
    %v2779 = vmul.u32.u64.compose %v2778, %v2777
    %v2780 = vextract.low.u32 %v2779
    %v2781 = vextract.high.u32 %v2779
    %v2782 = vmul.u32.u64.compose %v2778, %v2773
    %v2783 = vextract.low.u32 %v2782
    %v2784 = vextract.high.u32 %v2782
    %v2785 = vmul.u32 %v2778, %v2769
    %v2786 = vadd.s32 %v2781, %v2783
    %vm2787 = vc.u32 %v2781, %v2783
    %v2788 = vadd.s32 %v2784, 1
    %v2789 = vsel %vm2787, %v2788, %v2784
    %v2790 = vadd.s32 %v2785, %v2789
    %v2791 = vadd.s32 %v2790, 536870912
    %v2792 = vshrl.u32 %v2791, 30
    %v2793 = vshll.u32 %v2792, 30
    %v2794 = vsub.s32 %v2790, %v2793
    %vm2795 = vcmp.lt.s32.totalorder %v2794, 0
    %v2796 = vsub.s32 0, %v2794
    %v2797 = vsel %vm2795, %v2796, %v2794
    %v2798 = vclz %v2797
    %v2799 = vsub.s32 %v2798, 2
    %vm2800 = vcmp.gt.s32.totalorder 0, %v2799
    %v2801 = vsel %vm2800, 0, %v2799
    %v2802 = vsub.s32 32, %v2801
    %v2803 = vshll.u32 %v2794, %v2801
    %v2804 = vshrl.u32 %v2786, %v2802
    %v2805 = vor.u32 %v2803, %v2804
    %v2806 = vsub.s32 4294967266, %v2801
    %v2807 = vadd.s32 %v2806, 127
    %v2808 = vshll.u32 %v2807, 23
    %v2809 = vor.u32 4788187, %v2808
    %v2810 = vand.u32 2147483647, %v2809
    %v2812 = vcvt.s32.f32 %v2805
    %v2813 = vmul.f32 %v2812, %v2810
    %v2814 = vxor.u32 %v2813, 2147483648
    %v2815 = vsel %vm2732, %v2814, %v2813
    %v2816 = vsub.s32 4, %v2792
    %v2817 = vsel %vm2732, %v2816, %v2792
    %v2818 = vsel %vm2731, %v654, %v2815
    %v2819 = vsel %vm2731, 0, %v2817
    %v2820 = vcosq.f32.pop %v2818
    %v2821 = vsinq.f32.pop %v2818
    %vm2822 = vweird.f32 %v654
    %v2823 = vadd.s32 %v2819, 3
    %v2824 = vand.u32 %v2823, 3
    %vm2825 = vcmp.lt.s32.totalorder %v2824, 2
    %vm2826 = vcmp.eq.s32.totalorder %v2824, 0
    %v2827 = vxor.u32 %v2821, 2147483648
    %v2828 = vsel %vm2826, %v2820, %v2827
    %vm2829 = vcmp.eq.s32.totalorder %v2824, 2
    %v2830 = vxor.u32 %v2820, 2147483648
    %v2831 = vsel %vm2829, %v2830, %v2821
    %v2832 = vsel %vm2825, %v2828, %v2831
    %v2833 = vsel %vm2822, nan, %v2832
    %v2834 = vand.u32 2147483647, %v655
    %vm2835 = vcmp.le.f32.partialorder %v2834, 0.7853982
    %vm2836 = vcmp.lt.s32.totalorder %v655, 0
    %v2837 = vand.u32 %v655, 2139095040
    %v2838 = vshrl.u32 %v2837, 23
    %v2839 = vsub.s32 %v2838, 127
    %v2840 = vand.u32 2147483647, %v655
    %v2841 = vand.u32 %v2840, 8388607
    %v2842 = vor.u32 %v2841, 8388608
    %v2843 = vsub.s32 0, %v2842
    %v2844 = vadd.s32 %v2839, 1
    %vm2845 = vcmp.gt.s32.totalorder %v2844, 0
    %v2846 = vsel %vm2845, %v2844, 0
    %v2847 = vshrl.u32 %v2846, 5
    %v2848 = vand.u32 %v2846, 31
    %v2849 = vsub.s32 32, %v2848
    %v2850 = vshrl.u32 683565275, %v2849
    %v2851 = vshll.u32 683565275, %v2848
    %v2852 = vshrl.u32 2475754826, %v2849
    %v2853 = vor.u32 %v2851, %v2852
    %v2854 = vshll.u32 2475754826, %v2848
    %v2855 = vshrl.u32 2131351028, %v2849
    %v2856 = vor.u32 %v2854, %v2855
    %v2857 = vshll.u32 2131351028, %v2848
    %v2858 = vshrl.u32 2102212464, %v2849
    %v2859 = vor.u32 %v2857, %v2858
    %v2860 = vshll.u32 2102212464, %v2848
    %v2861 = vshrl.u32 920167782, %v2849
    %v2862 = vor.u32 %v2860, %v2861
    %v2863 = vshll.u32 920167782, %v2848
    %v2864 = vshrl.u32 1326507024, %v2849
    %v2865 = vor.u32 %v2863, %v2864
    %vm2866 = vcmp.lt.s32.totalorder %v2847, 1
    %vm2867 = vcmp.lt.s32.totalorder %v2847, 2
    %vm2868 = vcmp.lt.s32.totalorder %v2847, 3
    %vm2869 = vcmp.lt.s32.totalorder %v2847, 4
    %v2870 = vsel %vm2866, %v2850, %v2853
    %v2871 = vsel %vm2869, %v2859, 2102212464
    %v2872 = vsel %vm2868, %v2856, %v2871
    %v2873 = vsel %vm2867, %v2870, %v2872
    %v2874 = vsel %vm2866, %v2853, %v2856
    %v2875 = vsel %vm2869, %v2862, 920167782
    %v2876 = vsel %vm2868, %v2859, %v2875
    %v2877 = vsel %vm2867, %v2874, %v2876
    %v2878 = vsel %vm2866, %v2856, %v2859
    %v2879 = vsel %vm2869, %v2865, 1326507024
    %v2880 = vsel %vm2868, %v2862, %v2879
    %v2881 = vsel %vm2867, %v2878, %v2880
    %v2882 = vshll.u32 %v2842, 8
    %v2883 = vmul.u32.u64.compose %v2882, %v2881
    %v2884 = vextract.low.u32 %v2883
    %v2885 = vextract.high.u32 %v2883
    %v2886 = vmul.u32.u64.compose %v2882, %v2877
    %v2887 = vextract.low.u32 %v2886
    %v2888 = vextract.high.u32 %v2886
    %v2889 = vmul.u32 %v2882, %v2873
    %v2890 = vadd.s32 %v2885, %v2887
    %vm2891 = vc.u32 %v2885, %v2887
    %v2892 = vadd.s32 %v2888, 1
    %v2893 = vsel %vm2891, %v2892, %v2888
    %v2894 = vadd.s32 %v2889, %v2893
    %v2895 = vadd.s32 %v2894, 536870912
    %v2896 = vshrl.u32 %v2895, 30
    %v2897 = vshll.u32 %v2896, 30
    %v2898 = vsub.s32 %v2894, %v2897
    %vm2899 = vcmp.lt.s32.totalorder %v2898, 0
    %v2900 = vsub.s32 0, %v2898
    %v2901 = vsel %vm2899, %v2900, %v2898
    %v2902 = vclz %v2901
    %v2903 = vsub.s32 %v2902, 2
    %vm2904 = vcmp.gt.s32.totalorder 0, %v2903
    %v2905 = vsel %vm2904, 0, %v2903
    %v2906 = vsub.s32 32, %v2905
    %v2907 = vshll.u32 %v2898, %v2905
    %v2908 = vshrl.u32 %v2890, %v2906
    %v2909 = vor.u32 %v2907, %v2908
    %v2910 = vsub.s32 4294967266, %v2905
    %v2911 = vadd.s32 %v2910, 127
    %v2912 = vshll.u32 %v2911, 23
    %v2913 = vor.u32 4788187, %v2912
    %v2914 = vand.u32 2147483647, %v2913
    %v2916 = vcvt.s32.f32 %v2909
    %v2917 = vmul.f32 %v2916, %v2914
    %v2918 = vxor.u32 %v2917, 2147483648
    %v2919 = vsel %vm2836, %v2918, %v2917
    %v2920 = vsub.s32 4, %v2896
    %v2921 = vsel %vm2836, %v2920, %v2896
    %v2922 = vsel %vm2835, %v655, %v2919
    %v2923 = vsel %vm2835, 0, %v2921
    %v2924 = vcosq.f32.pop %v2922
    %v2925 = vsinq.f32.pop %v2922
    %vm2926 = vweird.f32 %v655
    %v2927 = vadd.s32 %v2923, 3
    %v2928 = vand.u32 %v2927, 3
    %vm2929 = vcmp.lt.s32.totalorder %v2928, 2
    %vm2930 = vcmp.eq.s32.totalorder %v2928, 0
    %v2931 = vxor.u32 %v2925, 2147483648
    %v2932 = vsel %vm2930, %v2924, %v2931
    %vm2933 = vcmp.eq.s32.totalorder %v2928, 2
    %v2934 = vxor.u32 %v2924, 2147483648
    %v2935 = vsel %vm2933, %v2934, %v2925
    %v2936 = vsel %vm2929, %v2932, %v2935
    %v2937 = vsel %vm2926, nan, %v2936
    %v2938 = vand.u32 2147483647, %v656
    %vm2939 = vcmp.le.f32.partialorder %v2938, 0.7853982
    %vm2940 = vcmp.lt.s32.totalorder %v656, 0
    %v2941 = vand.u32 %v656, 2139095040
    %v2942 = vshrl.u32 %v2941, 23
    %v2943 = vsub.s32 %v2942, 127
    %v2944 = vand.u32 2147483647, %v656
    %v2945 = vand.u32 %v2944, 8388607
    %v2946 = vor.u32 %v2945, 8388608
    %v2947 = vsub.s32 0, %v2946
    %v2948 = vadd.s32 %v2943, 1
    %vm2949 = vcmp.gt.s32.totalorder %v2948, 0
    %v2950 = vsel %vm2949, %v2948, 0
    %v2951 = vshrl.u32 %v2950, 5
    %v2952 = vand.u32 %v2950, 31
    %v2953 = vsub.s32 32, %v2952
    %v2954 = vshrl.u32 683565275, %v2953
    %v2955 = vshll.u32 683565275, %v2952
    %v2956 = vshrl.u32 2475754826, %v2953
    %v2957 = vor.u32 %v2955, %v2956
    %v2958 = vshll.u32 2475754826, %v2952
    %v2959 = vshrl.u32 2131351028, %v2953
    %v2960 = vor.u32 %v2958, %v2959
    %v2961 = vshll.u32 2131351028, %v2952
    %v2962 = vshrl.u32 2102212464, %v2953
    %v2963 = vor.u32 %v2961, %v2962
    %v2964 = vshll.u32 2102212464, %v2952
    %v2965 = vshrl.u32 920167782, %v2953
    %v2966 = vor.u32 %v2964, %v2965
    %v2967 = vshll.u32 920167782, %v2952
    %v2968 = vshrl.u32 1326507024, %v2953
    %v2969 = vor.u32 %v2967, %v2968
    %vm2970 = vcmp.lt.s32.totalorder %v2951, 1
    %vm2971 = vcmp.lt.s32.totalorder %v2951, 2
    %vm2972 = vcmp.lt.s32.totalorder %v2951, 3
    %vm2973 = vcmp.lt.s32.totalorder %v2951, 4
    %v2974 = vsel %vm2970, %v2954, %v2957
    %v2975 = vsel %vm2973, %v2963, 2102212464
    %v2976 = vsel %vm2972, %v2960, %v2975
    %v2977 = vsel %vm2971, %v2974, %v2976
    %v2978 = vsel %vm2970, %v2957, %v2960
    %v2979 = vsel %vm2973, %v2966, 920167782
    %v2980 = vsel %vm2972, %v2963, %v2979
    %v2981 = vsel %vm2971, %v2978, %v2980
    %v2982 = vsel %vm2970, %v2960, %v2963
    %v2983 = vsel %vm2973, %v2969, 1326507024
    %v2984 = vsel %vm2972, %v2966, %v2983
    %v2985 = vsel %vm2971, %v2982, %v2984
    %v2986 = vshll.u32 %v2946, 8
    %v2987 = vmul.u32.u64.compose %v2986, %v2985
    %v2988 = vextract.low.u32 %v2987
    %v2989 = vextract.high.u32 %v2987
    %v2990 = vmul.u32.u64.compose %v2986, %v2981
    %v2991 = vextract.low.u32 %v2990
    %v2992 = vextract.high.u32 %v2990
    %v2993 = vmul.u32 %v2986, %v2977
    %v2994 = vadd.s32 %v2989, %v2991
    %vm2995 = vc.u32 %v2989, %v2991
    %v2996 = vadd.s32 %v2992, 1
    %v2997 = vsel %vm2995, %v2996, %v2992
    %v2998 = vadd.s32 %v2993, %v2997
    %v2999 = vadd.s32 %v2998, 536870912
    %v3000 = vshrl.u32 %v2999, 30
    %v3001 = vshll.u32 %v3000, 30
    %v3002 = vsub.s32 %v2998, %v3001
    %vm3003 = vcmp.lt.s32.totalorder %v3002, 0
    %v3004 = vsub.s32 0, %v3002
    %v3005 = vsel %vm3003, %v3004, %v3002
    %v3006 = vclz %v3005
    %v3007 = vsub.s32 %v3006, 2
    %vm3008 = vcmp.gt.s32.totalorder 0, %v3007
    %v3009 = vsel %vm3008, 0, %v3007
    %v3010 = vsub.s32 32, %v3009
    %v3011 = vshll.u32 %v3002, %v3009
    %v3012 = vshrl.u32 %v2994, %v3010
    %v3013 = vor.u32 %v3011, %v3012
    %v3014 = vsub.s32 4294967266, %v3009
    %v3015 = vadd.s32 %v3014, 127
    %v3016 = vshll.u32 %v3015, 23
    %v3017 = vor.u32 4788187, %v3016
    %v3018 = vand.u32 2147483647, %v3017
    %v3020 = vcvt.s32.f32 %v3013
    %v3021 = vmul.f32 %v3020, %v3018
    %v3022 = vxor.u32 %v3021, 2147483648
    %v3023 = vsel %vm2940, %v3022, %v3021
    %v3024 = vsub.s32 4, %v3000
    %v3025 = vsel %vm2940, %v3024, %v3000
    %v3026 = vsel %vm2939, %v656, %v3023
    %v3027 = vsel %vm2939, 0, %v3025
    %v3028 = vcosq.f32.pop %v3026
    %v3029 = vsinq.f32.pop %v3026
    %vm3030 = vweird.f32 %v656
    %v3031 = vadd.s32 %v3027, 3
    %v3032 = vand.u32 %v3031, 3
    %vm3033 = vcmp.lt.s32.totalorder %v3032, 2
    %vm3034 = vcmp.eq.s32.totalorder %v3032, 0
    %v3035 = vxor.u32 %v3029, 2147483648
    %v3036 = vsel %vm3034, %v3028, %v3035
    %vm3037 = vcmp.eq.s32.totalorder %v3032, 2
    %v3038 = vxor.u32 %v3028, 2147483648
    %v3039 = vsel %vm3037, %v3038, %v3029
    %v3040 = vsel %vm3033, %v3036, %v3039
    %v3041 = vsel %vm3030, nan, %v3040
    %v3042 = vand.u32 2147483647, %v657
    %vm3043 = vcmp.le.f32.partialorder %v3042, 0.7853982
    %vm3044 = vcmp.lt.s32.totalorder %v657, 0
    %v3045 = vand.u32 %v657, 2139095040
    %v3046 = vshrl.u32 %v3045, 23
    %v3047 = vsub.s32 %v3046, 127
    %v3048 = vand.u32 2147483647, %v657
    %v3049 = vand.u32 %v3048, 8388607
    %v3050 = vor.u32 %v3049, 8388608
    %v3051 = vsub.s32 0, %v3050
    %v3052 = vadd.s32 %v3047, 1
    %vm3053 = vcmp.gt.s32.totalorder %v3052, 0
    %v3054 = vsel %vm3053, %v3052, 0
    %v3055 = vshrl.u32 %v3054, 5
    %v3056 = vand.u32 %v3054, 31
    %v3057 = vsub.s32 32, %v3056
    %v3058 = vshrl.u32 683565275, %v3057
    %v3059 = vshll.u32 683565275, %v3056
    %v3060 = vshrl.u32 2475754826, %v3057
    %v3061 = vor.u32 %v3059, %v3060
    %v3062 = vshll.u32 2475754826, %v3056
    %v3063 = vshrl.u32 2131351028, %v3057
    %v3064 = vor.u32 %v3062, %v3063
    %v3065 = vshll.u32 2131351028, %v3056
    %v3066 = vshrl.u32 2102212464, %v3057
    %v3067 = vor.u32 %v3065, %v3066
    %v3068 = vshll.u32 2102212464, %v3056
    %v3069 = vshrl.u32 920167782, %v3057
    %v3070 = vor.u32 %v3068, %v3069
    %v3071 = vshll.u32 920167782, %v3056
    %v3072 = vshrl.u32 1326507024, %v3057
    %v3073 = vor.u32 %v3071, %v3072
    %vm3074 = vcmp.lt.s32.totalorder %v3055, 1
    %vm3075 = vcmp.lt.s32.totalorder %v3055, 2
    %vm3076 = vcmp.lt.s32.totalorder %v3055, 3
    %vm3077 = vcmp.lt.s32.totalorder %v3055, 4
    %v3078 = vsel %vm3074, %v3058, %v3061
    %v3079 = vsel %vm3077, %v3067, 2102212464
    %v3080 = vsel %vm3076, %v3064, %v3079
    %v3081 = vsel %vm3075, %v3078, %v3080
    %v3082 = vsel %vm3074, %v3061, %v3064
    %v3083 = vsel %vm3077, %v3070, 920167782
    %v3084 = vsel %vm3076, %v3067, %v3083
    %v3085 = vsel %vm3075, %v3082, %v3084
    %v3086 = vsel %vm3074, %v3064, %v3067
    %v3087 = vsel %vm3077, %v3073, 1326507024
    %v3088 = vsel %vm3076, %v3070, %v3087
    %v3089 = vsel %vm3075, %v3086, %v3088
    %v3090 = vshll.u32 %v3050, 8
    %v3091 = vmul.u32.u64.compose %v3090, %v3089
    %v3092 = vextract.low.u32 %v3091
    %v3093 = vextract.high.u32 %v3091
    %v3094 = vmul.u32.u64.compose %v3090, %v3085
    %v3095 = vextract.low.u32 %v3094
    %v3096 = vextract.high.u32 %v3094
    %v3097 = vmul.u32 %v3090, %v3081
    %v3098 = vadd.s32 %v3093, %v3095
    %vm3099 = vc.u32 %v3093, %v3095
    %v3100 = vadd.s32 %v3096, 1
    %v3101 = vsel %vm3099, %v3100, %v3096
    %v3102 = vadd.s32 %v3097, %v3101
    %v3103 = vadd.s32 %v3102, 536870912
    %v3104 = vshrl.u32 %v3103, 30
    %v3105 = vshll.u32 %v3104, 30
    %v3106 = vsub.s32 %v3102, %v3105
    %vm3107 = vcmp.lt.s32.totalorder %v3106, 0
    %v3108 = vsub.s32 0, %v3106
    %v3109 = vsel %vm3107, %v3108, %v3106
    %v3110 = vclz %v3109
    %v3111 = vsub.s32 %v3110, 2
    %vm3112 = vcmp.gt.s32.totalorder 0, %v3111
    %v3113 = vsel %vm3112, 0, %v3111
    %v3114 = vsub.s32 32, %v3113
    %v3115 = vshll.u32 %v3106, %v3113
    %v3116 = vshrl.u32 %v3098, %v3114
    %v3117 = vor.u32 %v3115, %v3116
    %v3118 = vsub.s32 4294967266, %v3113
    %v3119 = vadd.s32 %v3118, 127
    %v3120 = vshll.u32 %v3119, 23
    %v3121 = vor.u32 4788187, %v3120
    %v3122 = vand.u32 2147483647, %v3121
    %v3124 = vcvt.s32.f32 %v3117
    %v3125 = vmul.f32 %v3124, %v3122
    %v3126 = vxor.u32 %v3125, 2147483648
    %v3127 = vsel %vm3044, %v3126, %v3125
    %v3128 = vsub.s32 4, %v3104
    %v3129 = vsel %vm3044, %v3128, %v3104
    %v3130 = vsel %vm3043, %v657, %v3127
    %v3131 = vsel %vm3043, 0, %v3129
    %v3132 = vcosq.f32.pop %v3130
    %v3133 = vsinq.f32.pop %v3130
    %vm3134 = vweird.f32 %v657
    %v3135 = vadd.s32 %v3131, 3
    %v3136 = vand.u32 %v3135, 3
    %vm3137 = vcmp.lt.s32.totalorder %v3136, 2
    %vm3138 = vcmp.eq.s32.totalorder %v3136, 0
    %v3139 = vxor.u32 %v3133, 2147483648
    %v3140 = vsel %vm3138, %v3132, %v3139
    %vm3141 = vcmp.eq.s32.totalorder %v3136, 2
    %v3142 = vxor.u32 %v3132, 2147483648
    %v3143 = vsel %vm3141, %v3142, %v3133
    %v3144 = vsel %vm3137, %v3140, %v3143
    %v3145 = vsel %vm3134, nan, %v3144
    %v3146 = vand.u32 2147483647, %v658
    %vm3147 = vcmp.le.f32.partialorder %v3146, 0.7853982
    %vm3148 = vcmp.lt.s32.totalorder %v658, 0
    %v3149 = vand.u32 %v658, 2139095040
    %v3150 = vshrl.u32 %v3149, 23
    %v3151 = vsub.s32 %v3150, 127
    %v3152 = vand.u32 2147483647, %v658
    %v3153 = vand.u32 %v3152, 8388607
    %v3154 = vor.u32 %v3153, 8388608
    %v3155 = vsub.s32 0, %v3154
    %v3156 = vadd.s32 %v3151, 1
    %vm3157 = vcmp.gt.s32.totalorder %v3156, 0
    %v3158 = vsel %vm3157, %v3156, 0
    %v3159 = vshrl.u32 %v3158, 5
    %v3160 = vand.u32 %v3158, 31
    %v3161 = vsub.s32 32, %v3160
    %v3162 = vshrl.u32 683565275, %v3161
    %v3163 = vshll.u32 683565275, %v3160
    %v3164 = vshrl.u32 2475754826, %v3161
    %v3165 = vor.u32 %v3163, %v3164
    %v3166 = vshll.u32 2475754826, %v3160
    %v3167 = vshrl.u32 2131351028, %v3161
    %v3168 = vor.u32 %v3166, %v3167
    %v3169 = vshll.u32 2131351028, %v3160
    %v3170 = vshrl.u32 2102212464, %v3161
    %v3171 = vor.u32 %v3169, %v3170
    %v3172 = vshll.u32 2102212464, %v3160
    %v3173 = vshrl.u32 920167782, %v3161
    %v3174 = vor.u32 %v3172, %v3173
    %v3175 = vshll.u32 920167782, %v3160
    %v3176 = vshrl.u32 1326507024, %v3161
    %v3177 = vor.u32 %v3175, %v3176
    %vm3178 = vcmp.lt.s32.totalorder %v3159, 1
    %vm3179 = vcmp.lt.s32.totalorder %v3159, 2
    %vm3180 = vcmp.lt.s32.totalorder %v3159, 3
    %vm3181 = vcmp.lt.s32.totalorder %v3159, 4
    %v3182 = vsel %vm3178, %v3162, %v3165
    %v3183 = vsel %vm3181, %v3171, 2102212464
    %v3184 = vsel %vm3180, %v3168, %v3183
    %v3185 = vsel %vm3179, %v3182, %v3184
    %v3186 = vsel %vm3178, %v3165, %v3168
    %v3187 = vsel %vm3181, %v3174, 920167782
    %v3188 = vsel %vm3180, %v3171, %v3187
    %v3189 = vsel %vm3179, %v3186, %v3188
    %v3190 = vsel %vm3178, %v3168, %v3171
    %v3191 = vsel %vm3181, %v3177, 1326507024
    %v3192 = vsel %vm3180, %v3174, %v3191
    %v3193 = vsel %vm3179, %v3190, %v3192
    %v3194 = vshll.u32 %v3154, 8
    %v3195 = vmul.u32.u64.compose %v3194, %v3193
    %v3196 = vextract.low.u32 %v3195
    %v3197 = vextract.high.u32 %v3195
    %v3198 = vmul.u32.u64.compose %v3194, %v3189
    %v3199 = vextract.low.u32 %v3198
    %v3200 = vextract.high.u32 %v3198
    %v3201 = vmul.u32 %v3194, %v3185
    %v3202 = vadd.s32 %v3197, %v3199
    %vm3203 = vc.u32 %v3197, %v3199
    %v3204 = vadd.s32 %v3200, 1
    %v3205 = vsel %vm3203, %v3204, %v3200
    %v3206 = vadd.s32 %v3201, %v3205
    %v3207 = vadd.s32 %v3206, 536870912
    %v3208 = vshrl.u32 %v3207, 30
    %v3209 = vshll.u32 %v3208, 30
    %v3210 = vsub.s32 %v3206, %v3209
    %vm3211 = vcmp.lt.s32.totalorder %v3210, 0
    %v3212 = vsub.s32 0, %v3210
    %v3213 = vsel %vm3211, %v3212, %v3210
    %v3214 = vclz %v3213
    %v3215 = vsub.s32 %v3214, 2
    %vm3216 = vcmp.gt.s32.totalorder 0, %v3215
    %v3217 = vsel %vm3216, 0, %v3215
    %v3218 = vsub.s32 32, %v3217
    %v3219 = vshll.u32 %v3210, %v3217
    %v3220 = vshrl.u32 %v3202, %v3218
    %v3221 = vor.u32 %v3219, %v3220
    %v3222 = vsub.s32 4294967266, %v3217
    %v3223 = vadd.s32 %v3222, 127
    %v3224 = vshll.u32 %v3223, 23
    %v3225 = vor.u32 4788187, %v3224
    %v3226 = vand.u32 2147483647, %v3225
    %v3228 = vcvt.s32.f32 %v3221
    %v3229 = vmul.f32 %v3228, %v3226
    %v3230 = vxor.u32 %v3229, 2147483648
    %v3231 = vsel %vm3148, %v3230, %v3229
    %v3232 = vsub.s32 4, %v3208
    %v3233 = vsel %vm3148, %v3232, %v3208
    %v3234 = vsel %vm3147, %v658, %v3231
    %v3235 = vsel %vm3147, 0, %v3233
    %v3236 = vcosq.f32.pop %v3234
    %v3237 = vsinq.f32.pop %v3234
    %vm3238 = vweird.f32 %v658
    %v3239 = vadd.s32 %v3235, 3
    %v3240 = vand.u32 %v3239, 3
    %vm3241 = vcmp.lt.s32.totalorder %v3240, 2
    %vm3242 = vcmp.eq.s32.totalorder %v3240, 0
    %v3243 = vxor.u32 %v3237, 2147483648
    %v3244 = vsel %vm3242, %v3236, %v3243
    %vm3245 = vcmp.eq.s32.totalorder %v3240, 2
    %v3246 = vxor.u32 %v3236, 2147483648
    %v3247 = vsel %vm3245, %v3246, %v3237
    %v3248 = vsel %vm3241, %v3244, %v3247
    %v3249 = vsel %vm3238, nan, %v3248
    %v3250 = vand.u32 2147483647, %v659
    %vm3251 = vcmp.le.f32.partialorder %v3250, 0.7853982
    %vm3252 = vcmp.lt.s32.totalorder %v659, 0
    %v3253 = vand.u32 %v659, 2139095040
    %v3254 = vshrl.u32 %v3253, 23
    %v3255 = vsub.s32 %v3254, 127
    %v3256 = vand.u32 2147483647, %v659
    %v3257 = vand.u32 %v3256, 8388607
    %v3258 = vor.u32 %v3257, 8388608
    %v3259 = vsub.s32 0, %v3258
    %v3260 = vadd.s32 %v3255, 1
    %vm3261 = vcmp.gt.s32.totalorder %v3260, 0
    %v3262 = vsel %vm3261, %v3260, 0
    %v3263 = vshrl.u32 %v3262, 5
    %v3264 = vand.u32 %v3262, 31
    %v3265 = vsub.s32 32, %v3264
    %v3266 = vshrl.u32 683565275, %v3265
    %v3267 = vshll.u32 683565275, %v3264
    %v3268 = vshrl.u32 2475754826, %v3265
    %v3269 = vor.u32 %v3267, %v3268
    %v3270 = vshll.u32 2475754826, %v3264
    %v3271 = vshrl.u32 2131351028, %v3265
    %v3272 = vor.u32 %v3270, %v3271
    %v3273 = vshll.u32 2131351028, %v3264
    %v3274 = vshrl.u32 2102212464, %v3265
    %v3275 = vor.u32 %v3273, %v3274
    %v3276 = vshll.u32 2102212464, %v3264
    %v3277 = vshrl.u32 920167782, %v3265
    %v3278 = vor.u32 %v3276, %v3277
    %v3279 = vshll.u32 920167782, %v3264
    %v3280 = vshrl.u32 1326507024, %v3265
    %v3281 = vor.u32 %v3279, %v3280
    %vm3282 = vcmp.lt.s32.totalorder %v3263, 1
    %vm3283 = vcmp.lt.s32.totalorder %v3263, 2
    %vm3284 = vcmp.lt.s32.totalorder %v3263, 3
    %vm3285 = vcmp.lt.s32.totalorder %v3263, 4
    %v3286 = vsel %vm3282, %v3266, %v3269
    %v3287 = vsel %vm3285, %v3275, 2102212464
    %v3288 = vsel %vm3284, %v3272, %v3287
    %v3289 = vsel %vm3283, %v3286, %v3288
    %v3290 = vsel %vm3282, %v3269, %v3272
    %v3291 = vsel %vm3285, %v3278, 920167782
    %v3292 = vsel %vm3284, %v3275, %v3291
    %v3293 = vsel %vm3283, %v3290, %v3292
    %v3294 = vsel %vm3282, %v3272, %v3275
    %v3295 = vsel %vm3285, %v3281, 1326507024
    %v3296 = vsel %vm3284, %v3278, %v3295
    %v3297 = vsel %vm3283, %v3294, %v3296
    %v3298 = vshll.u32 %v3258, 8
    %v3299 = vmul.u32.u64.compose %v3298, %v3297
    %v3300 = vextract.low.u32 %v3299
    %v3301 = vextract.high.u32 %v3299
    %v3302 = vmul.u32.u64.compose %v3298, %v3293
    %v3303 = vextract.low.u32 %v3302
    %v3304 = vextract.high.u32 %v3302
    %v3305 = vmul.u32 %v3298, %v3289
    %v3306 = vadd.s32 %v3301, %v3303
    %vm3307 = vc.u32 %v3301, %v3303
    %v3308 = vadd.s32 %v3304, 1
    %v3309 = vsel %vm3307, %v3308, %v3304
    %v3310 = vadd.s32 %v3305, %v3309
    %v3311 = vadd.s32 %v3310, 536870912
    %v3312 = vshrl.u32 %v3311, 30
    %v3313 = vshll.u32 %v3312, 30
    %v3314 = vsub.s32 %v3310, %v3313
    %vm3315 = vcmp.lt.s32.totalorder %v3314, 0
    %v3316 = vsub.s32 0, %v3314
    %v3317 = vsel %vm3315, %v3316, %v3314
    %v3318 = vclz %v3317
    %v3319 = vsub.s32 %v3318, 2
    %vm3320 = vcmp.gt.s32.totalorder 0, %v3319
    %v3321 = vsel %vm3320, 0, %v3319
    %v3322 = vsub.s32 32, %v3321
    %v3323 = vshll.u32 %v3314, %v3321
    %v3324 = vshrl.u32 %v3306, %v3322
    %v3325 = vor.u32 %v3323, %v3324
    %v3326 = vsub.s32 4294967266, %v3321
    %v3327 = vadd.s32 %v3326, 127
    %v3328 = vshll.u32 %v3327, 23
    %v3329 = vor.u32 4788187, %v3328
    %v3330 = vand.u32 2147483647, %v3329
    %v3332 = vcvt.s32.f32 %v3325
    %v3333 = vmul.f32 %v3332, %v3330
    %v3334 = vxor.u32 %v3333, 2147483648
    %v3335 = vsel %vm3252, %v3334, %v3333
    %v3336 = vsub.s32 4, %v3312
    %v3337 = vsel %vm3252, %v3336, %v3312
    %v3338 = vsel %vm3251, %v659, %v3335
    %v3339 = vsel %vm3251, 0, %v3337
    %v3340 = vcosq.f32.pop %v3338
    %v3341 = vsinq.f32.pop %v3338
    %vm3342 = vweird.f32 %v659
    %v3343 = vadd.s32 %v3339, 3
    %v3344 = vand.u32 %v3343, 3
    %vm3345 = vcmp.lt.s32.totalorder %v3344, 2
    %vm3346 = vcmp.eq.s32.totalorder %v3344, 0
    %v3347 = vxor.u32 %v3341, 2147483648
    %v3348 = vsel %vm3346, %v3340, %v3347
    %vm3349 = vcmp.eq.s32.totalorder %v3344, 2
    %v3350 = vxor.u32 %v3340, 2147483648
    %v3351 = vsel %vm3349, %v3350, %v3341
    %v3352 = vsel %vm3345, %v3348, %v3351
    %v3353 = vsel %vm3342, nan, %v3352
    %v3354 = vand.u32 2147483647, %v660
    %vm3355 = vcmp.le.f32.partialorder %v3354, 0.7853982
    %vm3356 = vcmp.lt.s32.totalorder %v660, 0
    %v3357 = vand.u32 %v660, 2139095040
    %v3358 = vshrl.u32 %v3357, 23
    %v3359 = vsub.s32 %v3358, 127
    %v3360 = vand.u32 2147483647, %v660
    %v3361 = vand.u32 %v3360, 8388607
    %v3362 = vor.u32 %v3361, 8388608
    %v3363 = vsub.s32 0, %v3362
    %v3364 = vadd.s32 %v3359, 1
    %vm3365 = vcmp.gt.s32.totalorder %v3364, 0
    %v3366 = vsel %vm3365, %v3364, 0
    %v3367 = vshrl.u32 %v3366, 5
    %v3368 = vand.u32 %v3366, 31
    %v3369 = vsub.s32 32, %v3368
    %v3370 = vshrl.u32 683565275, %v3369
    %v3371 = vshll.u32 683565275, %v3368
    %v3372 = vshrl.u32 2475754826, %v3369
    %v3373 = vor.u32 %v3371, %v3372
    %v3374 = vshll.u32 2475754826, %v3368
    %v3375 = vshrl.u32 2131351028, %v3369
    %v3376 = vor.u32 %v3374, %v3375
    %v3377 = vshll.u32 2131351028, %v3368
    %v3378 = vshrl.u32 2102212464, %v3369
    %v3379 = vor.u32 %v3377, %v3378
    %v3380 = vshll.u32 2102212464, %v3368
    %v3381 = vshrl.u32 920167782, %v3369
    %v3382 = vor.u32 %v3380, %v3381
    %v3383 = vshll.u32 920167782, %v3368
    %v3384 = vshrl.u32 1326507024, %v3369
    %v3385 = vor.u32 %v3383, %v3384
    %vm3386 = vcmp.lt.s32.totalorder %v3367, 1
    %vm3387 = vcmp.lt.s32.totalorder %v3367, 2
    %vm3388 = vcmp.lt.s32.totalorder %v3367, 3
    %vm3389 = vcmp.lt.s32.totalorder %v3367, 4
    %v3390 = vsel %vm3386, %v3370, %v3373
    %v3391 = vsel %vm3389, %v3379, 2102212464
    %v3392 = vsel %vm3388, %v3376, %v3391
    %v3393 = vsel %vm3387, %v3390, %v3392
    %v3394 = vsel %vm3386, %v3373, %v3376
    %v3395 = vsel %vm3389, %v3382, 920167782
    %v3396 = vsel %vm3388, %v3379, %v3395
    %v3397 = vsel %vm3387, %v3394, %v3396
    %v3398 = vsel %vm3386, %v3376, %v3379
    %v3399 = vsel %vm3389, %v3385, 1326507024
    %v3400 = vsel %vm3388, %v3382, %v3399
    %v3401 = vsel %vm3387, %v3398, %v3400
    %v3402 = vshll.u32 %v3362, 8
    %v3403 = vmul.u32.u64.compose %v3402, %v3401
    %v3404 = vextract.low.u32 %v3403
    %v3405 = vextract.high.u32 %v3403
    %v3406 = vmul.u32.u64.compose %v3402, %v3397
    %v3407 = vextract.low.u32 %v3406
    %v3408 = vextract.high.u32 %v3406
    %v3409 = vmul.u32 %v3402, %v3393
    %v3410 = vadd.s32 %v3405, %v3407
    %vm3411 = vc.u32 %v3405, %v3407
    %v3412 = vadd.s32 %v3408, 1
    %v3413 = vsel %vm3411, %v3412, %v3408
    %v3414 = vadd.s32 %v3409, %v3413
    %v3415 = vadd.s32 %v3414, 536870912
    %v3416 = vshrl.u32 %v3415, 30
    %v3417 = vshll.u32 %v3416, 30
    %v3418 = vsub.s32 %v3414, %v3417
    %vm3419 = vcmp.lt.s32.totalorder %v3418, 0
    %v3420 = vsub.s32 0, %v3418
    %v3421 = vsel %vm3419, %v3420, %v3418
    %v3422 = vclz %v3421
    %v3423 = vsub.s32 %v3422, 2
    %vm3424 = vcmp.gt.s32.totalorder 0, %v3423
    %v3425 = vsel %vm3424, 0, %v3423
    %v3426 = vsub.s32 32, %v3425
    %v3427 = vshll.u32 %v3418, %v3425
    %v3428 = vshrl.u32 %v3410, %v3426
    %v3429 = vor.u32 %v3427, %v3428
    %v3430 = vsub.s32 4294967266, %v3425
    %v3431 = vadd.s32 %v3430, 127
    %v3432 = vshll.u32 %v3431, 23
    %v3433 = vor.u32 4788187, %v3432
    %v3434 = vand.u32 2147483647, %v3433
    %v3436 = vcvt.s32.f32 %v3429
    %v3437 = vmul.f32 %v3436, %v3434
    %v3438 = vxor.u32 %v3437, 2147483648
    %v3439 = vsel %vm3356, %v3438, %v3437
    %v3440 = vsub.s32 4, %v3416
    %v3441 = vsel %vm3356, %v3440, %v3416
    %v3442 = vsel %vm3355, %v660, %v3439
    %v3443 = vsel %vm3355, 0, %v3441
    %v3444 = vcosq.f32.pop %v3442
    %v3445 = vsinq.f32.pop %v3442
    %vm3446 = vweird.f32 %v660
    %v3447 = vadd.s32 %v3443, 3
    %v3448 = vand.u32 %v3447, 3
    %vm3449 = vcmp.lt.s32.totalorder %v3448, 2
    %vm3450 = vcmp.eq.s32.totalorder %v3448, 0
    %v3451 = vxor.u32 %v3445, 2147483648
    %v3452 = vsel %vm3450, %v3444, %v3451
    %vm3453 = vcmp.eq.s32.totalorder %v3448, 2
    %v3454 = vxor.u32 %v3444, 2147483648
    %v3455 = vsel %vm3453, %v3454, %v3445
    %v3456 = vsel %vm3449, %v3452, %v3455
    %v3457 = vsel %vm3446, nan, %v3456
    %v3458 = vand.u32 2147483647, %v661
    %vm3459 = vcmp.le.f32.partialorder %v3458, 0.7853982
    %vm3460 = vcmp.lt.s32.totalorder %v661, 0
    %v3461 = vand.u32 %v661, 2139095040
    %v3462 = vshrl.u32 %v3461, 23
    %v3463 = vsub.s32 %v3462, 127
    %v3464 = vand.u32 2147483647, %v661
    %v3465 = vand.u32 %v3464, 8388607
    %v3466 = vor.u32 %v3465, 8388608
    %v3467 = vsub.s32 0, %v3466
    %v3468 = vadd.s32 %v3463, 1
    %vm3469 = vcmp.gt.s32.totalorder %v3468, 0
    %v3470 = vsel %vm3469, %v3468, 0
    %v3471 = vshrl.u32 %v3470, 5
    %v3472 = vand.u32 %v3470, 31
    %v3473 = vsub.s32 32, %v3472
    %v3474 = vshrl.u32 683565275, %v3473
    %v3475 = vshll.u32 683565275, %v3472
    %v3476 = vshrl.u32 2475754826, %v3473
    %v3477 = vor.u32 %v3475, %v3476
    %v3478 = vshll.u32 2475754826, %v3472
    %v3479 = vshrl.u32 2131351028, %v3473
    %v3480 = vor.u32 %v3478, %v3479
    %v3481 = vshll.u32 2131351028, %v3472
    %v3482 = vshrl.u32 2102212464, %v3473
    %v3483 = vor.u32 %v3481, %v3482
    %v3484 = vshll.u32 2102212464, %v3472
    %v3485 = vshrl.u32 920167782, %v3473
    %v3486 = vor.u32 %v3484, %v3485
    %v3487 = vshll.u32 920167782, %v3472
    %v3488 = vshrl.u32 1326507024, %v3473
    %v3489 = vor.u32 %v3487, %v3488
    %vm3490 = vcmp.lt.s32.totalorder %v3471, 1
    %vm3491 = vcmp.lt.s32.totalorder %v3471, 2
    %vm3492 = vcmp.lt.s32.totalorder %v3471, 3
    %vm3493 = vcmp.lt.s32.totalorder %v3471, 4
    %v3494 = vsel %vm3490, %v3474, %v3477
    %v3495 = vsel %vm3493, %v3483, 2102212464
    %v3496 = vsel %vm3492, %v3480, %v3495
    %v3497 = vsel %vm3491, %v3494, %v3496
    %v3498 = vsel %vm3490, %v3477, %v3480
    %v3499 = vsel %vm3493, %v3486, 920167782
    %v3500 = vsel %vm3492, %v3483, %v3499
    %v3501 = vsel %vm3491, %v3498, %v3500
    %v3502 = vsel %vm3490, %v3480, %v3483
    %v3503 = vsel %vm3493, %v3489, 1326507024
    %v3504 = vsel %vm3492, %v3486, %v3503
    %v3505 = vsel %vm3491, %v3502, %v3504
    %v3506 = vshll.u32 %v3466, 8
    %v3507 = vmul.u32.u64.compose %v3506, %v3505
    %v3508 = vextract.low.u32 %v3507
    %v3509 = vextract.high.u32 %v3507
    %v3510 = vmul.u32.u64.compose %v3506, %v3501
    %v3511 = vextract.low.u32 %v3510
    %v3512 = vextract.high.u32 %v3510
    %v3513 = vmul.u32 %v3506, %v3497
    %v3514 = vadd.s32 %v3509, %v3511
    %vm3515 = vc.u32 %v3509, %v3511
    %v3516 = vadd.s32 %v3512, 1
    %v3517 = vsel %vm3515, %v3516, %v3512
    %v3518 = vadd.s32 %v3513, %v3517
    %v3519 = vadd.s32 %v3518, 536870912
    %v3520 = vshrl.u32 %v3519, 30
    %v3521 = vshll.u32 %v3520, 30
    %v3522 = vsub.s32 %v3518, %v3521
    %vm3523 = vcmp.lt.s32.totalorder %v3522, 0
    %v3524 = vsub.s32 0, %v3522
    %v3525 = vsel %vm3523, %v3524, %v3522
    %v3526 = vclz %v3525
    %v3527 = vsub.s32 %v3526, 2
    %vm3528 = vcmp.gt.s32.totalorder 0, %v3527
    %v3529 = vsel %vm3528, 0, %v3527
    %v3530 = vsub.s32 32, %v3529
    %v3531 = vshll.u32 %v3522, %v3529
    %v3532 = vshrl.u32 %v3514, %v3530
    %v3533 = vor.u32 %v3531, %v3532
    %v3534 = vsub.s32 4294967266, %v3529
    %v3535 = vadd.s32 %v3534, 127
    %v3536 = vshll.u32 %v3535, 23
    %v3537 = vor.u32 4788187, %v3536
    %v3538 = vand.u32 2147483647, %v3537
    %v3540 = vcvt.s32.f32 %v3533
    %v3541 = vmul.f32 %v3540, %v3538
    %v3542 = vxor.u32 %v3541, 2147483648
    %v3543 = vsel %vm3460, %v3542, %v3541
    %v3544 = vsub.s32 4, %v3520
    %v3545 = vsel %vm3460, %v3544, %v3520
    %v3546 = vsel %vm3459, %v661, %v3543
    %v3547 = vsel %vm3459, 0, %v3545
    %v3548 = vcosq.f32.pop %v3546
    %v3549 = vsinq.f32.pop %v3546
    %vm3550 = vweird.f32 %v661
    %v3551 = vadd.s32 %v3547, 3
    %v3552 = vand.u32 %v3551, 3
    %vm3553 = vcmp.lt.s32.totalorder %v3552, 2
    %vm3554 = vcmp.eq.s32.totalorder %v3552, 0
    %v3555 = vxor.u32 %v3549, 2147483648
    %v3556 = vsel %vm3554, %v3548, %v3555
    %vm3557 = vcmp.eq.s32.totalorder %v3552, 2
    %v3558 = vxor.u32 %v3548, 2147483648
    %v3559 = vsel %vm3557, %v3558, %v3549
    %v3560 = vsel %vm3553, %v3556, %v3559
    %v3561 = vsel %vm3550, nan, %v3560
    %v3562 = vand.u32 2147483647, %v662
    %vm3563 = vcmp.le.f32.partialorder %v3562, 0.7853982
    %vm3564 = vcmp.lt.s32.totalorder %v662, 0
    %v3565 = vand.u32 %v662, 2139095040
    %v3566 = vshrl.u32 %v3565, 23
    %v3567 = vsub.s32 %v3566, 127
    %v3568 = vand.u32 2147483647, %v662
    %v3569 = vand.u32 %v3568, 8388607
    %v3570 = vor.u32 %v3569, 8388608
    %v3571 = vsub.s32 0, %v3570
    %v3572 = vadd.s32 %v3567, 1
    %vm3573 = vcmp.gt.s32.totalorder %v3572, 0
    %v3574 = vsel %vm3573, %v3572, 0
    %v3575 = vshrl.u32 %v3574, 5
    %v3576 = vand.u32 %v3574, 31
    %v3577 = vsub.s32 32, %v3576
    %v3578 = vshrl.u32 683565275, %v3577
    %v3579 = vshll.u32 683565275, %v3576
    %v3580 = vshrl.u32 2475754826, %v3577
    %v3581 = vor.u32 %v3579, %v3580
    %v3582 = vshll.u32 2475754826, %v3576
    %v3583 = vshrl.u32 2131351028, %v3577
    %v3584 = vor.u32 %v3582, %v3583
    %v3585 = vshll.u32 2131351028, %v3576
    %v3586 = vshrl.u32 2102212464, %v3577
    %v3587 = vor.u32 %v3585, %v3586
    %v3588 = vshll.u32 2102212464, %v3576
    %v3589 = vshrl.u32 920167782, %v3577
    %v3590 = vor.u32 %v3588, %v3589
    %v3591 = vshll.u32 920167782, %v3576
    %v3592 = vshrl.u32 1326507024, %v3577
    %v3593 = vor.u32 %v3591, %v3592
    %vm3594 = vcmp.lt.s32.totalorder %v3575, 1
    %vm3595 = vcmp.lt.s32.totalorder %v3575, 2
    %vm3596 = vcmp.lt.s32.totalorder %v3575, 3
    %vm3597 = vcmp.lt.s32.totalorder %v3575, 4
    %v3598 = vsel %vm3594, %v3578, %v3581
    %v3599 = vsel %vm3597, %v3587, 2102212464
    %v3600 = vsel %vm3596, %v3584, %v3599
    %v3601 = vsel %vm3595, %v3598, %v3600
    %v3602 = vsel %vm3594, %v3581, %v3584
    %v3603 = vsel %vm3597, %v3590, 920167782
    %v3604 = vsel %vm3596, %v3587, %v3603
    %v3605 = vsel %vm3595, %v3602, %v3604
    %v3606 = vsel %vm3594, %v3584, %v3587
    %v3607 = vsel %vm3597, %v3593, 1326507024
    %v3608 = vsel %vm3596, %v3590, %v3607
    %v3609 = vsel %vm3595, %v3606, %v3608
    %v3610 = vshll.u32 %v3570, 8
    %v3611 = vmul.u32.u64.compose %v3610, %v3609
    %v3612 = vextract.low.u32 %v3611
    %v3613 = vextract.high.u32 %v3611
    %v3614 = vmul.u32.u64.compose %v3610, %v3605
    %v3615 = vextract.low.u32 %v3614
    %v3616 = vextract.high.u32 %v3614
    %v3617 = vmul.u32 %v3610, %v3601
    %v3618 = vadd.s32 %v3613, %v3615
    %vm3619 = vc.u32 %v3613, %v3615
    %v3620 = vadd.s32 %v3616, 1
    %v3621 = vsel %vm3619, %v3620, %v3616
    %v3622 = vadd.s32 %v3617, %v3621
    %v3623 = vadd.s32 %v3622, 536870912
    %v3624 = vshrl.u32 %v3623, 30
    %v3625 = vshll.u32 %v3624, 30
    %v3626 = vsub.s32 %v3622, %v3625
    %vm3627 = vcmp.lt.s32.totalorder %v3626, 0
    %v3628 = vsub.s32 0, %v3626
    %v3629 = vsel %vm3627, %v3628, %v3626
    %v3630 = vclz %v3629
    %v3631 = vsub.s32 %v3630, 2
    %vm3632 = vcmp.gt.s32.totalorder 0, %v3631
    %v3633 = vsel %vm3632, 0, %v3631
    %v3634 = vsub.s32 32, %v3633
    %v3635 = vshll.u32 %v3626, %v3633
    %v3636 = vshrl.u32 %v3618, %v3634
    %v3637 = vor.u32 %v3635, %v3636
    %v3638 = vsub.s32 4294967266, %v3633
    %v3639 = vadd.s32 %v3638, 127
    %v3640 = vshll.u32 %v3639, 23
    %v3641 = vor.u32 4788187, %v3640
    %v3642 = vand.u32 2147483647, %v3641
    %v3644 = vcvt.s32.f32 %v3637
    %v3645 = vmul.f32 %v3644, %v3642
    %v3646 = vxor.u32 %v3645, 2147483648
    %v3647 = vsel %vm3564, %v3646, %v3645
    %v3648 = vsub.s32 4, %v3624
    %v3649 = vsel %vm3564, %v3648, %v3624
    %v3650 = vsel %vm3563, %v662, %v3647
    %v3651 = vsel %vm3563, 0, %v3649
    %v3652 = vcosq.f32.pop %v3650
    %v3653 = vsinq.f32.pop %v3650
    %vm3654 = vweird.f32 %v662
    %v3655 = vadd.s32 %v3651, 3
    %v3656 = vand.u32 %v3655, 3
    %vm3657 = vcmp.lt.s32.totalorder %v3656, 2
    %vm3658 = vcmp.eq.s32.totalorder %v3656, 0
    %v3659 = vxor.u32 %v3653, 2147483648
    %v3660 = vsel %vm3658, %v3652, %v3659
    %vm3661 = vcmp.eq.s32.totalorder %v3656, 2
    %v3662 = vxor.u32 %v3652, 2147483648
    %v3663 = vsel %vm3661, %v3662, %v3653
    %v3664 = vsel %vm3657, %v3660, %v3663
    %v3665 = vsel %vm3654, nan, %v3664
    %v3666 = vand.u32 2147483647, %v663
    %vm3667 = vcmp.le.f32.partialorder %v3666, 0.7853982
    %vm3668 = vcmp.lt.s32.totalorder %v663, 0
    %v3669 = vand.u32 %v663, 2139095040
    %v3670 = vshrl.u32 %v3669, 23
    %v3671 = vsub.s32 %v3670, 127
    %v3672 = vand.u32 2147483647, %v663
    %v3673 = vand.u32 %v3672, 8388607
    %v3674 = vor.u32 %v3673, 8388608
    %v3675 = vsub.s32 0, %v3674
    %v3676 = vadd.s32 %v3671, 1
    %vm3677 = vcmp.gt.s32.totalorder %v3676, 0
    %v3678 = vsel %vm3677, %v3676, 0
    %v3679 = vshrl.u32 %v3678, 5
    %v3680 = vand.u32 %v3678, 31
    %v3681 = vsub.s32 32, %v3680
    %v3682 = vshrl.u32 683565275, %v3681
    %v3683 = vshll.u32 683565275, %v3680
    %v3684 = vshrl.u32 2475754826, %v3681
    %v3685 = vor.u32 %v3683, %v3684
    %v3686 = vshll.u32 2475754826, %v3680
    %v3687 = vshrl.u32 2131351028, %v3681
    %v3688 = vor.u32 %v3686, %v3687
    %v3689 = vshll.u32 2131351028, %v3680
    %v3690 = vshrl.u32 2102212464, %v3681
    %v3691 = vor.u32 %v3689, %v3690
    %v3692 = vshll.u32 2102212464, %v3680
    %v3693 = vshrl.u32 920167782, %v3681
    %v3694 = vor.u32 %v3692, %v3693
    %v3695 = vshll.u32 920167782, %v3680
    %v3696 = vshrl.u32 1326507024, %v3681
    %v3697 = vor.u32 %v3695, %v3696
    %vm3698 = vcmp.lt.s32.totalorder %v3679, 1
    %vm3699 = vcmp.lt.s32.totalorder %v3679, 2
    %vm3700 = vcmp.lt.s32.totalorder %v3679, 3
    %vm3701 = vcmp.lt.s32.totalorder %v3679, 4
    %v3702 = vsel %vm3698, %v3682, %v3685
    %v3703 = vsel %vm3701, %v3691, 2102212464
    %v3704 = vsel %vm3700, %v3688, %v3703
    %v3705 = vsel %vm3699, %v3702, %v3704
    %v3706 = vsel %vm3698, %v3685, %v3688
    %v3707 = vsel %vm3701, %v3694, 920167782
    %v3708 = vsel %vm3700, %v3691, %v3707
    %v3709 = vsel %vm3699, %v3706, %v3708
    %v3710 = vsel %vm3698, %v3688, %v3691
    %v3711 = vsel %vm3701, %v3697, 1326507024
    %v3712 = vsel %vm3700, %v3694, %v3711
    %v3713 = vsel %vm3699, %v3710, %v3712
    %v3714 = vshll.u32 %v3674, 8
    %v3715 = vmul.u32.u64.compose %v3714, %v3713
    %v3716 = vextract.low.u32 %v3715
    %v3717 = vextract.high.u32 %v3715
    %v3718 = vmul.u32.u64.compose %v3714, %v3709
    %v3719 = vextract.low.u32 %v3718
    %v3720 = vextract.high.u32 %v3718
    %v3721 = vmul.u32 %v3714, %v3705
    %v3722 = vadd.s32 %v3717, %v3719
    %vm3723 = vc.u32 %v3717, %v3719
    %v3724 = vadd.s32 %v3720, 1
    %v3725 = vsel %vm3723, %v3724, %v3720
    %v3726 = vadd.s32 %v3721, %v3725
    %v3727 = vadd.s32 %v3726, 536870912
    %v3728 = vshrl.u32 %v3727, 30
    %v3729 = vshll.u32 %v3728, 30
    %v3730 = vsub.s32 %v3726, %v3729
    %vm3731 = vcmp.lt.s32.totalorder %v3730, 0
    %v3732 = vsub.s32 0, %v3730
    %v3733 = vsel %vm3731, %v3732, %v3730
    %v3734 = vclz %v3733
    %v3735 = vsub.s32 %v3734, 2
    %vm3736 = vcmp.gt.s32.totalorder 0, %v3735
    %v3737 = vsel %vm3736, 0, %v3735
    %v3738 = vsub.s32 32, %v3737
    %v3739 = vshll.u32 %v3730, %v3737
    %v3740 = vshrl.u32 %v3722, %v3738
    %v3741 = vor.u32 %v3739, %v3740
    %v3742 = vsub.s32 4294967266, %v3737
    %v3743 = vadd.s32 %v3742, 127
    %v3744 = vshll.u32 %v3743, 23
    %v3745 = vor.u32 4788187, %v3744
    %v3746 = vand.u32 2147483647, %v3745
    %v3748 = vcvt.s32.f32 %v3741
    %v3749 = vmul.f32 %v3748, %v3746
    %v3750 = vxor.u32 %v3749, 2147483648
    %v3751 = vsel %vm3668, %v3750, %v3749
    %v3752 = vsub.s32 4, %v3728
    %v3753 = vsel %vm3668, %v3752, %v3728
    %v3754 = vsel %vm3667, %v663, %v3751
    %v3755 = vsel %vm3667, 0, %v3753
    %v3756 = vcosq.f32.pop %v3754
    %v3757 = vsinq.f32.pop %v3754
    %vm3758 = vweird.f32 %v663
    %v3759 = vadd.s32 %v3755, 3
    %v3760 = vand.u32 %v3759, 3
    %vm3761 = vcmp.lt.s32.totalorder %v3760, 2
    %vm3762 = vcmp.eq.s32.totalorder %v3760, 0
    %v3763 = vxor.u32 %v3757, 2147483648
    %v3764 = vsel %vm3762, %v3756, %v3763
    %vm3765 = vcmp.eq.s32.totalorder %v3760, 2
    %v3766 = vxor.u32 %v3756, 2147483648
    %v3767 = vsel %vm3765, %v3766, %v3757
    %v3768 = vsel %vm3761, %v3764, %v3767
    %v3769 = vsel %vm3758, nan, %v3768
    %v3770 = vand.u32 2147483647, %v664
    %vm3771 = vcmp.le.f32.partialorder %v3770, 0.7853982
    %vm3772 = vcmp.lt.s32.totalorder %v664, 0
    %v3773 = vand.u32 %v664, 2139095040
    %v3774 = vshrl.u32 %v3773, 23
    %v3775 = vsub.s32 %v3774, 127
    %v3776 = vand.u32 2147483647, %v664
    %v3777 = vand.u32 %v3776, 8388607
    %v3778 = vor.u32 %v3777, 8388608
    %v3779 = vsub.s32 0, %v3778
    %v3780 = vadd.s32 %v3775, 1
    %vm3781 = vcmp.gt.s32.totalorder %v3780, 0
    %v3782 = vsel %vm3781, %v3780, 0
    %v3783 = vshrl.u32 %v3782, 5
    %v3784 = vand.u32 %v3782, 31
    %v3785 = vsub.s32 32, %v3784
    %v3786 = vshrl.u32 683565275, %v3785
    %v3787 = vshll.u32 683565275, %v3784
    %v3788 = vshrl.u32 2475754826, %v3785
    %v3789 = vor.u32 %v3787, %v3788
    %v3790 = vshll.u32 2475754826, %v3784
    %v3791 = vshrl.u32 2131351028, %v3785
    %v3792 = vor.u32 %v3790, %v3791
    %v3793 = vshll.u32 2131351028, %v3784
    %v3794 = vshrl.u32 2102212464, %v3785
    %v3795 = vor.u32 %v3793, %v3794
    %v3796 = vshll.u32 2102212464, %v3784
    %v3797 = vshrl.u32 920167782, %v3785
    %v3798 = vor.u32 %v3796, %v3797
    %v3799 = vshll.u32 920167782, %v3784
    %v3800 = vshrl.u32 1326507024, %v3785
    %v3801 = vor.u32 %v3799, %v3800
    %vm3802 = vcmp.lt.s32.totalorder %v3783, 1
    %vm3803 = vcmp.lt.s32.totalorder %v3783, 2
    %vm3804 = vcmp.lt.s32.totalorder %v3783, 3
    %vm3805 = vcmp.lt.s32.totalorder %v3783, 4
    %v3806 = vsel %vm3802, %v3786, %v3789
    %v3807 = vsel %vm3805, %v3795, 2102212464
    %v3808 = vsel %vm3804, %v3792, %v3807
    %v3809 = vsel %vm3803, %v3806, %v3808
    %v3810 = vsel %vm3802, %v3789, %v3792
    %v3811 = vsel %vm3805, %v3798, 920167782
    %v3812 = vsel %vm3804, %v3795, %v3811
    %v3813 = vsel %vm3803, %v3810, %v3812
    %v3814 = vsel %vm3802, %v3792, %v3795
    %v3815 = vsel %vm3805, %v3801, 1326507024
    %v3816 = vsel %vm3804, %v3798, %v3815
    %v3817 = vsel %vm3803, %v3814, %v3816
    %v3818 = vshll.u32 %v3778, 8
    %v3819 = vmul.u32.u64.compose %v3818, %v3817
    %v3820 = vextract.low.u32 %v3819
    %v3821 = vextract.high.u32 %v3819
    %v3822 = vmul.u32.u64.compose %v3818, %v3813
    %v3823 = vextract.low.u32 %v3822
    %v3824 = vextract.high.u32 %v3822
    %v3825 = vmul.u32 %v3818, %v3809
    %v3826 = vadd.s32 %v3821, %v3823
    %vm3827 = vc.u32 %v3821, %v3823
    %v3828 = vadd.s32 %v3824, 1
    %v3829 = vsel %vm3827, %v3828, %v3824
    %v3830 = vadd.s32 %v3825, %v3829
    %v3831 = vadd.s32 %v3830, 536870912
    %v3832 = vshrl.u32 %v3831, 30
    %v3833 = vshll.u32 %v3832, 30
    %v3834 = vsub.s32 %v3830, %v3833
    %vm3835 = vcmp.lt.s32.totalorder %v3834, 0
    %v3836 = vsub.s32 0, %v3834
    %v3837 = vsel %vm3835, %v3836, %v3834
    %v3838 = vclz %v3837
    %v3839 = vsub.s32 %v3838, 2
    %vm3840 = vcmp.gt.s32.totalorder 0, %v3839
    %v3841 = vsel %vm3840, 0, %v3839
    %v3842 = vsub.s32 32, %v3841
    %v3843 = vshll.u32 %v3834, %v3841
    %v3844 = vshrl.u32 %v3826, %v3842
    %v3845 = vor.u32 %v3843, %v3844
    %v3846 = vsub.s32 4294967266, %v3841
    %v3847 = vadd.s32 %v3846, 127
    %v3848 = vshll.u32 %v3847, 23
    %v3849 = vor.u32 4788187, %v3848
    %v3850 = vand.u32 2147483647, %v3849
    %v3852 = vcvt.s32.f32 %v3845
    %v3853 = vmul.f32 %v3852, %v3850
    %v3854 = vxor.u32 %v3853, 2147483648
    %v3855 = vsel %vm3772, %v3854, %v3853
    %v3856 = vsub.s32 4, %v3832
    %v3857 = vsel %vm3772, %v3856, %v3832
    %v3858 = vsel %vm3771, %v664, %v3855
    %v3859 = vsel %vm3771, 0, %v3857
    %v3860 = vcosq.f32.pop %v3858
    %v3861 = vsinq.f32.pop %v3858
    %vm3862 = vweird.f32 %v664
    %v3863 = vadd.s32 %v3859, 3
    %v3864 = vand.u32 %v3863, 3
    %vm3865 = vcmp.lt.s32.totalorder %v3864, 2
    %vm3866 = vcmp.eq.s32.totalorder %v3864, 0
    %v3867 = vxor.u32 %v3861, 2147483648
    %v3868 = vsel %vm3866, %v3860, %v3867
    %vm3869 = vcmp.eq.s32.totalorder %v3864, 2
    %v3870 = vxor.u32 %v3860, 2147483648
    %v3871 = vsel %vm3869, %v3870, %v3861
    %v3872 = vsel %vm3865, %v3868, %v3871
    %v3873 = vsel %vm3862, nan, %v3872
    %v3874 = vand.u32 2147483647, %v665
    %vm3875 = vcmp.le.f32.partialorder %v3874, 0.7853982
    %vm3876 = vcmp.lt.s32.totalorder %v665, 0
    %v3877 = vand.u32 %v665, 2139095040
    %v3878 = vshrl.u32 %v3877, 23
    %v3879 = vsub.s32 %v3878, 127
    %v3880 = vand.u32 2147483647, %v665
    %v3881 = vand.u32 %v3880, 8388607
    %v3882 = vor.u32 %v3881, 8388608
    %v3883 = vsub.s32 0, %v3882
    %v3884 = vadd.s32 %v3879, 1
    %vm3885 = vcmp.gt.s32.totalorder %v3884, 0
    %v3886 = vsel %vm3885, %v3884, 0
    %v3887 = vshrl.u32 %v3886, 5
    %v3888 = vand.u32 %v3886, 31
    %v3889 = vsub.s32 32, %v3888
    %v3890 = vshrl.u32 683565275, %v3889
    %v3891 = vshll.u32 683565275, %v3888
    %v3892 = vshrl.u32 2475754826, %v3889
    %v3893 = vor.u32 %v3891, %v3892
    %v3894 = vshll.u32 2475754826, %v3888
    %v3895 = vshrl.u32 2131351028, %v3889
    %v3896 = vor.u32 %v3894, %v3895
    %v3897 = vshll.u32 2131351028, %v3888
    %v3898 = vshrl.u32 2102212464, %v3889
    %v3899 = vor.u32 %v3897, %v3898
    %v3900 = vshll.u32 2102212464, %v3888
    %v3901 = vshrl.u32 920167782, %v3889
    %v3902 = vor.u32 %v3900, %v3901
    %v3903 = vshll.u32 920167782, %v3888
    %v3904 = vshrl.u32 1326507024, %v3889
    %v3905 = vor.u32 %v3903, %v3904
    %vm3906 = vcmp.lt.s32.totalorder %v3887, 1
    %vm3907 = vcmp.lt.s32.totalorder %v3887, 2
    %vm3908 = vcmp.lt.s32.totalorder %v3887, 3
    %vm3909 = vcmp.lt.s32.totalorder %v3887, 4
    %v3910 = vsel %vm3906, %v3890, %v3893
    %v3911 = vsel %vm3909, %v3899, 2102212464
    %v3912 = vsel %vm3908, %v3896, %v3911
    %v3913 = vsel %vm3907, %v3910, %v3912
    %v3914 = vsel %vm3906, %v3893, %v3896
    %v3915 = vsel %vm3909, %v3902, 920167782
    %v3916 = vsel %vm3908, %v3899, %v3915
    %v3917 = vsel %vm3907, %v3914, %v3916
    %v3918 = vsel %vm3906, %v3896, %v3899
    %v3919 = vsel %vm3909, %v3905, 1326507024
    %v3920 = vsel %vm3908, %v3902, %v3919
    %v3921 = vsel %vm3907, %v3918, %v3920
    %v3922 = vshll.u32 %v3882, 8
    %v3923 = vmul.u32.u64.compose %v3922, %v3921
    %v3924 = vextract.low.u32 %v3923
    %v3925 = vextract.high.u32 %v3923
    %v3926 = vmul.u32.u64.compose %v3922, %v3917
    %v3927 = vextract.low.u32 %v3926
    %v3928 = vextract.high.u32 %v3926
    %v3929 = vmul.u32 %v3922, %v3913
    %v3930 = vadd.s32 %v3925, %v3927
    %vm3931 = vc.u32 %v3925, %v3927
    %v3932 = vadd.s32 %v3928, 1
    %v3933 = vsel %vm3931, %v3932, %v3928
    %v3934 = vadd.s32 %v3929, %v3933
    %v3935 = vadd.s32 %v3934, 536870912
    %v3936 = vshrl.u32 %v3935, 30
    %v3937 = vshll.u32 %v3936, 30
    %v3938 = vsub.s32 %v3934, %v3937
    %vm3939 = vcmp.lt.s32.totalorder %v3938, 0
    %v3940 = vsub.s32 0, %v3938
    %v3941 = vsel %vm3939, %v3940, %v3938
    %v3942 = vclz %v3941
    %v3943 = vsub.s32 %v3942, 2
    %vm3944 = vcmp.gt.s32.totalorder 0, %v3943
    %v3945 = vsel %vm3944, 0, %v3943
    %v3946 = vsub.s32 32, %v3945
    %v3947 = vshll.u32 %v3938, %v3945
    %v3948 = vshrl.u32 %v3930, %v3946
    %v3949 = vor.u32 %v3947, %v3948
    %v3950 = vsub.s32 4294967266, %v3945
    %v3951 = vadd.s32 %v3950, 127
    %v3952 = vshll.u32 %v3951, 23
    %v3953 = vor.u32 4788187, %v3952
    %v3954 = vand.u32 2147483647, %v3953
    %v3956 = vcvt.s32.f32 %v3949
    %v3957 = vmul.f32 %v3956, %v3954
    %v3958 = vxor.u32 %v3957, 2147483648
    %v3959 = vsel %vm3876, %v3958, %v3957
    %v3960 = vsub.s32 4, %v3936
    %v3961 = vsel %vm3876, %v3960, %v3936
    %v3962 = vsel %vm3875, %v665, %v3959
    %v3963 = vsel %vm3875, 0, %v3961
    %v3964 = vcosq.f32.pop %v3962
    %v3965 = vsinq.f32.pop %v3962
    %vm3966 = vweird.f32 %v665
    %v3967 = vadd.s32 %v3963, 3
    %v3968 = vand.u32 %v3967, 3
    %vm3969 = vcmp.lt.s32.totalorder %v3968, 2
    %vm3970 = vcmp.eq.s32.totalorder %v3968, 0
    %v3971 = vxor.u32 %v3965, 2147483648
    %v3972 = vsel %vm3970, %v3964, %v3971
    %vm3973 = vcmp.eq.s32.totalorder %v3968, 2
    %v3974 = vxor.u32 %v3964, 2147483648
    %v3975 = vsel %vm3973, %v3974, %v3965
    %v3976 = vsel %vm3969, %v3972, %v3975
    %v3977 = vsel %vm3966, nan, %v3976
    %v3978 = vld [vmem:[%s93] sm:$0xff]
    %v3979 = vld [vmem:[%s93 + $0x8] sm:$0xff]
    %v3980 = vld [vmem:[%s93 + $0x10] sm:$0xff]
    %v3981 = vld [vmem:[%s93 + $0x18] sm:$0xff]
    %v3982 = vld [vmem:[%s93 + $0x20] sm:$0xff]
    %v3983 = vld [vmem:[%s93 + $0x28] sm:$0xff]
    %v3984 = vld [vmem:[%s93 + $0x30] sm:$0xff]
    %v3985 = vld [vmem:[%s93 + $0x38] sm:$0xff]
    %v3986 = vld [vmem:[%s93 + $0x40] sm:$0xff]
    %v3987 = vld [vmem:[%s93 + $0x48] sm:$0xff]
    %v3988 = vld [vmem:[%s93 + $0x50] sm:$0xff]
    %v3989 = vld [vmem:[%s93 + $0x58] sm:$0xff]
    %v3990 = vld [vmem:[%s93 + $0x60] sm:$0xff]
    %v3991 = vld [vmem:[%s93 + $0x68] sm:$0xff]
    %v3992 = vld [vmem:[%s93 + $0x70] sm:$0xff]
    %v3993 = vld [vmem:[%s93 + $0x78] sm:$0xff]
    %v3994 = vld [vmem:[%s101] sm:$0xff]
    %v3995 = vld [vmem:[%s101 + $0x8] sm:$0xff]
    %v3996 = vld [vmem:[%s101 + $0x10] sm:$0xff]
    %v3997 = vld [vmem:[%s101 + $0x18] sm:$0xff]
    %v3998 = vld [vmem:[%s101 + $0x20] sm:$0xff]
    %v3999 = vld [vmem:[%s101 + $0x28] sm:$0xff]
    %v4000 = vld [vmem:[%s101 + $0x30] sm:$0xff]
    %v4001 = vld [vmem:[%s101 + $0x38] sm:$0xff]
    %v4002 = vld [vmem:[%s101 + $0x40] sm:$0xff]
    %v4003 = vld [vmem:[%s101 + $0x48] sm:$0xff]
    %v4004 = vld [vmem:[%s101 + $0x50] sm:$0xff]
    %v4005 = vld [vmem:[%s101 + $0x58] sm:$0xff]
    %v4006 = vld [vmem:[%s101 + $0x60] sm:$0xff]
    %v4007 = vld [vmem:[%s101 + $0x68] sm:$0xff]
    %v4008 = vld [vmem:[%s101 + $0x70] sm:$0xff]
    %v4009 = vld [vmem:[%s101 + $0x78] sm:$0xff]
    %4011 = vset.pattern.permute.xlu0 0
    %4012 = vperm.xlu0 %4011, %v3978
    %v4013 = vpop.permute.xlu0 %4012
    %4016 = vset.pattern.permute.xlu0 0
    %4017 = vperm.xlu0 %4016, %v3979
    %v4018 = vpop.permute.xlu0 %4017
    %4021 = vset.pattern.permute.xlu0 0
    %4022 = vperm.xlu0 %4021, %v3980
    %v4023 = vpop.permute.xlu0 %4022
    %4026 = vset.pattern.permute.xlu0 0
    %4027 = vperm.xlu0 %4026, %v3981
    %v4028 = vpop.permute.xlu0 %4027
    %4031 = vset.pattern.permute.xlu0 0
    %4032 = vperm.xlu0 %4031, %v3982
    %v4033 = vpop.permute.xlu0 %4032
    %4036 = vset.pattern.permute.xlu0 0
    %4037 = vperm.xlu0 %4036, %v3983
    %v4038 = vpop.permute.xlu0 %4037
    %4041 = vset.pattern.permute.xlu0 0
    %4042 = vperm.xlu0 %4041, %v3984
    %v4043 = vpop.permute.xlu0 %4042
    %4046 = vset.pattern.permute.xlu0 0
    %4047 = vperm.xlu0 %4046, %v3985
    %v4048 = vpop.permute.xlu0 %4047
    %4051 = vset.pattern.permute.xlu0 0
    %4052 = vperm.xlu0 %4051, %v3986
    %v4053 = vpop.permute.xlu0 %4052
    %4056 = vset.pattern.permute.xlu0 0
    %4057 = vperm.xlu0 %4056, %v3987
    %v4058 = vpop.permute.xlu0 %4057
    %4061 = vset.pattern.permute.xlu0 0
    %4062 = vperm.xlu0 %4061, %v3988
    %v4063 = vpop.permute.xlu0 %4062
    %4066 = vset.pattern.permute.xlu0 0
    %4067 = vperm.xlu0 %4066, %v3989
    %v4068 = vpop.permute.xlu0 %4067
    %4071 = vset.pattern.permute.xlu0 0
    %4072 = vperm.xlu0 %4071, %v3990
    %v4073 = vpop.permute.xlu0 %4072
    %4076 = vset.pattern.permute.xlu0 0
    %4077 = vperm.xlu0 %4076, %v3991
    %v4078 = vpop.permute.xlu0 %4077
    %4081 = vset.pattern.permute.xlu0 0
    %4082 = vperm.xlu0 %4081, %v3992
    %v4083 = vpop.permute.xlu0 %4082
    %4086 = vset.pattern.permute.xlu0 0
    %4087 = vperm.xlu0 %4086, %v3993
    %v4088 = vpop.permute.xlu0 %4087
    %v4090 = vmul.f32 %v4013, %v768
    %v4091 = vmul.f32 %v4018, %v871
    %v4092 = vmul.f32 %v4023, %v974
    %v4093 = vmul.f32 %v4028, %v1077
    %v4094 = vmul.f32 %v4033, %v1180
    %v4095 = vmul.f32 %v4038, %v1283
    %v4096 = vmul.f32 %v4043, %v1386
    %v4097 = vmul.f32 %v4048, %v1489
    %v4098 = vmul.f32 %v4053, %v1592
    %v4099 = vmul.f32 %v4058, %v1695
    %v4100 = vmul.f32 %v4063, %v1798
    %v4101 = vmul.f32 %v4068, %v1901
    %v4102 = vmul.f32 %v4073, %v2004
    %v4103 = vmul.f32 %v4078, %v2107
    %v4104 = vmul.f32 %v4083, %v2210
    %v4105 = vmul.f32 %v4088, %v2313
    %4107 = vset.pattern.permute.xlu0 0
    %4108 = vperm.xlu0 %4107, %v3994
    %v4109 = vpop.permute.xlu0 %4108
    %4112 = vset.pattern.permute.xlu0 0
    %4113 = vperm.xlu0 %4112, %v3995
    %v4114 = vpop.permute.xlu0 %4113
    %4117 = vset.pattern.permute.xlu0 0
    %4118 = vperm.xlu0 %4117, %v3996
    %v4119 = vpop.permute.xlu0 %4118
    %4122 = vset.pattern.permute.xlu0 0
    %4123 = vperm.xlu0 %4122, %v3997
    %v4124 = vpop.permute.xlu0 %4123
    %4127 = vset.pattern.permute.xlu0 0
    %4128 = vperm.xlu0 %4127, %v3998
    %v4129 = vpop.permute.xlu0 %4128
    %4132 = vset.pattern.permute.xlu0 0
    %4133 = vperm.xlu0 %4132, %v3999
    %v4134 = vpop.permute.xlu0 %4133
    %4137 = vset.pattern.permute.xlu0 0
    %4138 = vperm.xlu0 %4137, %v4000
    %v4139 = vpop.permute.xlu0 %4138
    %4142 = vset.pattern.permute.xlu0 0
    %4143 = vperm.xlu0 %4142, %v4001
    %v4144 = vpop.permute.xlu0 %4143
    %4147 = vset.pattern.permute.xlu0 0
    %4148 = vperm.xlu0 %4147, %v4002
    %v4149 = vpop.permute.xlu0 %4148
    %4152 = vset.pattern.permute.xlu0 0
    %4153 = vperm.xlu0 %4152, %v4003
    %v4154 = vpop.permute.xlu0 %4153
    %4157 = vset.pattern.permute.xlu0 0
    %4158 = vperm.xlu0 %4157, %v4004
    %v4159 = vpop.permute.xlu0 %4158
    %4162 = vset.pattern.permute.xlu0 0
    %4163 = vperm.xlu0 %4162, %v4005
    %v4164 = vpop.permute.xlu0 %4163
    %4167 = vset.pattern.permute.xlu0 0
    %4168 = vperm.xlu0 %4167, %v4006
    %v4169 = vpop.permute.xlu0 %4168
    %4172 = vset.pattern.permute.xlu0 0
    %4173 = vperm.xlu0 %4172, %v4007
    %v4174 = vpop.permute.xlu0 %4173
    %4177 = vset.pattern.permute.xlu0 0
    %4178 = vperm.xlu0 %4177, %v4008
    %v4179 = vpop.permute.xlu0 %4178
    %4182 = vset.pattern.permute.xlu0 0
    %4183 = vperm.xlu0 %4182, %v4009
    %v4184 = vpop.permute.xlu0 %4183
    %v4186 = vmul.f32 %v4109, %v2417
    %v4187 = vmul.f32 %v4114, %v2521
    %v4188 = vmul.f32 %v4119, %v2625
    %v4189 = vmul.f32 %v4124, %v2729
    %v4190 = vmul.f32 %v4129, %v2833
    %v4191 = vmul.f32 %v4134, %v2937
    %v4192 = vmul.f32 %v4139, %v3041
    %v4193 = vmul.f32 %v4144, %v3145
    %v4194 = vmul.f32 %v4149, %v3249
    %v4195 = vmul.f32 %v4154, %v3353
    %v4196 = vmul.f32 %v4159, %v3457
    %v4197 = vmul.f32 %v4164, %v3561
    %v4198 = vmul.f32 %v4169, %v3665
    %v4199 = vmul.f32 %v4174, %v3769
    %v4200 = vmul.f32 %v4179, %v3873
    %v4201 = vmul.f32 %v4184, %v3977
    %v4202 = vsub.f32 %v4090, %v4186
    %v4203 = vsub.f32 %v4091, %v4187
    %v4204 = vsub.f32 %v4092, %v4188
    %v4205 = vsub.f32 %v4093, %v4189
    %v4206 = vsub.f32 %v4094, %v4190
    %v4207 = vsub.f32 %v4095, %v4191
    %v4208 = vsub.f32 %v4096, %v4192
    %v4209 = vsub.f32 %v4097, %v4193
    %v4210 = vsub.f32 %v4098, %v4194
    %v4211 = vsub.f32 %v4099, %v4195
    %v4212 = vsub.f32 %v4100, %v4196
    %v4213 = vsub.f32 %v4101, %v4197
    %v4214 = vsub.f32 %v4102, %v4198
    %v4215 = vsub.f32 %v4103, %v4199
    %v4216 = vsub.f32 %v4104, %v4200
    %v4217 = vsub.f32 %v4105, %v4201
    %v4218 = vmul.f32 %v4013, %v2417
    %v4219 = vmul.f32 %v4018, %v2521
    %v4220 = vmul.f32 %v4023, %v2625
    %v4221 = vmul.f32 %v4028, %v2729
    %v4222 = vmul.f32 %v4033, %v2833
    %v4223 = vmul.f32 %v4038, %v2937
    %v4224 = vmul.f32 %v4043, %v3041
    %v4225 = vmul.f32 %v4048, %v3145
    %v4226 = vmul.f32 %v4053, %v3249
    %v4227 = vmul.f32 %v4058, %v3353
    %v4228 = vmul.f32 %v4063, %v3457
    %v4229 = vmul.f32 %v4068, %v3561
    %v4230 = vmul.f32 %v4073, %v3665
    %v4231 = vmul.f32 %v4078, %v3769
    %v4232 = vmul.f32 %v4083, %v3873
    %v4233 = vmul.f32 %v4088, %v3977
    %v4234 = vmul.f32 %v4109, %v768
    %v4235 = vmul.f32 %v4114, %v871
    %v4236 = vmul.f32 %v4119, %v974
    %v4237 = vmul.f32 %v4124, %v1077
    %v4238 = vmul.f32 %v4129, %v1180
    %v4239 = vmul.f32 %v4134, %v1283
    %v4240 = vmul.f32 %v4139, %v1386
    %v4241 = vmul.f32 %v4144, %v1489
    %v4242 = vmul.f32 %v4149, %v1592
    %v4243 = vmul.f32 %v4154, %v1695
    %v4244 = vmul.f32 %v4159, %v1798
    %v4245 = vmul.f32 %v4164, %v1901
    %v4246 = vmul.f32 %v4169, %v2004
    %v4247 = vmul.f32 %v4174, %v2107
    %v4248 = vmul.f32 %v4179, %v2210
    %v4249 = vmul.f32 %v4184, %v2313
    %v4250 = vadd.f32 %v4218, %v4234
    %v4251 = vadd.f32 %v4219, %v4235
    %v4252 = vadd.f32 %v4220, %v4236
    %v4253 = vadd.f32 %v4221, %v4237
    %v4254 = vadd.f32 %v4222, %v4238
    %v4255 = vadd.f32 %v4223, %v4239
    %v4256 = vadd.f32 %v4224, %v4240
    %v4257 = vadd.f32 %v4225, %v4241
    %v4258 = vadd.f32 %v4226, %v4242
    %v4259 = vadd.f32 %v4227, %v4243
    %v4260 = vadd.f32 %v4228, %v4244
    %v4261 = vadd.f32 %v4229, %v4245
    %v4262 = vadd.f32 %v4230, %v4246
    %v4263 = vadd.f32 %v4231, %v4247
    %v4264 = vadd.f32 %v4232, %v4248
    %v4265 = vadd.f32 %v4233, %v4249
    %4266 = vmatprep.subr.mxu0 0.0
    %4267 = vmatpush1.msra.mxu0 %v4202
    %4268 = vmatprep.subr.mxu0 0.0
    %4269 = vmatpush1.msra.mxu0 %v4203
    %4270 = vmatprep.subr.mxu0 0.0
    %4271 = vmatpush1.msra.mxu0 %v4204
    %4272 = vmatprep.subr.mxu0 0.0
    %4273 = vmatpush1.msra.mxu0 %v4205
    %4274 = vmatprep.subr.mxu0 0.0
    %4275 = vmatpush1.msra.mxu0 %v4206
    %4276 = vmatprep.subr.mxu0 0.0
    %4277 = vmatpush1.msra.mxu0 %v4207
    %4278 = vmatprep.subr.mxu0 0.0
    %4279 = vmatpush1.msra.mxu0 %v4208
    %4280 = vmatprep.subr.mxu0 0.0
    %4281 = vmatpush1.msra.mxu0 %v4209
    %4282 = vmatprep.subr.mxu0 0.0
    %4283 = vmatpush1.msra.mxu0 %v4210
    %4284 = vmatprep.subr.mxu0 0.0
    %4285 = vmatpush1.msra.mxu0 %v4211
    %4286 = vmatprep.subr.mxu0 0.0
    %4287 = vmatpush1.msra.mxu0 %v4212
    %4288 = vmatprep.subr.mxu0 0.0
    %4289 = vmatpush1.msra.mxu0 %v4213
    %4290 = vmatprep.subr.mxu0 0.0
    %4291 = vmatpush1.msra.mxu0 %v4214
    %4292 = vmatprep.subr.mxu0 0.0
    %4293 = vmatpush1.msra.mxu0 %v4215
    %4294 = vmatprep.subr.mxu0 0.0
    %4295 = vmatpush1.msra.mxu0 %v4216
    %4296 = vmatprep.subr.mxu0 0.0
    %4297 = vmatpush1.msra.mxu0 %v4217
    %4298 = vmatprep.subr.mxu0 0.0
    %4299 = vmatpush1.msra.mxu0 0.0
    %4300 = vmatprep.subr.mxu0 0.0
    %4301 = vmatpush1.msra.mxu0 0.0
    %4302 = vmatprep.subr.mxu0 0.0
    %4303 = vmatpush1.msra.mxu0 0.0
    %4304 = vmatprep.subr.mxu0 0.0
    %4305 = vmatpush1.msra.mxu0 0.0
    %4306 = vmatprep.subr.mxu0 0.0
    %4307 = vmatpush1.msra.mxu0 0.0
    %4308 = vmatprep.subr.mxu0 0.0
    %4309 = vmatpush1.msra.mxu0 0.0
    %4310 = vmatprep.subr.mxu0 0.0
    %4311 = vmatpush1.msra.mxu0 0.0
    %4312 = vmatprep.subr.mxu0 0.0
    %4313 = vmatpush1.msra.mxu0 0.0
    %4314 = vmatprep.subr.mxu0 0.0
    %4315 = vmatpush1.msra.mxu0 0.0
    %4316 = vmatprep.subr.mxu0 0.0
    %4317 = vmatpush1.msra.mxu0 0.0
    %4318 = vmatprep.subr.mxu0 0.0
    %4319 = vmatpush1.msra.mxu0 0.0
    %4320 = vmatprep.subr.mxu0 0.0
    %4321 = vmatpush1.msra.mxu0 0.0
    %4322 = vmatprep.subr.mxu0 0.0
    %4323 = vmatpush1.msra.mxu0 0.0
    %4324 = vmatprep.subr.mxu0 0.0
    %4325 = vmatpush1.msra.mxu0 0.0
    %4326 = vmatprep.subr.mxu0 0.0
    %4327 = vmatpush1.msra.mxu0 0.0
    %4328 = vmatprep.subr.mxu0 0.0
    %4329 = vmatpush1.msra.mxu0 0.0
    %4330 = vmatprep.mubr.f32.mxu0 0.0
    %4331 = vmatmul.mubr.f32.gmra.mrb[0].mxu0 %v235
    %v4332 = vpop.f32.mrb[0].mxu0
    %v4333 = vadd.f32 0.0, %v4332
    %v4334 = vpop.f32.mrb[0].mxu0
    %4335 = vmatprep.mubr.f32.mxu0 0.0
    %4336 = vmatmul.mubr.f32.gmra.mrb[0].mxu0 %v338
    %v4337 = vpop.f32.mrb[0].mxu0
    %v4338 = vadd.f32 0.0, %v4337
    %v4339 = vpop.f32.mrb[0].mxu0
    %4340 = vdwg.mxu0
    %4341 = vmatprep.subr.mxu0 0.0
    %4342 = vmatpush1.msra.mxu0 %v4250
    %4343 = vmatprep.subr.mxu0 0.0
    %4344 = vmatpush1.msra.mxu0 %v4251
    %4345 = vmatprep.subr.mxu0 0.0
    %4346 = vmatpush1.msra.mxu0 %v4252
    %4347 = vmatprep.subr.mxu0 0.0
    %4348 = vmatpush1.msra.mxu0 %v4253
    %4349 = vmatprep.subr.mxu0 0.0
    %4350 = vmatpush1.msra.mxu0 %v4254
    %4351 = vmatprep.subr.mxu0 0.0
    %4352 = vmatpush1.msra.mxu0 %v4255
    %4353 = vmatprep.subr.mxu0 0.0
    %4354 = vmatpush1.msra.mxu0 %v4256
    %4355 = vmatprep.subr.mxu0 0.0
    %4356 = vmatpush1.msra.mxu0 %v4257
    %4357 = vmatprep.subr.mxu0 0.0
    %4358 = vmatpush1.msra.mxu0 %v4258
    %4359 = vmatprep.subr.mxu0 0.0
    %4360 = vmatpush1.msra.mxu0 %v4259
    %4361 = vmatprep.subr.mxu0 0.0
    %4362 = vmatpush1.msra.mxu0 %v4260
    %4363 = vmatprep.subr.mxu0 0.0
    %4364 = vmatpush1.msra.mxu0 %v4261
    %4365 = vmatprep.subr.mxu0 0.0
    %4366 = vmatpush1.msra.mxu0 %v4262
    %4367 = vmatprep.subr.mxu0 0.0
    %4368 = vmatpush1.msra.mxu0 %v4263
    %4369 = vmatprep.subr.mxu0 0.0
    %4370 = vmatpush1.msra.mxu0 %v4264
    %4371 = vmatprep.subr.mxu0 0.0
    %4372 = vmatpush1.msra.mxu0 %v4265
    %4373 = vmatprep.subr.mxu0 0.0
    %4374 = vmatpush1.msra.mxu0 0.0
    %4375 = vmatprep.subr.mxu0 0.0
    %4376 = vmatpush1.msra.mxu0 0.0
    %4377 = vmatprep.subr.mxu0 0.0
    %4378 = vmatpush1.msra.mxu0 0.0
    %4379 = vmatprep.subr.mxu0 0.0
    %4380 = vmatpush1.msra.mxu0 0.0
    %4381 = vmatprep.subr.mxu0 0.0
    %4382 = vmatpush1.msra.mxu0 0.0
    %4383 = vmatprep.subr.mxu0 0.0
    %4384 = vmatpush1.msra.mxu0 0.0
    %4385 = vmatprep.subr.mxu0 0.0
    %4386 = vmatpush1.msra.mxu0 0.0
    %4387 = vmatprep.subr.mxu0 0.0
    %4388 = vmatpush1.msra.mxu0 0.0
    %4389 = vmatprep.subr.mxu0 0.0
    %4390 = vmatpush1.msra.mxu0 0.0
    %4391 = vmatprep.subr.mxu0 0.0
    %4392 = vmatpush1.msra.mxu0 0.0
    %4393 = vmatprep.subr.mxu0 0.0
    %4394 = vmatpush1.msra.mxu0 0.0
    %4395 = vmatprep.subr.mxu0 0.0
    %4396 = vmatpush1.msra.mxu0 0.0
    %4397 = vmatprep.subr.mxu0 0.0
    %4398 = vmatpush1.msra.mxu0 0.0
    %4399 = vmatprep.subr.mxu0 0.0
    %4400 = vmatpush1.msra.mxu0 0.0
    %4401 = vmatprep.subr.mxu0 0.0
    %4402 = vmatpush1.msra.mxu0 0.0
    %4403 = vmatprep.subr.mxu0 0.0
    %4404 = vmatpush1.msra.mxu0 0.0
    %4405 = vmatprep.mubr.f32.mxu0 0.0
    %4406 = vmatmul.mubr.f32.gmra.mrb[0].mxu0 %v442
    %v4407 = vpop.f32.mrb[0].mxu0
    %v4408 = vadd.f32 0.0, %v4407
    %v4409 = vpop.f32.mrb[0].mxu0
    %4410 = vmatprep.mubr.f32.mxu0 0.0
    %4411 = vmatmul.mubr.f32.gmra.mrb[0].mxu0 %v546
    %v4412 = vpop.f32.mrb[0].mxu0
    %v4413 = vadd.f32 0.0, %v4412
    %v4414 = vpop.f32.mrb[0].mxu0
    %4415 = vdwg.mxu0
    %v4416 = vsub.f32 %v4333, %v4408
    %v4417 = vsub.f32 %v4338, %v4413
    %v4418 = vld [vmem:[#allocation2] sm:$0xff]
    %v4419 = vld [vmem:[#allocation2 + $0x8] sm:$0xff]
    %v4420 = vadd.f32 %v4418, %v4416
    %v4421 = vadd.f32 %v4419, %v4417
    %4422 = vst [vmem:[#allocation2] sm:$0xff] %v4420
    %4423 = vst [vmem:[#allocation2 + $0x8] sm:$0xff] %v4421
    // Predicated region
    $region30: #{tpu_custom_call.1} parent=1 // pred_check
      _
    $region31: #{tpu_custom_call.1} parent=1 // pred_check_branch
      %4425 = sbr.rel (0) target = $region33
    $region32: #{tpu_custom_call.1} parent=1 // pred_region
      %s4426 = sadd.s32 0, 0
      %s4427 = smul.u32 2, %s4426
      %s4429 = ssub.s32 256, 256
      %4430 = vsyncadd [#allocation3], %s4429
      %s4431 = smul.addr %s4427, 128
      %s4432 = scalar_lea.hbm %s6, %s4431
      %s4433 = sshll.u32 [#allocation2], 4
      %s4434 = int_to_ptr.vmem [resolvable:$true] %s4433
      %4439 = dma.vmem_to_hbm [thread:$0]  %s4434, 256, %s4432, [#allocation3], 128, 128, 8
    $region33: #{tpu_custom_call.1} parent=1 // pred_fallthru
      _
    // Predicated region
    $region34: #{tpu_custom_call.1} parent=1 // pred_check
      _
    $region35: #{tpu_custom_call.1} parent=1 // pred_check_branch
      %4441 = sbr.rel (0) target = $region37
    $region36: #{tpu_custom_call.1} parent=1 // pred_region
      %4442 = dma.done [#allocation3], 256
    $region37: #{tpu_custom_call.1} parent=1 // pred_fallthru
      _
    %4443 = vsyncpa [#allocation3], 1

</llo_original>
